<compile_context>
chip_gen: v7x
topology: tpu7x:2x2x1
jax: 0.10.0
libtpu: 0.0.40
codegen_flags: <defaults>
</compile_context>

<pallas_src>
import functools

import jax
import jax.numpy as jnp
from jax.experimental import pallas as pl
from jax.experimental.pallas import tpu as pltpu


_LANE = 128                       # pad narrow channel dims up to this (lane-dense)
_VMEM_LIMIT = 32 * 1024 * 1024    # <= physical on v5e/v6e/v7x; >= default everywhere


def _round_up(x, m):
    return (x + m - 1) // m * m


def _pick_tile(M, cap=512):
    """Pick an M-tile (multiple of 8) and padded M with Mp % tm == 0.

    Prefers divisors of M (no padding copy) and >=2 grid steps (megacore/2-TC)."""
    if M <= 256:
        tm = max(8, _round_up((M + 1) // 2, 8))
        return tm, _round_up(M, tm)
    cap8 = max(128, (min(cap, M // 2) // 8) * 8)
    for t in range(cap8, 127, -8):
        if M % t == 0:
            return t, M
    return cap8, _round_up(M, cap8)


# ----------------------------------------------------------------------------
# Pallas kernels
# ----------------------------------------------------------------------------
def _mm_bn_act_kernel(a_ref, b_ref, t_ref, o_ref, *, relu):
    # conv-as-matmul (BN scale already folded into b) + shift (+ ReLU)
    y = jnp.dot(a_ref[...], b_ref[...], preferred_element_type=jnp.float32)
    y = y + t_ref[...]
    if relu:
        y = jnp.maximum(y, 0.0)
    o_ref[...] = y.astype(o_ref.dtype)


def _mm_bn_act_res_kernel(a_ref, b_ref, t_ref, r_ref, o_ref, *, relu):
    # conv-as-matmul + shift + residual add (+ ReLU) -- bottleneck tail
    y = jnp.dot(a_ref[...], b_ref[...], preferred_element_type=jnp.float32)
    y = y + t_ref[...] + r_ref[...].astype(jnp.float32)
    if relu:
        y = jnp.maximum(y, 0.0)
    o_ref[...] = y.astype(o_ref.dtype)


def _conv3x3_bn_relu_kernel(x_ref, w_ref, t_ref, o_ref):
    # Whole 3x3/stride-1 conv for one image: 9-tap loop in VMEM, f32 accumulate.
    # x_ref: (1, Hp, Wp, Cin) bf16 (spatially padded), w_ref: (9, Cin, Cout) bf16,
    # t_ref: (1, Cout) f32 shift, o_ref: (1, Ho, Wo, Cout) bf16.
    _, Ho, Wo, Cout = o_ref.shape
    x = x_ref[0]                                           # (Hp, Wp, Cin)
    cin = x.shape[-1]
    acc = jnp.zeros((Ho * Wo, Cout), jnp.float32)
    k = 0
    for dh in range(3):
        for dw in range(3):
            tap = x[dh:dh + Ho, dw:dw + Wo, :].reshape(Ho * Wo, cin)
            acc = acc + jnp.dot(tap, w_ref[k], preferred_element_type=jnp.float32)
            k += 1
    y = jnp.maximum(acc + t_ref[...], 0.0)
    o_ref[0] = y.reshape(Ho, Wo, Cout).astype(o_ref.dtype)


def _maxpool3x3_kernel(x_ref, o_ref):
    # 3x3/stride-2 max pool for one image.  Input is the -inf-padded feature map,
    # pre-split into its 4 stride-2 phases: x_ref (4, Hh, Wh, C), phase = 2*(dh%2)+(dw%2).
    _, Ho, Wo, C = o_ref.shape
    x = x_ref[...]
    m = None
    for dh in range(3):
        for dw in range(3):
            tap = x[(dh % 2) * 2 + (dw % 2),
                    dh // 2:dh // 2 + Ho,
                    dw // 2:dw // 2 + Wo, :]
            m = tap if m is None else jnp.maximum(m, tap)
    o_ref[0] = m


# ----------------------------------------------------------------------------
# Pallas call wrappers
# ----------------------------------------------------------------------------
def fused_matmul_bn_act(a, b, shift, residual=None, relu=True,
                        out_dtype=jnp.bfloat16):
    """a: (M, K) bf16, b: (K, N) bf16 (BN scale folded in), shift: (N,) f32."""
    M, K = a.shape
    _, N = b.shape
    tm, Mp = _pick_tile(M)
    if Mp != M:
        a = jnp.pad(a, ((0, Mp - M), (0, 0)))
        if residual is not None:
            residual = jnp.pad(residual, ((0, Mp - M), (0, 0)))
    shift2 = shift.reshape(1, N).astype(jnp.float32)

    in_specs = [
        pl.BlockSpec((tm, K), lambda i: (i, 0)),
        pl.BlockSpec((K, N), lambda i: (0, 0)),
        pl.BlockSpec((1, N), lambda i: (0, 0)),
    ]
    args = [a, b, shift2]
    if residual is not None:
        in_specs.append(pl.BlockSpec((tm, N), lambda i: (i, 0)))
        args.append(residual)
        kernel = functools.partial(_mm_bn_act_res_kernel, relu=relu)
    else:
        kernel = functools.partial(_mm_bn_act_kernel, relu=relu)

    out = pl.pallas_call(
        kernel,
        out_shape=jax.ShapeDtypeStruct((Mp, N), out_dtype),
        grid=(Mp // tm,),
        in_specs=in_specs,
        out_specs=pl.BlockSpec((tm, N), lambda i: (i, 0)),
        compiler_params=pltpu.CompilerParams(
            dimension_semantics=("parallel",),
            vmem_limit_bytes=_VMEM_LIMIT),
    )(*args)
    return out if Mp == M else out[:M]


def conv1x1_bn_act(x, p, relu=True, residual=None):
    """1x1 conv + folded BN (+ residual) (+ ReLU). x: (N, H, W, C) bf16."""
    N, H, W, C = x.shape
    a = x.reshape(N * H * W, C)
    res = None if residual is None else residual.reshape(N * H * W, residual.shape[-1])
    out = fused_matmul_bn_act(a, p["w"], p["shift"], residual=res, relu=relu)
    return out.reshape(N, H, W, -1)


def conv3x3_bn_relu(x, p):
    """3x3 conv, stride 1, pad 1, per-image in-kernel tap loop. x: (N,H,W,Cin) bf16."""
    N, H, W, Cin = x.shape
    Cout = p["w"].shape[-1]
    xp = jnp.pad(x, ((0, 0), (1, 1), (1, 1), (0, 0)))
    Hp, Wp = H + 2, W + 2
    shift2 = p["shift"].reshape(1, Cout).astype(jnp.float32)
    return pl.pallas_call(
        _conv3x3_bn_relu_kernel,
        out_shape=jax.ShapeDtypeStruct((N, H, W, Cout), x.dtype),
        grid=(N,),
        in_specs=[
            pl.BlockSpec((1, Hp, Wp, Cin), lambda n: (n, 0, 0, 0)),
            pl.BlockSpec((9, Cin, Cout), lambda n: (0, 0, 0)),
            pl.BlockSpec((1, Cout), lambda n: (0, 0)),
        ],
        out_specs=pl.BlockSpec((1, H, W, Cout), lambda n: (n, 0, 0, 0)),
        compiler_params=pltpu.CompilerParams(
            dimension_semantics=("parallel",),
            vmem_limit_bytes=_VMEM_LIMIT),
    )(xp, p["w"], shift2)


def maxpool_3x3_s2_p1(x):
    """3x3/stride-2/pad-1 max pool via per-image kernel on the 4 stride-2 phases."""
    N, H, W, C = x.shape
    assert H % 2 == 0 and W % 2 == 0
    Ho, Wo = H // 2, W // 2
    xp = jnp.pad(x, ((0, 0), (1, 1), (1, 1), (0, 0)),
                 constant_values=float("-inf"))
    Hh, Wh = (H + 2) // 2, (W + 2) // 2
    # phases[n, a, b, i, j, c] = xp[n, 2i+a, 2j+b, c]; same total size as xp.
    ph = xp.reshape(N, Hh, 2, Wh, 2, C).transpose(0, 2, 4, 1, 3, 5)
    ph = ph.reshape(N * 4, Hh, Wh, C)
    return pl.pallas_call(
        _maxpool3x3_kernel,
        out_shape=jax.ShapeDtypeStruct((N, Ho, Wo, C), x.dtype),
        grid=(N,),
        in_specs=[pl.BlockSpec((4, Hh, Wh, C), lambda n: (n, 0, 0, 0))],
        out_specs=pl.BlockSpec((1, Ho, Wo, C), lambda n: (n, 0, 0, 0)),
        compiler_params=pltpu.CompilerParams(
            dimension_semantics=("parallel",),
            vmem_limit_bytes=_VMEM_LIMIT),
    )(ph)


def _extract_patches_s2(x, kh, kw, stride, pad):
    """im2col for the 3-channel stem only (bf16).  Returns ((M, kh*kw*C), Ho, Wo)."""
    N, H, W, C = x.shape
    Ho = (H + 2 * pad - kh) // stride + 1
    Wo = (W + 2 * pad - kw) // stride + 1
    xp = jnp.pad(x, ((0, 0), (pad, pad), (pad, pad), (0, 0)))
    taps = []
    for dh in range(kh):
        for dw in range(kw):
            taps.append(xp[:, dh:dh + stride * Ho:stride, dw:dw + stride * Wo:stride, :])
    p = jnp.stack(taps, axis=3)                      # (N, Ho, Wo, kh*kw, C)
    return p.reshape(N * Ho * Wo, kh * kw * C), Ho, Wo


def stem_conv7x7(x_nhwc, p):
    """conv1 (7x7/s2/p3) + bn1 + relu, bf16 im2col + fused matmul."""
    N = x_nhwc.shape[0]
    x = x_nhwc.astype(jnp.bfloat16)
    patches, Ho, Wo = _extract_patches_s2(x, 7, 7, 2, 3)
    Kp = p["w"].shape[0]
    if patches.shape[1] != Kp:                       # K padded to a multiple of 8
        patches = jnp.pad(patches, ((0, 0), (0, Kp - patches.shape[1])))
    out = fused_matmul_bn_act(patches, p["w"], p["shift"], relu=True)
    return out.reshape(N, Ho, Wo, -1)


# ----------------------------------------------------------------------------
# ResNet-50 stem + layer1 (children[:5])
# ----------------------------------------------------------------------------
def bottleneck(x, p):
    identity = x
    out = conv1x1_bn_act(x, p["conv1"], relu=True)          # 1x1 reduce
    out = conv3x3_bn_relu(out, p["conv2"])                   # 3x3
    if "down" in p:
        identity = conv1x1_bn_act(x, p["down"], relu=False)  # downsample path
    # 1x1 expand + BN shift + residual add + ReLU fused in the kernel
    out = conv1x1_bn_act(out, p["conv3"], relu=True, residual=identity)
    return out


def feature_extract(x_nchw, params):
    """Mirrors featureExtract.forward: returns (base_feature [NCHW f32], f = x flattened)."""
    x = jnp.transpose(x_nchw, (0, 2, 3, 1))                  # NCHW -> NHWC
    y = stem_conv7x7(x, params["stem"])                      # conv1 + bn1 + relu
    y = maxpool_3x3_s2_p1(y)                                 # maxpool
    for blk in params["layer1"]:                             # layer1 (3 bottlenecks)
        y = bottleneck(y, blk)
    base_feature = jnp.transpose(y, (0, 3, 1, 2)).astype(jnp.float32)   # NCHW f32
    f = x_nchw.reshape(x_nchw.shape[0], -1)                  # f = x.view(N, -1)
    return base_feature, f


# ----------------------------------------------------------------------------
# Parameters: synthetic replacement for pretrained weights (BN folded, padded, bf16)
# TODO(synk): real use would load torchvision resnet50 weights and pad identically.
# ----------------------------------------------------------------------------
def _pad_axis(a, axis, size):
    if a.shape[axis] == size:
        return a
    pads = [(0, 0)] * a.ndim
    pads[axis] = (0, size - a.shape[axis])
    return jnp.pad(a, pads)


def _rand_conv_bn(key, cout, cin, kh, kw):
    """Random conv + eval-mode BN, with BN scale folded into the conv weights."""
    k1, k2, k3, k4, k5 = jax.random.split(key, 5)
    w = jax.random.normal(k1, (cout, cin, kh, kw), jnp.float32) * (cin * kh * kw) ** -0.5
    gamma = 1.0 + 0.1 * jax.random.normal(k2, (cout,), jnp.float32)
    beta = 0.1 * jax.random.normal(k3, (cout,), jnp.float32)
    mean = 0.1 * jax.random.normal(k4, (cout,), jnp.float32)
    var = 0.5 + jax.random.uniform(k5, (cout,), jnp.float32)
    scale = gamma * jax.lax.rsqrt(var + 1e-5)
    shift = beta - mean * scale
    return w * scale[:, None, None, None], shift


def _matmul_params(w_oihw, shift, cin_pad=None, cout_pad=None):
    """(O,I,kh,kw) scale-folded conv -> matmul weight (K, O) bf16 + shift (O,) f32."""
    cout, cin, kh, kw = w_oihw.shape
    if cin_pad:
        w_oihw = _pad_axis(w_oihw, 1, cin_pad)
        cin = cin_pad
    wm = jnp.transpose(w_oihw, (2, 3, 1, 0)).reshape(kh * kw * cin, cout)
    wm = _pad_axis(wm, 0, _round_up(kh * kw * cin, 8))       # pad K to mult of 8
    if cout_pad:
        wm = _pad_axis(wm, 1, cout_pad)
        shift = _pad_axis(shift, 0, cout_pad)
    return {"w": wm.astype(jnp.bfloat16), "shift": shift.astype(jnp.float32)}


def _conv3x3_params(w_oihw, shift, cin_pad=None, cout_pad=None):
    """(O,I,3,3) scale-folded conv -> (9, Cin, Cout) bf16 tap weights + shift."""
    if cin_pad:
        w_oihw = _pad_axis(w_oihw, 1, cin_pad)
    if cout_pad:
        w_oihw = _pad_axis(w_oihw, 0, cout_pad)
        shift = _pad_axis(shift, 0, cout_pad)
    cout, cin, kh, kw = w_oihw.shape
    wt = jnp.transpose(w_oihw, (2, 3, 1, 0)).reshape(kh * kw, cin, cout)
    return {"w": wt.astype(jnp.bfloat16), "shift": shift.astype(jnp.float32)}


def init_params(key):
    keys = jax.random.split(key, 16)
    # stem 7x7/s2: cout 64 -> zero-padded to 128 for lane-dense stores
    w, s = _rand_conv_bn(keys[0], 64, 3, 7, 7)
    params = {"stem": _matmul_params(w, s, cout_pad=_LANE)}

    layer1 = []
    w1, s1 = _rand_conv_bn(keys[1], 64, 64, 1, 1)
    w2, s2 = _rand_conv_bn(keys[2], 64, 64, 3, 3)
    w3, s3 = _rand_conv_bn(keys[3], 256, 64, 1, 1)
    wd, sd = _rand_conv_bn(keys[4], 256, 64, 1, 1)
    layer1.append({
        "conv1": _matmul_params(w1, s1, cin_pad=_LANE, cout_pad=_LANE),
        "conv2": _conv3x3_params(w2, s2, cin_pad=_LANE, cout_pad=_LANE),
        "conv3": _matmul_params(w3, s3, cin_pad=_LANE),
        "down": _matmul_params(wd, sd, cin_pad=_LANE),
    })
    for i in range(2):
        base = 5 + 3 * i
        w1, s1 = _rand_conv_bn(keys[base + 0], 64, 256, 1, 1)
        w2, s2 = _rand_conv_bn(keys[base + 1], 64, 64, 3, 3)
        w3, s3 = _rand_conv_bn(keys[base + 2], 256, 64, 1, 1)
        layer1.append({
            "conv1": _matmul_params(w1, s1, cout_pad=_LANE),
            "conv2": _conv3x3_params(w2, s2, cin_pad=_LANE, cout_pad=_LANE),
            "conv3": _matmul_params(w3, s3, cin_pad=_LANE),
        })
    params["layer1"] = layer1
    return params


if __name__ == "__main__":
    key = jax.random.PRNGKey(0)
    kx, kp = jax.random.split(key)
    # ResNet-50 stem requires 3 input channels; small 32x32 spatial extent.
    x = jax.random.normal(kx, (2, 3, 32, 32), jnp.float32)
    params = init_params(kp)

    fe = jax.jit(feature_extract)
    base_feature, f = fe(x, params)
    jax.block_until_ready((base_feature, f))

    assert base_feature.shape == (2, 256, 8, 8), base_feature.shape
    assert base_feature.dtype == jnp.float32
    assert f.shape == (2, 3 * 32 * 32), f.shape
    print("KERNEL_OK")
</pallas_src>

<mosaic_0001>
module attributes {stable_mosaic.version = 11 : i64} {
  func.func @_mm_bn_act_kernel(%arg0: i32, %arg1: memref<256x152xbf16, #tpu.memory_space<vmem>>, %arg2: memref<152x128xbf16, #tpu.memory_space<vmem>>, %arg3: memref<1x128xf32, #tpu.memory_space<vmem>>, %arg4: memref<256x128xbf16, #tpu.memory_space<vmem>>) attributes {dimension_semantics = [#tpu.dimension_semantics<parallel>], iteration_bounds = array<i64: 2>, scalar_prefetch = 0 : i64, scratch_operands = 0 : i64, tpu.core_type = #tpu.core_type<tc>, window_params = [{transform_indices = @transform_0, window_bounds = array<i64: 256, 152>}, {pipeline_mode = #tpu.pipeline_mode<synchronous>, transform_indices = @transform_1, window_bounds = array<i64: 152, 128>}, {pipeline_mode = #tpu.pipeline_mode<synchronous>, transform_indices = @transform_2, window_bounds = array<i64: 1, 128>}, {transform_indices = @transform_3, window_bounds = array<i64: 256, 128>}]} {
    %c0 = arith.constant 0 : index
    %c0_0 = arith.constant 0 : index
    %0 = vector.load %arg1[%c0, %c0_0] : memref<256x152xbf16, #tpu.memory_space<vmem>>, vector<256x152xbf16>
    %c0_1 = arith.constant 0 : index
    %c0_2 = arith.constant 0 : index
    %1 = vector.load %arg2[%c0_1, %c0_2] : memref<152x128xbf16, #tpu.memory_space<vmem>>, vector<152x128xbf16>
    %cst = arith.constant dense<0.000000e+00> : vector<256x128xf32>
    %2 = tpu.matmul %0, %1, %cst {dimension_numbers = #tpu.dot_dimension_numbers<[1], [0], [0], [1], [0, 0, 1, 1], [], []>} : vector<256x152xbf16>, vector<152x128xbf16>, vector<256x128xf32> -> vector<256x128xf32>
    %c0_3 = arith.constant 0 : index
    %c0_4 = arith.constant 0 : index
    %3 = vector.load %arg3[%c0_3, %c0_4] : memref<1x128xf32, #tpu.memory_space<vmem>>, vector<1x128xf32>
    %4 = vector.broadcast %3 : vector<1x128xf32> to vector<256x128xf32>
    %5 = arith.addf %2, %4 : vector<256x128xf32>
    %cst_5 = arith.constant 0.000000e+00 : f32
    %6 = vector.broadcast %cst_5 : f32 to vector<256x128xf32>
    %7 = arith.maximumf %5, %6 : vector<256x128xf32>
    %8 = arith.truncf %7 : vector<256x128xf32> to vector<256x128xbf16>
    %c0_6 = arith.constant 0 : index
    %c0_7 = arith.constant 0 : index
    %9 = vector.load %arg4[%c0_6, %c0_7] : memref<256x128xbf16, #tpu.memory_space<vmem>>, vector<256x128xbf16>
    tpu.vector_store %arg4[%c0_6, %c0_7], %8 {strides = array<i32>} : memref<256x128xbf16, #tpu.memory_space<vmem>>, vector<256x128xbf16>,
    return
  }
  func.func @transform_0(%arg0: i32) -> (i32, i32) {
    %c0_i32 = arith.constant 0 : i32
    %c0_i32_0 = arith.constant 0 : i32
    return %arg0, %c0_i32 : i32, i32
  }
  func.func @transform_1(%arg0: i32) -> (i32, i32) {
    %c0_i32 = arith.constant 0 : i32
    %c0_i32_0 = arith.constant 0 : i32
    %c0_i32_1 = arith.constant 0 : i32
    return %c0_i32, %c0_i32_0 : i32, i32
  }
  func.func @transform_2(%arg0: i32) -> (i32, i32) {
    %c0_i32 = arith.constant 0 : i32
    %c0_i32_0 = arith.constant 0 : i32
    %c0_i32_1 = arith.constant 0 : i32
    return %c0_i32, %c0_i32_0 : i32, i32
  }
  func.func @transform_3(%arg0: i32) -> (i32, i32) {
    %c0_i32 = arith.constant 0 : i32
    %c0_i32_0 = arith.constant 0 : i32
    return %arg0, %c0_i32 : i32, i32
  }
}

module attributes {stable_mosaic.version = 11 : i64} {
  func.func @_mm_bn_act_kernel(%arg0: i32, %arg1: memref<64x128xbf16, #tpu.memory_space<vmem>>, %arg2: memref<128x128xbf16, #tpu.memory_space<vmem>>, %arg3: memref<1x128xf32, #tpu.memory_space<vmem>>, %arg4: memref<64x128xbf16, #tpu.memory_space<vmem>>) attributes {dimension_semantics = [#tpu.dimension_semantics<parallel>], iteration_bounds = array<i64: 2>, scalar_prefetch = 0 : i64, scratch_operands = 0 : i64, tpu.core_type = #tpu.core_type<tc>, window_params = [{transform_indices = @transform_0, window_bounds = array<i64: 64, 128>}, {pipeline_mode = #tpu.pipeline_mode<synchronous>, transform_indices = @transform_1, window_bounds = array<i64: 128, 128>}, {pipeline_mode = #tpu.pipeline_mode<synchronous>, transform_indices = @transform_2, window_bounds = array<i64: 1, 128>}, {transform_indices = @transform_3, window_bounds = array<i64: 64, 128>}]} {
    %c0 = arith.constant 0 : index
    %c0_0 = arith.constant 0 : index
    %0 = vector.load %arg1[%c0, %c0_0] : memref<64x128xbf16, #tpu.memory_space<vmem>>, vector<64x128xbf16>
    %c0_1 = arith.constant 0 : index
    %c0_2 = arith.constant 0 : index
    %1 = vector.load %arg2[%c0_1, %c0_2] : memref<128x128xbf16, #tpu.memory_space<vmem>>, vector<128x128xbf16>
    %cst = arith.constant dense<0.000000e+00> : vector<64x128xf32>
    %2 = tpu.matmul %0, %1, %cst {dimension_numbers = #tpu.dot_dimension_numbers<[1], [0], [0], [1], [0, 0, 1, 1], [], []>} : vector<64x128xbf16>, vector<128x128xbf16>, vector<64x128xf32> -> vector<64x128xf32>
    %c0_3 = arith.constant 0 : index
    %c0_4 = arith.constant 0 : index
    %3 = vector.load %arg3[%c0_3, %c0_4] : memref<1x128xf32, #tpu.memory_space<vmem>>, vector<1x128xf32>
    %4 = vector.broadcast %3 : vector<1x128xf32> to vector<64x128xf32>
    %5 = arith.addf %2, %4 : vector<64x128xf32>
    %cst_5 = arith.constant 0.000000e+00 : f32
    %6 = vector.broadcast %cst_5 : f32 to vector<64x128xf32>
    %7 = arith.maximumf %5, %6 : vector<64x128xf32>
    %8 = arith.truncf %7 : vector<64x128xf32> to vector<64x128xbf16>
    %c0_6 = arith.constant 0 : index
    %c0_7 = arith.constant 0 : index
    %9 = vector.load %arg4[%c0_6, %c0_7] : memref<64x128xbf16, #tpu.memory_space<vmem>>, vector<64x128xbf16>
    tpu.vector_store %arg4[%c0_6, %c0_7], %8 {strides = array<i32>} : memref<64x128xbf16, #tpu.memory_space<vmem>>, vector<64x128xbf16>,
    return
  }
  func.func @transform_0(%arg0: i32) -> (i32, i32) {
    %c0_i32 = arith.constant 0 : i32
    %c0_i32_0 = arith.constant 0 : i32
    return %arg0, %c0_i32 : i32, i32
  }
  func.func @transform_1(%arg0: i32) -> (i32, i32) {
    %c0_i32 = arith.constant 0 : i32
    %c0_i32_0 = arith.constant 0 : i32
    %c0_i32_1 = arith.constant 0 : i32
    return %c0_i32, %c0_i32_0 : i32, i32
  }
  func.func @transform_2(%arg0: i32) -> (i32, i32) {
    %c0_i32 = arith.constant 0 : i32
    %c0_i32_0 = arith.constant 0 : i32
    %c0_i32_1 = arith.constant 0 : i32
    return %c0_i32, %c0_i32_0 : i32, i32
  }
  func.func @transform_3(%arg0: i32) -> (i32, i32) {
    %c0_i32 = arith.constant 0 : i32
    %c0_i32_0 = arith.constant 0 : i32
    return %arg0, %c0_i32 : i32, i32
  }
}

module attributes {stable_mosaic.version = 11 : i64} {
  func.func @_maxpool3x3_kernel(%arg0: i32, %arg1: memref<4x9x9x128xbf16, #tpu.memory_space<vmem>>, %arg2: memref<1x8x8x128xbf16, #tpu.memory_space<vmem>>) attributes {dimension_semantics = [#tpu.dimension_semantics<parallel>], iteration_bounds = array<i64: 2>, scalar_prefetch = 0 : i64, scratch_operands = 0 : i64, tpu.core_type = #tpu.core_type<tc>, window_params = [{transform_indices = @transform_0, window_bounds = array<i64: 4, 9, 9, 128>}, {transform_indices = @transform_1, window_bounds = array<i64: 1, 8, 8, 128>}]} {
    %c0 = arith.constant 0 : index
    %c0_0 = arith.constant 0 : index
    %c0_1 = arith.constant 0 : index
    %c0_2 = arith.constant 0 : index
    %0 = vector.load %arg1[%c0, %c0_0, %c0_1, %c0_2] : memref<4x9x9x128xbf16, #tpu.memory_space<vmem>>, vector<4x9x9x128xbf16>
    %1 = vector.extract_strided_slice %0 {offsets = [0, 0, 0, 0], sizes = [1, 8, 8, 128], strides = [1, 1, 1, 1]} : vector<4x9x9x128xbf16> to vector<1x8x8x128xbf16>
    %2 = vector.shape_cast %1 : vector<1x8x8x128xbf16> to vector<8x8x128xbf16>
    %3 = vector.extract_strided_slice %0 {offsets = [1, 0, 0, 0], sizes = [1, 8, 8, 128], strides = [1, 1, 1, 1]} : vector<4x9x9x128xbf16> to vector<1x8x8x128xbf16>
    %4 = vector.shape_cast %3 : vector<1x8x8x128xbf16> to vector<8x8x128xbf16>
    %5 = arith.maximumf %2, %4 : vector<8x8x128xbf16>
    %6 = vector.extract_strided_slice %0 {offsets = [0, 0, 1, 0], sizes = [1, 8, 8, 128], strides = [1, 1, 1, 1]} : vector<4x9x9x128xbf16> to vector<1x8x8x128xbf16>
    %7 = vector.shape_cast %6 : vector<1x8x8x128xbf16> to vector<8x8x128xbf16>
    %8 = arith.maximumf %5, %7 : vector<8x8x128xbf16>
    %9 = vector.extract_strided_slice %0 {offsets = [2, 0, 0, 0], sizes = [1, 8, 8, 128], strides = [1, 1, 1, 1]} : vector<4x9x9x128xbf16> to vector<1x8x8x128xbf16>
    %10 = vector.shape_cast %9 : vector<1x8x8x128xbf16> to vector<8x8x128xbf16>
    %11 = arith.maximumf %8, %10 : vector<8x8x128xbf16>
    %12 = vector.extract_strided_slice %0 {offsets = [3, 0, 0, 0], sizes = [1, 8, 8, 128], strides = [1, 1, 1, 1]} : vector<4x9x9x128xbf16> to vector<1x8x8x128xbf16>
    %13 = vector.shape_cast %12 : vector<1x8x8x128xbf16> to vector<8x8x128xbf16>
    %14 = arith.maximumf %11, %13 : vector<8x8x128xbf16>
    %15 = vector.extract_strided_slice %0 {offsets = [2, 0, 1, 0], sizes = [1, 8, 8, 128], strides = [1, 1, 1, 1]} : vector<4x9x9x128xbf16> to vector<1x8x8x128xbf16>
    %16 = vector.shape_cast %15 : vector<1x8x8x128xbf16> to vector<8x8x128xbf16>
    %17 = arith.maximumf %14, %16 : vector<8x8x128xbf16>
    %18 = vector.extract_strided_slice %0 {offsets = [0, 1, 0, 0], sizes = [1, 8, 8, 128], strides = [1, 1, 1, 1]} : vector<4x9x9x128xbf16> to vector<1x8x8x128xbf16>
    %19 = vector.shape_cast %18 : vector<1x8x8x128xbf16> to vector<8x8x128xbf16>
    %20 = arith.maximumf %17, %19 : vector<8x8x128xbf16>
    %21 = vector.extract_strided_slice %0 {offsets = [1, 1, 0, 0], sizes = [1, 8, 8, 128], strides = [1, 1, 1, 1]} : vector<4x9x9x128xbf16> to vector<1x8x8x128xbf16>
    %22 = vector.shape_cast %21 : vector<1x8x8x128xbf16> to vector<8x8x128xbf16>
    %23 = arith.maximumf %20, %22 : vector<8x8x128xbf16>
    %24 = vector.extract_strided_slice %0 {offsets = [0, 1, 1, 0], sizes = [1, 8, 8, 128], strides = [1, 1, 1, 1]} : vector<4x9x9x128xbf16> to vector<1x8x8x128xbf16>
    %25 = vector.shape_cast %24 : vector<1x8x8x128xbf16> to vector<8x8x128xbf16>
    %26 = arith.maximumf %23, %25 : vector<8x8x128xbf16>
    %c0_3 = arith.constant 0 : index
    %c0_4 = arith.constant 0 : index
    %c0_5 = arith.constant 0 : index
    %c0_6 = arith.constant 0 : index
    %27 = vector.load %arg2[%c0_3, %c0_4, %c0_5, %c0_6] : memref<1x8x8x128xbf16, #tpu.memory_space<vmem>>, vector<1x8x8x128xbf16>
    %28 = vector.shape_cast %27 : vector<1x8x8x128xbf16> to vector<8x8x128xbf16>
    %29 = vector.shape_cast %26 : vector<8x8x128xbf16> to vector<1x8x8x128xbf16>
    tpu.vector_store %arg2[%c0_3, %c0_4, %c0_5, %c0_6], %29 {strides = array<i32>} : memref<1x8x8x128xbf16, #tpu.memory_space<vmem>>, vector<1x8x8x128xbf16>,
    return
  }
  func.func @transform_0(%arg0: i32) -> (i32, i32, i32, i32) {
    %c0_i32 = arith.constant 0 : i32
    %c0_i32_0 = arith.constant 0 : i32
    %c0_i32_1 = arith.constant 0 : i32
    %c0_i32_2 = arith.constant 0 : i32
    return %arg0, %c0_i32, %c0_i32_0, %c0_i32_1 : i32, i32, i32, i32
  }
  func.func @transform_1(%arg0: i32) -> (i32, i32, i32, i32) {
    %c0_i32 = arith.constant 0 : i32
    %c0_i32_0 = arith.constant 0 : i32
    %c0_i32_1 = arith.constant 0 : i32
    %c0_i32_2 = arith.constant 0 : i32
    return %arg0, %c0_i32, %c0_i32_0, %c0_i32_1 : i32, i32, i32, i32
  }
}

module attributes {stable_mosaic.version = 11 : i64} {
  func.func @_mm_bn_act_kernel(%arg0: i32, %arg1: memref<64x128xbf16, #tpu.memory_space<vmem>>, %arg2: memref<128x256xbf16, #tpu.memory_space<vmem>>, %arg3: memref<1x256xf32, #tpu.memory_space<vmem>>, %arg4: memref<64x256xbf16, #tpu.memory_space<vmem>>) attributes {dimension_semantics = [#tpu.dimension_semantics<parallel>], iteration_bounds = array<i64: 2>, scalar_prefetch = 0 : i64, scratch_operands = 0 : i64, tpu.core_type = #tpu.core_type<tc>, window_params = [{transform_indices = @transform_0, window_bounds = array<i64: 64, 128>}, {pipeline_mode = #tpu.pipeline_mode<synchronous>, transform_indices = @transform_1, window_bounds = array<i64: 128, 256>}, {pipeline_mode = #tpu.pipeline_mode<synchronous>, transform_indices = @transform_2, window_bounds = array<i64: 1, 256>}, {transform_indices = @transform_3, window_bounds = array<i64: 64, 256>}]} {
    %c0 = arith.constant 0 : index
    %c0_0 = arith.constant 0 : index
    %0 = vector.load %arg1[%c0, %c0_0] : memref<64x128xbf16, #tpu.memory_space<vmem>>, vector<64x128xbf16>
    %c0_1 = arith.constant 0 : index
    %c0_2 = arith.constant 0 : index
    %1 = vector.load %arg2[%c0_1, %c0_2] : memref<128x256xbf16, #tpu.memory_space<vmem>>, vector<128x256xbf16>
    %cst = arith.constant dense<0.000000e+00> : vector<64x256xf32>
    %2 = tpu.matmul %0, %1, %cst {dimension_numbers = #tpu.dot_dimension_numbers<[1], [0], [0], [1], [0, 0, 1, 1], [], []>} : vector<64x128xbf16>, vector<128x256xbf16>, vector<64x256xf32> -> vector<64x256xf32>
    %c0_3 = arith.constant 0 : index
    %c0_4 = arith.constant 0 : index
    %3 = vector.load %arg3[%c0_3, %c0_4] : memref<1x256xf32, #tpu.memory_space<vmem>>, vector<1x256xf32>
    %4 = vector.broadcast %3 : vector<1x256xf32> to vector<64x256xf32>
    %5 = arith.addf %2, %4 : vector<64x256xf32>
    %6 = arith.truncf %5 : vector<64x256xf32> to vector<64x256xbf16>
    %c0_5 = arith.constant 0 : index
    %c0_6 = arith.constant 0 : index
    %7 = vector.load %arg4[%c0_5, %c0_6] : memref<64x256xbf16, #tpu.memory_space<vmem>>, vector<64x256xbf16>
    tpu.vector_store %arg4[%c0_5, %c0_6], %6 {strides = array<i32>} : memref<64x256xbf16, #tpu.memory_space<vmem>>, vector<64x256xbf16>,
    return
  }
  func.func @transform_0(%arg0: i32) -> (i32, i32) {
    %c0_i32 = arith.constant 0 : i32
    %c0_i32_0 = arith.constant 0 : i32
    return %arg0, %c0_i32 : i32, i32
  }
  func.func @transform_1(%arg0: i32) -> (i32, i32) {
    %c0_i32 = arith.constant 0 : i32
    %c0_i32_0 = arith.constant 0 : i32
    %c0_i32_1 = arith.constant 0 : i32
    return %c0_i32, %c0_i32_0 : i32, i32
  }
  func.func @transform_2(%arg0: i32) -> (i32, i32) {
    %c0_i32 = arith.constant 0 : i32
    %c0_i32_0 = arith.constant 0 : i32
    %c0_i32_1 = arith.constant 0 : i32
    return %c0_i32, %c0_i32_0 : i32, i32
  }
  func.func @transform_3(%arg0: i32) -> (i32, i32) {
    %c0_i32 = arith.constant 0 : i32
    %c0_i32_0 = arith.constant 0 : i32
    return %arg0, %c0_i32 : i32, i32
  }
}

module attributes {stable_mosaic.version = 11 : i64} {
  func.func @_conv3x3_bn_relu_kernel(%arg0: i32, %arg1: memref<1x10x10x128xbf16, #tpu.memory_space<vmem>>, %arg2: memref<9x128x128xbf16, #tpu.memory_space<vmem>>, %arg3: memref<1x128xf32, #tpu.memory_space<vmem>>, %arg4: memref<1x8x8x128xbf16, #tpu.memory_space<vmem>>) attributes {dimension_semantics = [#tpu.dimension_semantics<parallel>], iteration_bounds = array<i64: 2>, scalar_prefetch = 0 : i64, scratch_operands = 0 : i64, tpu.core_type = #tpu.core_type<tc>, window_params = [{transform_indices = @transform_0, window_bounds = array<i64: 1, 10, 10, 128>}, {pipeline_mode = #tpu.pipeline_mode<synchronous>, transform_indices = @transform_1, window_bounds = array<i64: 9, 128, 128>}, {pipeline_mode = #tpu.pipeline_mode<synchronous>, transform_indices = @transform_2, window_bounds = array<i64: 1, 128>}, {transform_indices = @transform_3, window_bounds = array<i64: 1, 8, 8, 128>}]} {
    %c0 = arith.constant 0 : index
    %c0_0 = arith.constant 0 : index
    %c0_1 = arith.constant 0 : index
    %c0_2 = arith.constant 0 : index
    %0 = vector.load %arg1[%c0, %c0_0, %c0_1, %c0_2] : memref<1x10x10x128xbf16, #tpu.memory_space<vmem>>, vector<1x10x10x128xbf16>
    %1 = vector.shape_cast %0 : vector<1x10x10x128xbf16> to vector<10x10x128xbf16>
    %cst = arith.constant 0.000000e+00 : f32
    %2 = vector.broadcast %cst : f32 to vector<64x128xf32>
    %3 = vector.extract_strided_slice %1 {offsets = [0, 0, 0], sizes = [8, 8, 128], strides = [1, 1, 1]} : vector<10x10x128xbf16> to vector<8x8x128xbf16>
    %4 = vector.shape_cast %3 : vector<8x8x128xbf16> to vector<64x128xbf16>
    %c0_3 = arith.constant 0 : index
    %c0_4 = arith.constant 0 : index
    %c0_5 = arith.constant 0 : index
    %5 = vector.load %arg2[%c0_3, %c0_4, %c0_5] : memref<9x128x128xbf16, #tpu.memory_space<vmem>>, vector<1x128x128xbf16>
    %6 = vector.shape_cast %5 : vector<1x128x128xbf16> to vector<128x128xbf16>
    %cst_6 = arith.constant dense<0.000000e+00> : vector<64x128xf32>
    %7 = tpu.matmul %4, %6, %cst_6 {dimension_numbers = #tpu.dot_dimension_numbers<[1], [0], [0], [1], [0, 0, 1, 1], [], []>} : vector<64x128xbf16>, vector<128x128xbf16>, vector<64x128xf32> -> vector<64x128xf32>
    %8 = arith.addf %2, %7 : vector<64x128xf32>
    %9 = vector.extract_strided_slice %1 {offsets = [0, 1, 0], sizes = [8, 8, 128], strides = [1, 1, 1]} : vector<10x10x128xbf16> to vector<8x8x128xbf16>
    %10 = vector.shape_cast %9 : vector<8x8x128xbf16> to vector<64x128xbf16>
    %c1 = arith.constant 1 : index
    %c0_7 = arith.constant 0 : index
    %c0_8 = arith.constant 0 : index
    %11 = vector.load %arg2[%c1, %c0_7, %c0_8] : memref<9x128x128xbf16, #tpu.memory_space<vmem>>, vector<1x128x128xbf16>
    %12 = vector.shape_cast %11 : vector<1x128x128xbf16> to vector<128x128xbf16>
    %cst_9 = arith.constant dense<0.000000e+00> : vector<64x128xf32>
    %13 = tpu.matmul %10, %12, %cst_9 {dimension_numbers = #tpu.dot_dimension_numbers<[1], [0], [0], [1], [0, 0, 1, 1], [], []>} : vector<64x128xbf16>, vector<128x128xbf16>, vector<64x128xf32> -> vector<64x128xf32>
    %14 = arith.addf %8, %13 : vector<64x128xf32>
    %15 = vector.extract_strided_slice %1 {offsets = [0, 2, 0], sizes = [8, 8, 128], strides = [1, 1, 1]} : vector<10x10x128xbf16> to vector<8x8x128xbf16>
    %16 = vector.shape_cast %15 : vector<8x8x128xbf16> to vector<64x128xbf16>
    %c2 = arith.constant 2 : index
    %c0_10 = arith.constant 0 : index
    %c0_11 = arith.constant 0 : index
    %17 = vector.load %arg2[%c2, %c0_10, %c0_11] : memref<9x128x128xbf16, #tpu.memory_space<vmem>>, vector<1x128x128xbf16>
    %18 = vector.shape_cast %17 : vector<1x128x128xbf16> to vector<128x128xbf16>
    %cst_12 = arith.constant dense<0.000000e+00> : vector<64x128xf32>
    %19 = tpu.matmul %16, %18, %cst_12 {dimension_numbers = #tpu.dot_dimension_numbers<[1], [0], [0], [1], [0, 0, 1, 1], [], []>} : vector<64x128xbf16>, vector<128x128xbf16>, vector<64x128xf32> -> vector<64x128xf32>
    %20 = arith.addf %14, %19 : vector<64x128xf32>
    %21 = vector.extract_strided_slice %1 {offsets = [1, 0, 0], sizes = [8, 8, 128], strides = [1, 1, 1]} : vector<10x10x128xbf16> to vector<8x8x128xbf16>
    %22 = vector.shape_cast %21 : vector<8x8x128xbf16> to vector<64x128xbf16>
    %c3 = arith.constant 3 : index
    %c0_13 = arith.constant 0 : index
    %c0_14 = arith.constant 0 : index
    %23 = vector.load %arg2[%c3, %c0_13, %c0_14] : memref<9x128x128xbf16, #tpu.memory_space<vmem>>, vector<1x128x128xbf16>
    %24 = vector.shape_cast %23 : vector<1x128x128xbf16> to vector<128x128xbf16>
    %cst_15 = arith.constant dense<0.000000e+00> : vector<64x128xf32>
    %25 = tpu.matmul %22, %24, %cst_15 {dimension_numbers = #tpu.dot_dimension_numbers<[1], [0], [0], [1], [0, 0, 1, 1], [], []>} : vector<64x128xbf16>, vector<128x128xbf16>, vector<64x128xf32> -> vector<64x128xf32>
    %26 = arith.addf %20, %25 : vector<64x128xf32>
    %27 = vector.extract_strided_slice %1 {offsets = [1, 1, 0], sizes = [8, 8, 128], strides = [1, 1, 1]} : vector<10x10x128xbf16> to vector<8x8x128xbf16>
    %28 = vector.shape_cast %27 : vector<8x8x128xbf16> to vector<64x128xbf16>
    %c4 = arith.constant 4 : index
    %c0_16 = arith.constant 0 : index
    %c0_17 = arith.constant 0 : index
    %29 = vector.load %arg2[%c4, %c0_16, %c0_17] : memref<9x128x128xbf16, #tpu.memory_space<vmem>>, vector<1x128x128xbf16>
    %30 = vector.shape_cast %29 : vector<1x128x128xbf16> to vector<128x128xbf16>
    %cst_18 = arith.constant dense<0.000000e+00> : vector<64x128xf32>
    %31 = tpu.matmul %28, %30, %cst_18 {dimension_numbers = #tpu.dot_dimension_numbers<[1], [0], [0], [1], [0, 0, 1, 1], [], []>} : vector<64x128xbf16>, vector<128x128xbf16>, vector<64x128xf32> -> vector<64x128xf32>
    %32 = arith.addf %26, %31 : vector<64x128xf32>
    %33 = vector.extract_strided_slice %1 {offsets = [1, 2, 0], sizes = [8, 8, 128], strides = [1, 1, 1]} : vector<10x10x128xbf16> to vector<8x8x128xbf16>
    %34 = vector.shape_cast %33 : vector<8x8x128xbf16> to vector<64x128xbf16>
    %c5 = arith.constant 5 : index
    %c0_19 = arith.constant 0 : index
    %c0_20 = arith.constant 0 : index
    %35 = vector.load %arg2[%c5, %c0_19, %c0_20] : memref<9x128x128xbf16, #tpu.memory_space<vmem>>, vector<1x128x128xbf16>
    %36 = vector.shape_cast %35 : vector<1x128x128xbf16> to vector<128x128xbf16>
    %cst_21 = arith.constant dense<0.000000e+00> : vector<64x128xf32>
    %37 = tpu.matmul %34, %36, %cst_21 {dimension_numbers = #tpu.dot_dimension_numbers<[1], [0], [0], [1], [0, 0, 1, 1], [], []>} : vector<64x128xbf16>, vector<128x128xbf16>, vector<64x128xf32> -> vector<64x128xf32>
    %38 = arith.addf %32, %37 : vector<64x128xf32>
    %39 = vector.extract_strided_slice %1 {offsets = [2, 0, 0], sizes = [8, 8, 128], strides = [1, 1, 1]} : vector<10x10x128xbf16> to vector<8x8x128xbf16>
    %40 = vector.shape_cast %39 : vector<8x8x128xbf16> to vector<64x128xbf16>
    %c6 = arith.constant 6 : index
    %c0_22 = arith.constant 0 : index
    %c0_23 = arith.constant 0 : index
    %41 = vector.load %arg2[%c6, %c0_22, %c0_23] : memref<9x128x128xbf16, #tpu.memory_space<vmem>>, vector<1x128x128xbf16>
    %42 = vector.shape_cast %41 : vector<1x128x128xbf16> to vector<128x128xbf16>
    %cst_24 = arith.constant dense<0.000000e+00> : vector<64x128xf32>
    %43 = tpu.matmul %40, %42, %cst_24 {dimension_numbers = #tpu.dot_dimension_numbers<[1], [0], [0], [1], [0, 0, 1, 1], [], []>} : vector<64x128xbf16>, vector<128x128xbf16>, vector<64x128xf32> -> vector<64x128xf32>
    %44 = arith.addf %38, %43 : vector<64x128xf32>
    %45 = vector.extract_strided_slice %1 {offsets = [2, 1, 0], sizes = [8, 8, 128], strides = [1, 1, 1]} : vector<10x10x128xbf16> to vector<8x8x128xbf16>
    %46 = vector.shape_cast %45 : vector<8x8x128xbf16> to vector<64x128xbf16>
    %c7 = arith.constant 7 : index
    %c0_25 = arith.constant 0 : index
    %c0_26 = arith.constant 0 : index
    %47 = vector.load %arg2[%c7, %c0_25, %c0_26] : memref<9x128x128xbf16, #tpu.memory_space<vmem>>, vector<1x128x128xbf16>
    %48 = vector.shape_cast %47 : vector<1x128x128xbf16> to vector<128x128xbf16>
    %cst_27 = arith.constant dense<0.000000e+00> : vector<64x128xf32>
    %49 = tpu.matmul %46, %48, %cst_27 {dimension_numbers = #tpu.dot_dimension_numbers<[1], [0], [0], [1], [0, 0, 1, 1], [], []>} : vector<64x128xbf16>, vector<128x128xbf16>, vector<64x128xf32> -> vector<64x128xf32>
    %50 = arith.addf %44, %49 : vector<64x128xf32>
    %51 = vector.extract_strided_slice %1 {offsets = [2, 2, 0], sizes = [8, 8, 128], strides = [1, 1, 1]} : vector<10x10x128xbf16> to vector<8x8x128xbf16>
    %52 = vector.shape_cast %51 : vector<8x8x128xbf16> to vector<64x128xbf16>
    %c8 = arith.constant 8 : index
    %c0_28 = arith.constant 0 : index
    %c0_29 = arith.constant 0 : index
    %53 = vector.load %arg2[%c8, %c0_28, %c0_29] : memref<9x128x128xbf16, #tpu.memory_space<vmem>>, vector<1x128x128xbf16>
    %54 = vector.shape_cast %53 : vector<1x128x128xbf16> to vector<128x128xbf16>
    %cst_30 = arith.constant dense<0.000000e+00> : vector<64x128xf32>
    %55 = tpu.matmul %52, %54, %cst_30 {dimension_numbers = #tpu.dot_dimension_numbers<[1], [0], [0], [1], [0, 0, 1, 1], [], []>} : vector<64x128xbf16>, vector<128x128xbf16>, vector<64x128xf32> -> vector<64x128xf32>
    %56 = arith.addf %50, %55 : vector<64x128xf32>
    %c0_31 = arith.constant 0 : index
    %c0_32 = arith.constant 0 : index
    %57 = vector.load %arg3[%c0_31, %c0_32] : memref<1x128xf32, #tpu.memory_space<vmem>>, vector<1x128xf32>
    %58 = vector.broadcast %57 : vector<1x128xf32> to vector<64x128xf32>
    %59 = arith.addf %56, %58 : vector<64x128xf32>
    %cst_33 = arith.constant 0.000000e+00 : f32
    %60 = vector.broadcast %cst_33 : f32 to vector<64x128xf32>
    %61 = arith.maximumf %59, %60 : vector<64x128xf32>
    %62 = vector.shape_cast %61 : vector<64x128xf32> to vector<8x8x128xf32>
    %63 = arith.truncf %62 : vector<8x8x128xf32> to vector<8x8x128xbf16>
    %c0_34 = arith.constant 0 : index
    %c0_35 = arith.constant 0 : index
    %c0_36 = arith.constant 0 : index
    %c0_37 = arith.constant 0 : index
    %64 = vector.load %arg4[%c0_34, %c0_35, %c0_36, %c0_37] : memref<1x8x8x128xbf16, #tpu.memory_space<vmem>>, vector<1x8x8x128xbf16>
    %65 = vector.shape_cast %64 : vector<1x8x8x128xbf16> to vector<8x8x128xbf16>
    %66 = vector.shape_cast %63 : vector<8x8x128xbf16> to vector<1x8x8x128xbf16>
    tpu.vector_store %arg4[%c0_34, %c0_35, %c0_36, %c0_37], %66 {strides = array<i32>} : memref<1x8x8x128xbf16, #tpu.memory_space<vmem>>, vector<1x8x8x128xbf16>,
    return
  }
  func.func @transform_0(%arg0: i32) -> (i32, i32, i32, i32) {
    %c0_i32 = arith.constant 0 : i32
    %c0_i32_0 = arith.constant 0 : i32
    %c0_i32_1 = arith.constant 0 : i32
    %c0_i32_2 = arith.constant 0 : i32
    return %arg0, %c0_i32, %c0_i32_0, %c0_i32_1 : i32, i32, i32, i32
  }
  func.func @transform_1(%arg0: i32) -> (i32, i32, i32) {
    %c0_i32 = arith.constant 0 : i32
    %c0_i32_0 = arith.constant 0 : i32
    %c0_i32_1 = arith.constant 0 : i32
    %c0_i32_2 = arith.constant 0 : i32
    return %c0_i32, %c0_i32_0, %c0_i32_1 : i32, i32, i32
  }
  func.func @transform_2(%arg0: i32) -> (i32, i32) {
    %c0_i32 = arith.constant 0 : i32
    %c0_i32_0 = arith.constant 0 : i32
    %c0_i32_1 = arith.constant 0 : i32
    return %c0_i32, %c0_i32_0 : i32, i32
  }
  func.func @transform_3(%arg0: i32) -> (i32, i32, i32, i32) {
    %c0_i32 = arith.constant 0 : i32
    %c0_i32_0 = arith.constant 0 : i32
    %c0_i32_1 = arith.constant 0 : i32
    %c0_i32_2 = arith.constant 0 : i32
    return %arg0, %c0_i32, %c0_i32_0, %c0_i32_1 : i32, i32, i32, i32
  }
}

module attributes {stable_mosaic.version = 11 : i64} {
  func.func @_mm_bn_act_res_kernel(%arg0: i32, %arg1: memref<64x128xbf16, #tpu.memory_space<vmem>>, %arg2: memref<128x256xbf16, #tpu.memory_space<vmem>>, %arg3: memref<1x256xf32, #tpu.memory_space<vmem>>, %arg4: memref<64x256xbf16, #tpu.memory_space<vmem>>, %arg5: memref<64x256xbf16, #tpu.memory_space<vmem>>) attributes {dimension_semantics = [#tpu.dimension_semantics<parallel>], iteration_bounds = array<i64: 2>, scalar_prefetch = 0 : i64, scratch_operands = 0 : i64, tpu.core_type = #tpu.core_type<tc>, window_params = [{transform_indices = @transform_0, window_bounds = array<i64: 64, 128>}, {pipeline_mode = #tpu.pipeline_mode<synchronous>, transform_indices = @transform_1, window_bounds = array<i64: 128, 256>}, {pipeline_mode = #tpu.pipeline_mode<synchronous>, transform_indices = @transform_2, window_bounds = array<i64: 1, 256>}, {transform_indices = @transform_3, window_bounds = array<i64: 64, 256>}, {transform_indices = @transform_4, window_bounds = array<i64: 64, 256>}]} {
    %c0 = arith.constant 0 : index
    %c0_0 = arith.constant 0 : index
    %0 = vector.load %arg1[%c0, %c0_0] : memref<64x128xbf16, #tpu.memory_space<vmem>>, vector<64x128xbf16>
    %c0_1 = arith.constant 0 : index
    %c0_2 = arith.constant 0 : index
    %1 = vector.load %arg2[%c0_1, %c0_2] : memref<128x256xbf16, #tpu.memory_space<vmem>>, vector<128x256xbf16>
    %cst = arith.constant dense<0.000000e+00> : vector<64x256xf32>
    %2 = tpu.matmul %0, %1, %cst {dimension_numbers = #tpu.dot_dimension_numbers<[1], [0], [0], [1], [0, 0, 1, 1], [], []>} : vector<64x128xbf16>, vector<128x256xbf16>, vector<64x256xf32> -> vector<64x256xf32>
    %c0_3 = arith.constant 0 : index
    %c0_4 = arith.constant 0 : index
    %3 = vector.load %arg3[%c0_3, %c0_4] : memref<1x256xf32, #tpu.memory_space<vmem>>, vector<1x256xf32>
    %4 = vector.broadcast %3 : vector<1x256xf32> to vector<64x256xf32>
    %5 = arith.addf %2, %4 : vector<64x256xf32>
    %c0_5 = arith.constant 0 : index
    %c0_6 = arith.constant 0 : index
    %6 = vector.load %arg4[%c0_5, %c0_6] : memref<64x256xbf16, #tpu.memory_space<vmem>>, vector<64x256xbf16>
    %7 = arith.extf %6 : vector<64x256xbf16> to vector<64x256xf32>
    %8 = arith.addf %5, %7 : vector<64x256xf32>
    %cst_7 = arith.constant 0.000000e+00 : f32
    %9 = vector.broadcast %cst_7 : f32 to vector<64x256xf32>
    %10 = arith.maximumf %8, %9 : vector<64x256xf32>
    %11 = arith.truncf %10 : vector<64x256xf32> to vector<64x256xbf16>
    %c0_8 = arith.constant 0 : index
    %c0_9 = arith.constant 0 : index
    %12 = vector.load %arg5[%c0_8, %c0_9] : memref<64x256xbf16, #tpu.memory_space<vmem>>, vector<64x256xbf16>
    tpu.vector_store %arg5[%c0_8, %c0_9], %11 {strides = array<i32>} : memref<64x256xbf16, #tpu.memory_space<vmem>>, vector<64x256xbf16>,
    return
  }
  func.func @transform_0(%arg0: i32) -> (i32, i32) {
    %c0_i32 = arith.constant 0 : i32
    %c0_i32_0 = arith.constant 0 : i32
    return %arg0, %c0_i32 : i32, i32
  }
  func.func @transform_1(%arg0: i32) -> (i32, i32) {
    %c0_i32 = arith.constant 0 : i32
    %c0_i32_0 = arith.constant 0 : i32
    %c0_i32_1 = arith.constant 0 : i32
    return %c0_i32, %c0_i32_0 : i32, i32
  }
  func.func @transform_2(%arg0: i32) -> (i32, i32) {
    %c0_i32 = arith.constant 0 : i32
    %c0_i32_0 = arith.constant 0 : i32
    %c0_i32_1 = arith.constant 0 : i32
    return %c0_i32, %c0_i32_0 : i32, i32
  }
  func.func @transform_3(%arg0: i32) -> (i32, i32) {
    %c0_i32 = arith.constant 0 : i32
    %c0_i32_0 = arith.constant 0 : i32
    return %arg0, %c0_i32 : i32, i32
  }
  func.func @transform_4(%arg0: i32) -> (i32, i32) {
    %c0_i32 = arith.constant 0 : i32
    %c0_i32_0 = arith.constant 0 : i32
    return %arg0, %c0_i32 : i32, i32
  }
}

module attributes {stable_mosaic.version = 11 : i64} {
  func.func @_mm_bn_act_kernel(%arg0: i32, %arg1: memref<64x256xbf16, #tpu.memory_space<vmem>>, %arg2: memref<256x128xbf16, #tpu.memory_space<vmem>>, %arg3: memref<1x128xf32, #tpu.memory_space<vmem>>, %arg4: memref<64x128xbf16, #tpu.memory_space<vmem>>) attributes {dimension_semantics = [#tpu.dimension_semantics<parallel>], iteration_bounds = array<i64: 2>, scalar_prefetch = 0 : i64, scratch_operands = 0 : i64, tpu.core_type = #tpu.core_type<tc>, window_params = [{transform_indices = @transform_0, window_bounds = array<i64: 64, 256>}, {pipeline_mode = #tpu.pipeline_mode<synchronous>, transform_indices = @transform_1, window_bounds = array<i64: 256, 128>}, {pipeline_mode = #tpu.pipeline_mode<synchronous>, transform_indices = @transform_2, window_bounds = array<i64: 1, 128>}, {transform_indices = @transform_3, window_bounds = array<i64: 64, 128>}]} {
    %c0 = arith.constant 0 : index
    %c0_0 = arith.constant 0 : index
    %0 = vector.load %arg1[%c0, %c0_0] : memref<64x256xbf16, #tpu.memory_space<vmem>>, vector<64x256xbf16>
    %c0_1 = arith.constant 0 : index
    %c0_2 = arith.constant 0 : index
    %1 = vector.load %arg2[%c0_1, %c0_2] : memref<256x128xbf16, #tpu.memory_space<vmem>>, vector<256x128xbf16>
    %cst = arith.constant dense<0.000000e+00> : vector<64x128xf32>
    %2 = tpu.matmul %0, %1, %cst {dimension_numbers = #tpu.dot_dimension_numbers<[1], [0], [0], [1], [0, 0, 1, 1], [], []>} : vector<64x256xbf16>, vector<256x128xbf16>, vector<64x128xf32> -> vector<64x128xf32>
    %c0_3 = arith.constant 0 : index
    %c0_4 = arith.constant 0 : index
    %3 = vector.load %arg3[%c0_3, %c0_4] : memref<1x128xf32, #tpu.memory_space<vmem>>, vector<1x128xf32>
    %4 = vector.broadcast %3 : vector<1x128xf32> to vector<64x128xf32>
    %5 = arith.addf %2, %4 : vector<64x128xf32>
    %cst_5 = arith.constant 0.000000e+00 : f32
    %6 = vector.broadcast %cst_5 : f32 to vector<64x128xf32>
    %7 = arith.maximumf %5, %6 : vector<64x128xf32>
    %8 = arith.truncf %7 : vector<64x128xf32> to vector<64x128xbf16>
    %c0_6 = arith.constant 0 : index
    %c0_7 = arith.constant 0 : index
    %9 = vector.load %arg4[%c0_6, %c0_7] : memref<64x128xbf16, #tpu.memory_space<vmem>>, vector<64x128xbf16>
    tpu.vector_store %arg4[%c0_6, %c0_7], %8 {strides = array<i32>} : memref<64x128xbf16, #tpu.memory_space<vmem>>, vector<64x128xbf16>,
    return
  }
  func.func @transform_0(%arg0: i32) -> (i32, i32) {
    %c0_i32 = arith.constant 0 : i32
    %c0_i32_0 = arith.constant 0 : i32
    return %arg0, %c0_i32 : i32, i32
  }
  func.func @transform_1(%arg0: i32) -> (i32, i32) {
    %c0_i32 = arith.constant 0 : i32
    %c0_i32_0 = arith.constant 0 : i32
    %c0_i32_1 = arith.constant 0 : i32
    return %c0_i32, %c0_i32_0 : i32, i32
  }
  func.func @transform_2(%arg0: i32) -> (i32, i32) {
    %c0_i32 = arith.constant 0 : i32
    %c0_i32_0 = arith.constant 0 : i32
    %c0_i32_1 = arith.constant 0 : i32
    return %c0_i32, %c0_i32_0 : i32, i32
  }
  func.func @transform_3(%arg0: i32) -> (i32, i32) {
    %c0_i32 = arith.constant 0 : i32
    %c0_i32_0 = arith.constant 0 : i32
    return %arg0, %c0_i32 : i32, i32
  }
}

</mosaic_0001>

<llo_original>
// kernel: feature_extract.14
$region0: #{feature_extract.14}
  #allocation0 [shape = 'u32[]', space=smem, size = 0x4, offset = 0x4, fixed_abs, tag = 'smem constant byte address 0x4 - core index']
  #allocation1 [shape = 'u32[144,128]{1,0:T(1,128)}', space=vmem, size = 0x12000, scoped, tag = 'internal scratch']
  %s0 = inlined_call_operand.vmem [shape: bf16[128,128], index: 0, kind: input, shape index: {}]
  %s1 = inlined_call_operand.vmem [shape: bf16[128,128], index: 1, kind: input, shape index: {}]
  %s2 = inlined_call_operand.vmem [shape: f32[1,128], index: 2, kind: input, shape index: {}]
  %s3 = inlined_call_operand.vmem [shape: bf16[128,128], index: 3, kind: output, shape index: {}]
  %s4 = sld [smem:[#allocation0]]
  $region45: #{feature_extract.14} parent=0
    _
  %s6 = ssub.s32 1, %s4
  %s7 = scalar_select 0, %s6, %s4
  loop: start=0, step=1, limit=4
  $region2: #{feature_extract.14} parent=0 // loop_pre_header
    _
  $region3: #{feature_extract.14} parent=0 // loop_header
    %s9 = sphi 0, %s13
    %p10 = scmp.ge.s32.totalorder %s9, 4
    %s19 = sphi 0, %s21
    %s22 = sphi 0, %s19
    %s23 = sphi 0, %s22
    %s39 = sphi 0, %s23
    %s43 = sphi 0, %s43
    %s45 = sphi 0, %s43
    %s46 = sphi 0, %s45
    %s60 = sphi 0, %s46
    %s64 = sphi 0, %s64
    %s66 = sphi 0, %s64
    %s67 = sphi 0, %s66
    %s81 = sphi 0, %s67
    %s87 = sphi 0, %s89
    %s90 = sphi 0, %s87
    %s91 = sphi 0, %s90
    %s107 = sphi 0, %s91
  $region4: #{feature_extract.14} parent=0 // loop_header_branch
    %12 = sbr.rel (%p10) target = $region8
  $region5: #{feature_extract.14} parent=0 // loop_body
    %s14 = ssub.s32 %s9, 1
    %s15 = ssub.s32 %s9, 2
    %s16 = sadd.s32 %s9, 1
    %s17 = ssub.s32 %s9, %s16
    %p18 = scmp.eq.s32.totalorder %s17, 0
    %s20 = sadd.s32 %s19, 1
    %s21 = scalar_select %p18, %s19, %s20
    %p24 = pneg %p18
    %p25 = scmp.eq.s32.totalorder %s9, 1
    %p26 = por %p24, %p25
    %p27 = scmp.ne.s32.totalorder %s19, %s22
    %p28 = scmp.eq.s32.totalorder %s9, 0
    %p29 = por %p27, %p28
    %p30 = scmp.ne.s32.totalorder %s19, %s22
    %p31 = scmp.eq.s32.totalorder %s14, 1
    %p32 = por %p30, %p31
    %p33 = scmp.ne.s32.totalorder %s22, %s23
    %p34 = scmp.eq.s32.totalorder %s14, 0
    %p35 = por %p33, %p34
    %p36 = scmp.ne.s32.totalorder %s22, %s23
    %p37 = scmp.eq.s32.totalorder %s15, 1
    %p38 = por %p36, %p37
    %p40 = scmp.ne.s32.totalorder %s23, %s39
    %p41 = scmp.eq.s32.totalorder %s15, 0
    %p42 = por %p40, %p41
    %s44 = sadd.s32 %s43, 1
    %p47 = scmp.eq.s32.totalorder %s9, 1
    %p48 = scmp.ne.s32.totalorder %s43, %s45
    %p49 = scmp.eq.s32.totalorder %s9, 0
    %p50 = por %p48, %p49
    %p51 = scmp.ne.s32.totalorder %s43, %s45
    %p52 = scmp.eq.s32.totalorder %s14, 1
    %p53 = por %p51, %p52
    %p54 = scmp.ne.s32.totalorder %s45, %s46
    %p55 = scmp.eq.s32.totalorder %s14, 0
    %p56 = por %p54, %p55
    %p57 = scmp.ne.s32.totalorder %s45, %s46
    %p58 = scmp.eq.s32.totalorder %s15, 1
    %p59 = por %p57, %p58
    %p61 = scmp.ne.s32.totalorder %s46, %s60
    %p62 = scmp.eq.s32.totalorder %s15, 0
    %p63 = por %p61, %p62
    %s65 = sadd.s32 %s64, 1
    %p68 = scmp.eq.s32.totalorder %s9, 1
    %p69 = scmp.ne.s32.totalorder %s64, %s66
    %p70 = scmp.eq.s32.totalorder %s9, 0
    %p71 = por %p69, %p70
    %p72 = scmp.ne.s32.totalorder %s64, %s66
    %p73 = scmp.eq.s32.totalorder %s14, 1
    %p74 = por %p72, %p73
    %p75 = scmp.ne.s32.totalorder %s66, %s67
    %p76 = scmp.eq.s32.totalorder %s14, 0
    %p77 = por %p75, %p76
    %p78 = scmp.ne.s32.totalorder %s66, %s67
    %p79 = scmp.eq.s32.totalorder %s15, 1
    %p80 = por %p78, %p79
    %p82 = scmp.ne.s32.totalorder %s67, %s81
    %p83 = scmp.eq.s32.totalorder %s15, 0
    %p84 = por %p82, %p83
    %s85 = ssub.s32 %s9, %s16
    %p86 = scmp.eq.s32.totalorder %s85, 0
    %s88 = sadd.s32 %s87, 1
    %s89 = scalar_select %p86, %s87, %s88
    %p92 = pneg %p86
    %p93 = scmp.eq.s32.totalorder %s9, 1
    %p94 = por %p92, %p93
    %p95 = scmp.ne.s32.totalorder %s87, %s90
    %p96 = scmp.eq.s32.totalorder %s9, 0
    %p97 = por %p95, %p96
    %p98 = scmp.ne.s32.totalorder %s87, %s90
    %p99 = scmp.eq.s32.totalorder %s14, 1
    %p100 = por %p98, %p99
    %p101 = scmp.ne.s32.totalorder %s90, %s91
    %p102 = scmp.eq.s32.totalorder %s14, 0
    %p103 = por %p101, %p102
    %p104 = scmp.ne.s32.totalorder %s90, %s91
    %p105 = scmp.eq.s32.totalorder %s15, 1
    %p106 = por %p104, %p105
    %p108 = scmp.ne.s32.totalorder %s91, %s107
    %p109 = scmp.eq.s32.totalorder %s15, 0
    %p110 = por %p108, %p109
    %p111 = scmp.le.s32.totalorder 1, %s9
    %p112 = scmp.lt.s32.totalorder %s9, 3
    %p113 = pnand %p111, %p112
    %p114 = pneg %p113
    // Predicated region
    $region9: #{feature_extract.14} parent=5 // pred_check
      _
    $region10: #{feature_extract.14} parent=5 // pred_check_branch
      %116 = sbr.rel (%p113) target = $region12
    $region11: #{feature_extract.14} parent=5 // pred_region
      %s117 = ssub.s32 %s9, 1
      // Predicated region
      $region13: #{feature_extract.14} parent=11 // pred_check
        %p118 = pneg %p56
      $region14: #{feature_extract.14} parent=11 // pred_check_branch
        %120 = sbr.rel (%p118) target = $region16
      $region15: #{feature_extract.14} parent=11 // pred_region
        _
      $region16: #{feature_extract.14} parent=11 // pred_fallthru
        _
      // Predicated region
      $region17: #{feature_extract.14} parent=11 // pred_check
        %p121 = pneg %p77
      $region18: #{feature_extract.14} parent=11 // pred_check_branch
        %123 = sbr.rel (%p121) target = $region20
      $region19: #{feature_extract.14} parent=11 // pred_region
        _
      $region20: #{feature_extract.14} parent=11 // pred_fallthru
        _
    $region12: #{feature_extract.14} parent=5 // pred_fallthru
      _
    %p124 = scmp.lt.s32.totalorder %s9, 2
    // Predicated region
    $region21: #{feature_extract.14} parent=5 // pred_check
      %p125 = pneg %p124
    $region22: #{feature_extract.14} parent=5 // pred_check_branch
      %127 = sbr.rel (%p125) target = $region24
    $region23: #{feature_extract.14} parent=5 // pred_region
      // Predicated region
      $region25: #{feature_extract.14} parent=23 // pred_check
        %p128 = pneg %p29
      $region26: #{feature_extract.14} parent=23 // pred_check_branch
        %130 = sbr.rel (%p128) target = $region28
      $region27: #{feature_extract.14} parent=23 // pred_region
        %s131 = smul.u32 8, %s9
        %p132 = scmp.lt.s32.totalorder %s131, 15
        %s133 = scalar_select %p132, %s131, 15
        %s134 = smul.addr %s133, 4
        %s135 = scalar_lea.vmem %s0, %s134
        %s136 = smul.u32 8, %s9
      $region28: #{feature_extract.14} parent=23 // pred_fallthru
        _
    $region24: #{feature_extract.14} parent=5 // pred_fallthru
      _
    %p137 = scmp.le.s32.totalorder 1, %s9
    %p138 = scmp.lt.s32.totalorder %s9, 3
    %p139 = pnand %p137, %p138
    %p140 = pneg %p139
    // Predicated region
    $region29: #{feature_extract.14} parent=5 // pred_check
      _
    $region30: #{feature_extract.14} parent=5 // pred_check_branch
      %142 = sbr.rel (%p139) target = $region32
    $region31: #{feature_extract.14} parent=5 // pred_region
      %s143 = ssub.s32 %s9, 1
      %s144 = smul.u32 8, %s14
      %p145 = scmp.lt.s32.totalorder %s144, 15
      %s146 = scalar_select %p145, %s144, 15
      %s147 = smul.addr %s146, 4
      %s148 = scalar_lea.vmem %s0, %s147
      %p149 = pneg %p35
      %p150 = pneg %p32
      %p151 = pneg %p56
      %p152 = pneg %p53
      %p153 = pneg %p77
      %p154 = pneg %p74
      %p155 = pneg %p103
      %p156 = pneg %p100
      %s157 = smul.u32 8, %s14
      %p158 = scmp.lt.s32.totalorder %s157, 15
      %s159 = scalar_select %p158, %s157, 15
      %s160 = smul.addr %s159, 4
      %s161 = scalar_lea.vmem %s3, %s160
      %s162 = smul.u32 8, %s14
      %p163 = scmp.lt.s32.totalorder %s162, 15
      %s164 = scalar_select %p163, %s162, 15
      %s165 = smul.addr %s164, 4
      %s166 = scalar_lea.vmem %s0, %s165
      %s167 = smul.u32 8, %s14
      %s168 = smul.u32 8, %s14
      %p169 = scmp.lt.s32.totalorder %s168, 15
      %s170 = scalar_select %p169, %s168, 15
      %s171 = smul.addr %s170, 4
      %s172 = scalar_lea.vmem %s3, %s171
      %s173 = smul.u32 8, %s14
      %v175 = vld [vmem:[%s166] sm:$0xf]
      %v176 = vld [vmem:[%s166 + $0x4] sm:$0xf]
      %v177 = vld [vmem:[%s166 + $0x8] sm:$0xf]
      %v178 = vld [vmem:[%s166 + $0xc] sm:$0xf]
      %v179 = vld [vmem:[%s166 + $0x10] sm:$0xf]
      %v180 = vld [vmem:[%s166 + $0x14] sm:$0xf]
      %v181 = vld [vmem:[%s166 + $0x18] sm:$0xf]
      %v182 = vld [vmem:[%s166 + $0x1c] sm:$0xf]
      %v183 = vld [vmem:[%s1] sm:$0xf]
      %v184 = vld [vmem:[%s1 + $0x4] sm:$0xf]
      %v185 = vld [vmem:[%s1 + $0x8] sm:$0xf]
      %v186 = vld [vmem:[%s1 + $0xc] sm:$0xf]
      %v187 = vld [vmem:[%s1 + $0x10] sm:$0xf]
      %v188 = vld [vmem:[%s1 + $0x14] sm:$0xf]
      %v189 = vld [vmem:[%s1 + $0x18] sm:$0xf]
      %v190 = vld [vmem:[%s1 + $0x1c] sm:$0xf]
      %v191 = vld [vmem:[%s1 + $0x20] sm:$0xf]
      %v192 = vld [vmem:[%s1 + $0x24] sm:$0xf]
      %v193 = vld [vmem:[%s1 + $0x28] sm:$0xf]
      %v194 = vld [vmem:[%s1 + $0x2c] sm:$0xf]
      %v195 = vld [vmem:[%s1 + $0x30] sm:$0xf]
      %v196 = vld [vmem:[%s1 + $0x34] sm:$0xf]
      %v197 = vld [vmem:[%s1 + $0x38] sm:$0xf]
      %v198 = vld [vmem:[%s1 + $0x3c] sm:$0xf]
      %v199 = vld [vmem:[%s2] sm:$0x1]
      %v201 = vlaneseq
      %v202 = vshrl.u32 %v201, 7
      %v203 = vsub.s32 0, %v202
      %v204 = vrot.slane %v199, %v203
      %v214 = vunpack.c.l.b16 %v175
      %v215 = vunpack.c.l.b16 %v176
      %v216 = vunpack.c.l.b16 %v177
      %v217 = vunpack.c.l.b16 %v178
      %v218 = vunpack.c.l.b16 %v179
      %v219 = vunpack.c.l.b16 %v180
      %v220 = vunpack.c.l.b16 %v181
      %v221 = vunpack.c.l.b16 %v182
      %v222 = vpack.c.b16 %v215, %v214
      %v223 = vpack.c.b16 %v217, %v216
      %v224 = vpack.c.b16 %v219, %v218
      %v225 = vpack.c.b16 %v221, %v220
      %v246 = vunpack.c.l.b16 %v183
      %v247 = vunpack.c.l.b16 %v184
      %v248 = vunpack.c.l.b16 %v185
      %v249 = vunpack.c.l.b16 %v186
      %v250 = vunpack.c.l.b16 %v187
      %v251 = vunpack.c.l.b16 %v188
      %v252 = vunpack.c.l.b16 %v189
      %v253 = vunpack.c.l.b16 %v190
      %v254 = vunpack.c.l.b16 %v191
      %v255 = vunpack.c.l.b16 %v192
      %v256 = vunpack.c.l.b16 %v193
      %v257 = vunpack.c.l.b16 %v194
      %v258 = vunpack.c.l.b16 %v195
      %v259 = vunpack.c.l.b16 %v196
      %v260 = vunpack.c.l.b16 %v197
      %v261 = vunpack.c.l.b16 %v198
      %v262 = vpack.c.b16 %v247, %v246
      %v263 = vpack.c.b16 %v249, %v248
      %v264 = vpack.c.b16 %v251, %v250
      %v265 = vpack.c.b16 %v253, %v252
      %v266 = vpack.c.b16 %v255, %v254
      %v267 = vpack.c.b16 %v257, %v256
      %v268 = vpack.c.b16 %v259, %v258
      %v269 = vpack.c.b16 %v261, %v260
      %278 = vmatprep.subr.bf16.mxu0 0
      %279 = vmatpush1.bf16.msra.mxu0 %v262
      %280 = vmatprep.subr.bf16.mxu0 0
      %281 = vmatpush1.bf16.msra.mxu0 %v263
      %282 = vmatprep.subr.bf16.mxu0 0
      %283 = vmatpush1.bf16.msra.mxu0 %v264
      %284 = vmatprep.subr.bf16.mxu0 0
      %285 = vmatpush1.bf16.msra.mxu0 %v265
      %286 = vmatprep.subr.bf16.mxu0 0
      %287 = vmatpush1.bf16.msra.mxu0 %v266
      %288 = vmatprep.subr.bf16.mxu0 0
      %289 = vmatpush1.bf16.msra.mxu0 %v267
      %290 = vmatprep.subr.bf16.mxu0 0
      %291 = vmatpush1.bf16.msra.mxu0 %v268
      %292 = vmatprep.subr.bf16.mxu0 0
      %293 = vmatpush1.bf16.msra.mxu0 %v269
      %294 = vmatprep.subr.bf16.mxu0 0
      %295 = vmatpush1.bf16.msra.mxu0 0
      %296 = vmatprep.subr.bf16.mxu0 0
      %297 = vmatpush1.bf16.msra.mxu0 0
      %298 = vmatprep.subr.bf16.mxu0 0
      %299 = vmatpush1.bf16.msra.mxu0 0
      %300 = vmatprep.subr.bf16.mxu0 0
      %301 = vmatpush1.bf16.msra.mxu0 0
      %302 = vmatprep.subr.bf16.mxu0 0
      %303 = vmatpush1.bf16.msra.mxu0 0
      %304 = vmatprep.subr.bf16.mxu0 0
      %305 = vmatpush1.bf16.msra.mxu0 0
      %306 = vmatprep.subr.bf16.mxu0 0
      %307 = vmatpush1.bf16.msra.mxu0 0
      %308 = vmatprep.subr.bf16.mxu0 0
      %309 = vmatpush1.bf16.msra.mxu0 0
      %310 = vmatprep.mubr.bf16.mxu0 0
      %311 = vmatmul.mubr.bf16.gmra.mrb[0].mxu0 %v222
      %v312 = vpop.f32.mrb[0].mxu0
      %v313 = vadd.f32 %v204, %v312
      %v314 = vpop.f32.mrb[0].mxu0
      %v315 = vpop.f32.mrb[0].mxu0
      %v316 = vadd.f32 %v204, %v315
      %v317 = vpop.f32.mrb[0].mxu0
      %318 = vmatprep.mubr.bf16.mxu0 0
      %319 = vmatmul.mubr.bf16.gmra.mrb[0].mxu0 %v223
      %v320 = vpop.f32.mrb[0].mxu0
      %v321 = vadd.f32 %v204, %v320
      %v322 = vpop.f32.mrb[0].mxu0
      %v323 = vpop.f32.mrb[0].mxu0
      %v324 = vadd.f32 %v204, %v323
      %v325 = vpop.f32.mrb[0].mxu0
      %326 = vmatprep.mubr.bf16.mxu0 0
      %327 = vmatmul.mubr.bf16.gmra.mrb[0].mxu0 %v224
      %v328 = vpop.f32.mrb[0].mxu0
      %v329 = vadd.f32 %v204, %v328
      %v330 = vpop.f32.mrb[0].mxu0
      %v331 = vpop.f32.mrb[0].mxu0
      %v332 = vadd.f32 %v204, %v331
      %v333 = vpop.f32.mrb[0].mxu0
      %334 = vmatprep.mubr.bf16.mxu0 0
      %335 = vmatmul.mubr.bf16.gmra.mrb[0].mxu0 %v225
      %v336 = vpop.f32.mrb[0].mxu0
      %v337 = vadd.f32 %v204, %v336
      %v338 = vpop.f32.mrb[0].mxu0
      %v339 = vpop.f32.mrb[0].mxu0
      %v340 = vadd.f32 %v204, %v339
      %v341 = vpop.f32.mrb[0].mxu0
      %342 = vdwg.mxu0
      %v343 = vmax.f32 %v313, 0.0
      %v344 = vmax.f32 %v316, 0.0
      %v345 = vmax.f32 %v321, 0.0
      %v346 = vmax.f32 %v324, 0.0
      %v347 = vmax.f32 %v329, 0.0
      %v348 = vmax.f32 %v332, 0.0
      %v349 = vmax.f32 %v337, 0.0
      %v350 = vmax.f32 %v340, 0.0
      %v351 = vpack.c.bf16 %v344, %v343
      %v352 = vpack.c.bf16 %v346, %v345
      %v353 = vpack.c.bf16 %v348, %v347
      %v354 = vpack.c.bf16 %v350, %v349
      %v359 = vunpack.c.l.b16 %v351
      %v360 = vunpack.c.h.b16 %v351
      %v361 = vunpack.c.l.b16 %v352
      %v362 = vunpack.c.h.b16 %v352
      %v363 = vunpack.c.l.b16 %v353
      %v364 = vunpack.c.h.b16 %v353
      %v365 = vunpack.c.l.b16 %v354
      %v366 = vunpack.c.h.b16 %v354
      %v367 = vpack.c.b16 %v359, %v359
      %v368 = vpack.c.b16 %v360, %v360
      %v369 = vpack.c.b16 %v361, %v361
      %v370 = vpack.c.b16 %v362, %v362
      %v371 = vpack.c.b16 %v363, %v363
      %v372 = vpack.c.b16 %v364, %v364
      %v373 = vpack.c.b16 %v365, %v365
      %v374 = vpack.c.b16 %v366, %v366
      %383 = vst [vmem:[%s172] sm:$0xf] %v367
      %384 = vst [vmem:[%s172 + $0x4] sm:$0xf] %v368
      %385 = vst [vmem:[%s172 + $0x8] sm:$0xf] %v369
      %386 = vst [vmem:[%s172 + $0xc] sm:$0xf] %v370
      %387 = vst [vmem:[%s172 + $0x10] sm:$0xf] %v371
      %388 = vst [vmem:[%s172 + $0x14] sm:$0xf] %v372
      %389 = vst [vmem:[%s172 + $0x18] sm:$0xf] %v373
      %390 = vst [vmem:[%s172 + $0x1c] sm:$0xf] %v374
      %s391 = smul.u32 8, %s14
      %p392 = scmp.lt.s32.totalorder %s391, 15
      %s393 = scalar_select %p392, %s391, 15
      %s394 = smul.addr %s393, 4
      %s395 = scalar_lea.vmem %s3, %s394
      // Predicated region
      $region33: #{feature_extract.14} parent=31 // pred_check
        %p396 = pneg %p100
      $region34: #{feature_extract.14} parent=31 // pred_check_branch
        %398 = sbr.rel (%p396) target = $region36
      $region35: #{feature_extract.14} parent=31 // pred_region
        %s399 = smul.u32 8, %s14
      $region36: #{feature_extract.14} parent=31 // pred_fallthru
        _
    $region32: #{feature_extract.14} parent=5 // pred_fallthru
      _
    %p400 = scmp.le.s32.totalorder 2, %s9
    // Predicated region
    $region37: #{feature_extract.14} parent=5 // pred_check
      %p401 = pneg %p400
    $region38: #{feature_extract.14} parent=5 // pred_check_branch
      %403 = sbr.rel (%p401) target = $region40
    $region39: #{feature_extract.14} parent=5 // pred_region
      %s404 = ssub.s32 %s9, 2
      // Predicated region
      $region41: #{feature_extract.14} parent=39 // pred_check
        %p405 = pneg %p106
      $region42: #{feature_extract.14} parent=39 // pred_check_branch
        %407 = sbr.rel (%p405) target = $region44
      $region43: #{feature_extract.14} parent=39 // pred_region
        %s408 = smul.u32 8, %s15
        %p409 = scmp.lt.s32.totalorder %s408, 15
        %s410 = scalar_select %p409, %s408, 15
        %s411 = smul.addr %s410, 4
        %s412 = scalar_lea.vmem %s3, %s411
      $region44: #{feature_extract.14} parent=39 // pred_fallthru
        _
    $region40: #{feature_extract.14} parent=5 // pred_fallthru
      _
  $region6: #{feature_extract.14} parent=0 // loop_footer
    %s13 = sadd.s32 1, %s9
  $region7: #{feature_extract.14} parent=0 // loop_footer_branch
    %8 = sbr.rel target = $region3
  $region8: #{feature_extract.14} parent=0 // loop_exit
    _

// kernel: feature_extract.12
$region0: #{feature_extract.12}
  #allocation0 [shape = 'u32[]', space=smem, size = 0x4, offset = 0x4, fixed_abs, tag = 'smem constant byte address 0x4 - core index']
  #allocation1 [shape = 'u32[144,128]{1,0:T(1,128)}', space=vmem, size = 0x12000, scoped, tag = 'internal scratch']
  %s0 = inlined_call_operand.vmem [shape: bf16[512,152], index: 0, kind: input, shape index: {}]
  %s1 = inlined_call_operand.vmem [shape: bf16[152,128], index: 1, kind: input, shape index: {}]
  %s2 = inlined_call_operand.vmem [shape: f32[1,128], index: 2, kind: input, shape index: {}]
  %s3 = inlined_call_operand.vmem [shape: bf16[512,128], index: 3, kind: output, shape index: {}]
  %s4 = sld [smem:[#allocation0]]
  $region45: #{feature_extract.12} parent=0
    _
  %s6 = ssub.s32 1, %s4
  %s7 = scalar_select 0, %s6, %s4
  loop: start=0, step=1, limit=4
  $region2: #{feature_extract.12} parent=0 // loop_pre_header
    _
  $region3: #{feature_extract.12} parent=0 // loop_header
    %s9 = sphi 0, %s13
    %p10 = scmp.ge.s32.totalorder %s9, 4
    %s19 = sphi 0, %s21
    %s22 = sphi 0, %s19
    %s23 = sphi 0, %s22
    %s39 = sphi 0, %s23
    %s43 = sphi 0, %s43
    %s45 = sphi 0, %s43
    %s46 = sphi 0, %s45
    %s60 = sphi 0, %s46
    %s64 = sphi 0, %s64
    %s66 = sphi 0, %s64
    %s67 = sphi 0, %s66
    %s81 = sphi 0, %s67
    %s87 = sphi 0, %s89
    %s90 = sphi 0, %s87
    %s91 = sphi 0, %s90
    %s107 = sphi 0, %s91
  $region4: #{feature_extract.12} parent=0 // loop_header_branch
    %12 = sbr.rel (%p10) target = $region8
  $region5: #{feature_extract.12} parent=0 // loop_body
    %s14 = ssub.s32 %s9, 1
    %s15 = ssub.s32 %s9, 2
    %s16 = sadd.s32 %s9, 1
    %s17 = ssub.s32 %s9, %s16
    %p18 = scmp.eq.s32.totalorder %s17, 0
    %s20 = sadd.s32 %s19, 1
    %s21 = scalar_select %p18, %s19, %s20
    %p24 = pneg %p18
    %p25 = scmp.eq.s32.totalorder %s9, 1
    %p26 = por %p24, %p25
    %p27 = scmp.ne.s32.totalorder %s19, %s22
    %p28 = scmp.eq.s32.totalorder %s9, 0
    %p29 = por %p27, %p28
    %p30 = scmp.ne.s32.totalorder %s19, %s22
    %p31 = scmp.eq.s32.totalorder %s14, 1
    %p32 = por %p30, %p31
    %p33 = scmp.ne.s32.totalorder %s22, %s23
    %p34 = scmp.eq.s32.totalorder %s14, 0
    %p35 = por %p33, %p34
    %p36 = scmp.ne.s32.totalorder %s22, %s23
    %p37 = scmp.eq.s32.totalorder %s15, 1
    %p38 = por %p36, %p37
    %p40 = scmp.ne.s32.totalorder %s23, %s39
    %p41 = scmp.eq.s32.totalorder %s15, 0
    %p42 = por %p40, %p41
    %s44 = sadd.s32 %s43, 1
    %p47 = scmp.eq.s32.totalorder %s9, 1
    %p48 = scmp.ne.s32.totalorder %s43, %s45
    %p49 = scmp.eq.s32.totalorder %s9, 0
    %p50 = por %p48, %p49
    %p51 = scmp.ne.s32.totalorder %s43, %s45
    %p52 = scmp.eq.s32.totalorder %s14, 1
    %p53 = por %p51, %p52
    %p54 = scmp.ne.s32.totalorder %s45, %s46
    %p55 = scmp.eq.s32.totalorder %s14, 0
    %p56 = por %p54, %p55
    %p57 = scmp.ne.s32.totalorder %s45, %s46
    %p58 = scmp.eq.s32.totalorder %s15, 1
    %p59 = por %p57, %p58
    %p61 = scmp.ne.s32.totalorder %s46, %s60
    %p62 = scmp.eq.s32.totalorder %s15, 0
    %p63 = por %p61, %p62
    %s65 = sadd.s32 %s64, 1
    %p68 = scmp.eq.s32.totalorder %s9, 1
    %p69 = scmp.ne.s32.totalorder %s64, %s66
    %p70 = scmp.eq.s32.totalorder %s9, 0
    %p71 = por %p69, %p70
    %p72 = scmp.ne.s32.totalorder %s64, %s66
    %p73 = scmp.eq.s32.totalorder %s14, 1
    %p74 = por %p72, %p73
    %p75 = scmp.ne.s32.totalorder %s66, %s67
    %p76 = scmp.eq.s32.totalorder %s14, 0
    %p77 = por %p75, %p76
    %p78 = scmp.ne.s32.totalorder %s66, %s67
    %p79 = scmp.eq.s32.totalorder %s15, 1
    %p80 = por %p78, %p79
    %p82 = scmp.ne.s32.totalorder %s67, %s81
    %p83 = scmp.eq.s32.totalorder %s15, 0
    %p84 = por %p82, %p83
    %s85 = ssub.s32 %s9, %s16
    %p86 = scmp.eq.s32.totalorder %s85, 0
    %s88 = sadd.s32 %s87, 1
    %s89 = scalar_select %p86, %s87, %s88
    %p92 = pneg %p86
    %p93 = scmp.eq.s32.totalorder %s9, 1
    %p94 = por %p92, %p93
    %p95 = scmp.ne.s32.totalorder %s87, %s90
    %p96 = scmp.eq.s32.totalorder %s9, 0
    %p97 = por %p95, %p96
    %p98 = scmp.ne.s32.totalorder %s87, %s90
    %p99 = scmp.eq.s32.totalorder %s14, 1
    %p100 = por %p98, %p99
    %p101 = scmp.ne.s32.totalorder %s90, %s91
    %p102 = scmp.eq.s32.totalorder %s14, 0
    %p103 = por %p101, %p102
    %p104 = scmp.ne.s32.totalorder %s90, %s91
    %p105 = scmp.eq.s32.totalorder %s15, 1
    %p106 = por %p104, %p105
    %p108 = scmp.ne.s32.totalorder %s91, %s107
    %p109 = scmp.eq.s32.totalorder %s15, 0
    %p110 = por %p108, %p109
    %p111 = scmp.le.s32.totalorder 1, %s9
    %p112 = scmp.lt.s32.totalorder %s9, 3
    %p113 = pnand %p111, %p112
    %p114 = pneg %p113
    // Predicated region
    $region9: #{feature_extract.12} parent=5 // pred_check
      _
    $region10: #{feature_extract.12} parent=5 // pred_check_branch
      %116 = sbr.rel (%p113) target = $region12
    $region11: #{feature_extract.12} parent=5 // pred_region
      %s117 = ssub.s32 %s9, 1
      // Predicated region
      $region13: #{feature_extract.12} parent=11 // pred_check
        %p118 = pneg %p56
      $region14: #{feature_extract.12} parent=11 // pred_check_branch
        %120 = sbr.rel (%p118) target = $region16
      $region15: #{feature_extract.12} parent=11 // pred_region
        _
      $region16: #{feature_extract.12} parent=11 // pred_fallthru
        _
      // Predicated region
      $region17: #{feature_extract.12} parent=11 // pred_check
        %p121 = pneg %p77
      $region18: #{feature_extract.12} parent=11 // pred_check_branch
        %123 = sbr.rel (%p121) target = $region20
      $region19: #{feature_extract.12} parent=11 // pred_region
        _
      $region20: #{feature_extract.12} parent=11 // pred_fallthru
        _
    $region12: #{feature_extract.12} parent=5 // pred_fallthru
      _
    %p124 = scmp.lt.s32.totalorder %s9, 2
    // Predicated region
    $region21: #{feature_extract.12} parent=5 // pred_check
      %p125 = pneg %p124
    $region22: #{feature_extract.12} parent=5 // pred_check_branch
      %127 = sbr.rel (%p125) target = $region24
    $region23: #{feature_extract.12} parent=5 // pred_region
      // Predicated region
      $region25: #{feature_extract.12} parent=23 // pred_check
        %p128 = pneg %p29
      $region26: #{feature_extract.12} parent=23 // pred_check_branch
        %130 = sbr.rel (%p128) target = $region28
      $region27: #{feature_extract.12} parent=23 // pred_region
        %s131 = smul.u32 32, %s9
        %p132 = scmp.lt.s32.totalorder %s131, 63
        %s133 = scalar_select %p132, %s131, 63
        %s134 = smul.addr %s133, 2
        %s135 = smul.addr %s134, 4
        %s136 = scalar_lea.vmem %s0, %s135
        %s137 = smul.u32 32, %s9
      $region28: #{feature_extract.12} parent=23 // pred_fallthru
        _
    $region24: #{feature_extract.12} parent=5 // pred_fallthru
      _
    %p138 = scmp.le.s32.totalorder 1, %s9
    %p139 = scmp.lt.s32.totalorder %s9, 3
    %p140 = pnand %p138, %p139
    %p141 = pneg %p140
    // Predicated region
    $region29: #{feature_extract.12} parent=5 // pred_check
      _
    $region30: #{feature_extract.12} parent=5 // pred_check_branch
      %143 = sbr.rel (%p140) target = $region32
    $region31: #{feature_extract.12} parent=5 // pred_region
      %s144 = ssub.s32 %s9, 1
      %s145 = smul.u32 32, %s14
      %p146 = scmp.lt.s32.totalorder %s145, 63
      %s147 = scalar_select %p146, %s145, 63
      %s148 = smul.addr %s147, 2
      %s149 = smul.addr %s148, 4
      %s150 = scalar_lea.vmem %s0, %s149
      %p151 = pneg %p35
      %p152 = pneg %p32
      %p153 = pneg %p56
      %p154 = pneg %p53
      %p155 = pneg %p77
      %p156 = pneg %p74
      %p157 = pneg %p103
      %p158 = pneg %p100
      %s159 = smul.u32 32, %s14
      %p160 = scmp.lt.s32.totalorder %s159, 63
      %s161 = scalar_select %p160, %s159, 63
      %s162 = smul.addr %s161, 4
      %s163 = scalar_lea.vmem %s3, %s162
      %s164 = smul.u32 32, %s14
      %p165 = scmp.lt.s32.totalorder %s164, 63
      %s166 = scalar_select %p165, %s164, 63
      %s167 = smul.addr %s166, 2
      %s168 = smul.addr %s167, 4
      %s169 = scalar_lea.vmem %s0, %s168
      %s170 = smul.u32 32, %s14
      %s171 = smul.u32 32, %s14
      %p172 = scmp.lt.s32.totalorder %s171, 63
      %s173 = scalar_select %p172, %s171, 63
      %s174 = smul.addr %s173, 4
      %s175 = scalar_lea.vmem %s3, %s174
      %s176 = smul.u32 32, %s14
      %v178 = vld [vmem:[%s169] sm:$0xff]
      %v179 = vld [vmem:[%s169 + $0x8] sm:$0xff]
      %v180 = vld [vmem:[%s169 + $0x10] sm:$0xff]
      %v181 = vld [vmem:[%s169 + $0x18] sm:$0xff]
      %v182 = vld [vmem:[%s169 + $0x20] sm:$0xff]
      %v183 = vld [vmem:[%s169 + $0x28] sm:$0xff]
      %v184 = vld [vmem:[%s169 + $0x30] sm:$0xff]
      %v185 = vld [vmem:[%s169 + $0x38] sm:$0xff]
      %v186 = vld [vmem:[%s169 + $0x40] sm:$0xff]
      %v187 = vld [vmem:[%s169 + $0x48] sm:$0xff]
      %v188 = vld [vmem:[%s169 + $0x50] sm:$0xff]
      %v189 = vld [vmem:[%s169 + $0x58] sm:$0xff]
      %v190 = vld [vmem:[%s169 + $0x60] sm:$0xff]
      %v191 = vld [vmem:[%s169 + $0x68] sm:$0xff]
      %v192 = vld [vmem:[%s169 + $0x70] sm:$0xff]
      %v193 = vld [vmem:[%s169 + $0x78] sm:$0xff]
      %v194 = vld [vmem:[%s169 + $0x80] sm:$0xff]
      %v195 = vld [vmem:[%s169 + $0x88] sm:$0xff]
      %v196 = vld [vmem:[%s169 + $0x90] sm:$0xff]
      %v197 = vld [vmem:[%s169 + $0x98] sm:$0xff]
      %v198 = vld [vmem:[%s169 + $0xa0] sm:$0xff]
      %v199 = vld [vmem:[%s169 + $0xa8] sm:$0xff]
      %v200 = vld [vmem:[%s169 + $0xb0] sm:$0xff]
      %v201 = vld [vmem:[%s169 + $0xb8] sm:$0xff]
      %v202 = vld [vmem:[%s169 + $0xc0] sm:$0xff]
      %v203 = vld [vmem:[%s169 + $0xc8] sm:$0xff]
      %v204 = vld [vmem:[%s169 + $0xd0] sm:$0xff]
      %v205 = vld [vmem:[%s169 + $0xd8] sm:$0xff]
      %v206 = vld [vmem:[%s169 + $0xe0] sm:$0xff]
      %v207 = vld [vmem:[%s169 + $0xe8] sm:$0xff]
      %v208 = vld [vmem:[%s169 + $0xf0] sm:$0xff]
      %v209 = vld [vmem:[%s169 + $0xf8] sm:$0xff]
      %v210 = vld [vmem:[%s1] sm:$0xf]
      %v211 = vld [vmem:[%s1 + $0x4] sm:$0xf]
      %v212 = vld [vmem:[%s1 + $0x8] sm:$0xf]
      %v213 = vld [vmem:[%s1 + $0xc] sm:$0xf]
      %v214 = vld [vmem:[%s1 + $0x10] sm:$0xf]
      %v215 = vld [vmem:[%s1 + $0x14] sm:$0xf]
      %v216 = vld [vmem:[%s1 + $0x18] sm:$0xf]
      %v217 = vld [vmem:[%s1 + $0x1c] sm:$0xf]
      %v218 = vld [vmem:[%s1 + $0x20] sm:$0xf]
      %v219 = vld [vmem:[%s1 + $0x24] sm:$0xf]
      %v220 = vld [vmem:[%s1 + $0x28] sm:$0xf]
      %v221 = vld [vmem:[%s1 + $0x2c] sm:$0xf]
      %v222 = vld [vmem:[%s1 + $0x30] sm:$0xf]
      %v223 = vld [vmem:[%s1 + $0x34] sm:$0xf]
      %v224 = vld [vmem:[%s1 + $0x38] sm:$0xf]
      %v225 = vld [vmem:[%s1 + $0x3c] sm:$0xf]
      %v226 = vld [vmem:[%s1 + $0x40] sm:$0xf]
      %v227 = vld [vmem:[%s1 + $0x44] sm:$0xf]
      %v228 = vld [vmem:[%s1 + $0x48] sm:$0xf]
      %v229 = vld [vmem:[%s2] sm:$0x1]
      %v231 = vlaneseq
      %v232 = vshrl.u32 %v231, 7
      %v233 = vsub.s32 0, %v232
      %v234 = vrot.slane %v229, %v233
      %v268 = vunpack.c.l.b16 %v178
      %v269 = vunpack.c.h.b16 %v178
      %v270 = vunpack.c.l.b16 %v179
      %v271 = vunpack.c.h.b16 %v179
      %v272 = vunpack.c.l.b16 %v180
      %v273 = vunpack.c.h.b16 %v180
      %v274 = vunpack.c.l.b16 %v181
      %v275 = vunpack.c.h.b16 %v181
      %v276 = vunpack.c.l.b16 %v182
      %v277 = vunpack.c.h.b16 %v182
      %v278 = vunpack.c.l.b16 %v183
      %v279 = vunpack.c.h.b16 %v183
      %v280 = vunpack.c.l.b16 %v184
      %v281 = vunpack.c.h.b16 %v184
      %v282 = vunpack.c.l.b16 %v185
      %v283 = vunpack.c.h.b16 %v185
      %v284 = vunpack.c.l.b16 %v186
      %v285 = vunpack.c.h.b16 %v186
      %v286 = vunpack.c.l.b16 %v187
      %v287 = vunpack.c.h.b16 %v187
      %v288 = vunpack.c.l.b16 %v188
      %v289 = vunpack.c.h.b16 %v188
      %v290 = vunpack.c.l.b16 %v189
      %v291 = vunpack.c.h.b16 %v189
      %v292 = vunpack.c.l.b16 %v190
      %v293 = vunpack.c.h.b16 %v190
      %v294 = vunpack.c.l.b16 %v191
      %v295 = vunpack.c.h.b16 %v191
      %v296 = vunpack.c.l.b16 %v192
      %v297 = vunpack.c.h.b16 %v192
      %v298 = vunpack.c.l.b16 %v193
      %v299 = vunpack.c.h.b16 %v193
      %v300 = vunpack.c.l.b16 %v194
      %v301 = vunpack.c.h.b16 %v194
      %v302 = vunpack.c.l.b16 %v195
      %v303 = vunpack.c.h.b16 %v195
      %v304 = vunpack.c.l.b16 %v196
      %v305 = vunpack.c.h.b16 %v196
      %v306 = vunpack.c.l.b16 %v197
      %v307 = vunpack.c.h.b16 %v197
      %v308 = vunpack.c.l.b16 %v198
      %v309 = vunpack.c.h.b16 %v198
      %v310 = vunpack.c.l.b16 %v199
      %v311 = vunpack.c.h.b16 %v199
      %v312 = vunpack.c.l.b16 %v200
      %v313 = vunpack.c.h.b16 %v200
      %v314 = vunpack.c.l.b16 %v201
      %v315 = vunpack.c.h.b16 %v201
      %v316 = vunpack.c.l.b16 %v202
      %v317 = vunpack.c.h.b16 %v202
      %v318 = vunpack.c.l.b16 %v203
      %v319 = vunpack.c.h.b16 %v203
      %v320 = vunpack.c.l.b16 %v204
      %v321 = vunpack.c.h.b16 %v204
      %v322 = vunpack.c.l.b16 %v205
      %v323 = vunpack.c.h.b16 %v205
      %v324 = vunpack.c.l.b16 %v206
      %v325 = vunpack.c.h.b16 %v206
      %v326 = vunpack.c.l.b16 %v207
      %v327 = vunpack.c.h.b16 %v207
      %v328 = vunpack.c.l.b16 %v208
      %v329 = vunpack.c.h.b16 %v208
      %v330 = vunpack.c.l.b16 %v209
      %v331 = vunpack.c.h.b16 %v209
      %v332 = vpack.c.b16 %v270, %v268
      %v333 = vpack.c.b16 %v271, %v269
      %v334 = vpack.c.b16 %v274, %v272
      %v335 = vpack.c.b16 %v275, %v273
      %v336 = vpack.c.b16 %v278, %v276
      %v337 = vpack.c.b16 %v279, %v277
      %v338 = vpack.c.b16 %v282, %v280
      %v339 = vpack.c.b16 %v283, %v281
      %v340 = vpack.c.b16 %v286, %v284
      %v341 = vpack.c.b16 %v287, %v285
      %v342 = vpack.c.b16 %v290, %v288
      %v343 = vpack.c.b16 %v291, %v289
      %v344 = vpack.c.b16 %v294, %v292
      %v345 = vpack.c.b16 %v295, %v293
      %v346 = vpack.c.b16 %v298, %v296
      %v347 = vpack.c.b16 %v299, %v297
      %v348 = vpack.c.b16 %v302, %v300
      %v349 = vpack.c.b16 %v303, %v301
      %v350 = vpack.c.b16 %v306, %v304
      %v351 = vpack.c.b16 %v307, %v305
      %v352 = vpack.c.b16 %v310, %v308
      %v353 = vpack.c.b16 %v311, %v309
      %v354 = vpack.c.b16 %v314, %v312
      %v355 = vpack.c.b16 %v315, %v313
      %v356 = vpack.c.b16 %v318, %v316
      %v357 = vpack.c.b16 %v319, %v317
      %v358 = vpack.c.b16 %v322, %v320
      %v359 = vpack.c.b16 %v323, %v321
      %v360 = vpack.c.b16 %v326, %v324
      %v361 = vpack.c.b16 %v327, %v325
      %v362 = vpack.c.b16 %v330, %v328
      %v363 = vpack.c.b16 %v331, %v329
      %v399 = vunpack.c.l.b16 %v210
      %v400 = vunpack.c.l.b16 %v211
      %v401 = vunpack.c.l.b16 %v212
      %v402 = vunpack.c.l.b16 %v213
      %v403 = vunpack.c.l.b16 %v214
      %v404 = vunpack.c.l.b16 %v215
      %v405 = vunpack.c.l.b16 %v216
      %v406 = vunpack.c.l.b16 %v217
      %v407 = vunpack.c.l.b16 %v218
      %v408 = vunpack.c.l.b16 %v219
      %v409 = vunpack.c.l.b16 %v220
      %v410 = vunpack.c.l.b16 %v221
      %v411 = vunpack.c.l.b16 %v222
      %v412 = vunpack.c.l.b16 %v223
      %v413 = vunpack.c.l.b16 %v224
      %v414 = vunpack.c.l.b16 %v225
      %v415 = vunpack.c.l.b16 %v226
      %v416 = vunpack.c.l.b16 %v227
      %v417 = vunpack.c.l.b16 %v228
      %v418 = vpack.c.b16 %v400, %v399
      %v419 = vpack.c.b16 %v402, %v401
      %v420 = vpack.c.b16 %v404, %v403
      %v421 = vpack.c.b16 %v406, %v405
      %v422 = vpack.c.b16 %v408, %v407
      %v423 = vpack.c.b16 %v410, %v409
      %v424 = vpack.c.b16 %v412, %v411
      %v425 = vpack.c.b16 %v414, %v413
      %v426 = vpack.c.b16 %v416, %v415
      %v427 = vpack.c.b16 %v417, %v417
      %vm437 = vcmask 195584
      %v439 = vsel %vm437, %v333, 0
      %v442 = vsel %vm437, %v335, 0
      %v445 = vsel %vm437, %v337, 0
      %v448 = vsel %vm437, %v339, 0
      %v451 = vsel %vm437, %v341, 0
      %v454 = vsel %vm437, %v343, 0
      %v457 = vsel %vm437, %v345, 0
      %v460 = vsel %vm437, %v347, 0
      %v463 = vsel %vm437, %v349, 0
      %v466 = vsel %vm437, %v351, 0
      %v469 = vsel %vm437, %v353, 0
      %v472 = vsel %vm437, %v355, 0
      %v475 = vsel %vm437, %v357, 0
      %v478 = vsel %vm437, %v359, 0
      %v481 = vsel %vm437, %v361, 0
      %v484 = vsel %vm437, %v363, 0
      %vm486 = vcmask 1043456
      %v488 = vsel %vm486, %v427, 0
      %490 = vmatprep.subr.bf16.mxu0 0
      %491 = vmatpush1.bf16.msra.mxu0 %v418
      %492 = vmatprep.subr.bf16.mxu0 0
      %493 = vmatpush1.bf16.msra.mxu0 %v419
      %494 = vmatprep.subr.bf16.mxu0 0
      %495 = vmatpush1.bf16.msra.mxu0 %v420
      %496 = vmatprep.subr.bf16.mxu0 0
      %497 = vmatpush1.bf16.msra.mxu0 %v421
      %498 = vmatprep.subr.bf16.mxu0 0
      %499 = vmatpush1.bf16.msra.mxu0 %v422
      %500 = vmatprep.subr.bf16.mxu0 0
      %501 = vmatpush1.bf16.msra.mxu0 %v423
      %502 = vmatprep.subr.bf16.mxu0 0
      %503 = vmatpush1.bf16.msra.mxu0 %v424
      %504 = vmatprep.subr.bf16.mxu0 0
      %505 = vmatpush1.bf16.msra.mxu0 %v425
      %506 = vmatprep.subr.bf16.mxu0 0
      %507 = vmatpush1.bf16.msra.mxu0 %v426
      %508 = vmatprep.subr.bf16.mxu0 0
      %509 = vmatpush1.bf16.msra.mxu0 %v488
      %510 = vmatprep.subr.bf16.mxu0 0
      %511 = vmatpush1.bf16.msra.mxu0 0
      %512 = vmatprep.subr.bf16.mxu0 0
      %513 = vmatpush1.bf16.msra.mxu0 0
      %514 = vmatprep.subr.bf16.mxu0 0
      %515 = vmatpush1.bf16.msra.mxu0 0
      %516 = vmatprep.subr.bf16.mxu0 0
      %517 = vmatpush1.bf16.msra.mxu0 0
      %518 = vmatprep.subr.bf16.mxu0 0
      %519 = vmatpush1.bf16.msra.mxu0 0
      %520 = vmatprep.subr.bf16.mxu0 0
      %521 = vmatpush1.bf16.msra.mxu0 0
      %522 = vmatprep.mubr.bf16.mxu0 %v439
      %523 = vmatmul.mubr.bf16.gmra.mrb[0].mxu0 %v332
      %v524 = vpop.f32.mrb[0].mxu0
      %v525 = vadd.f32 %v234, %v524
      %v526 = vpop.f32.mrb[0].mxu0
      %v527 = vpop.f32.mrb[0].mxu0
      %v528 = vadd.f32 %v234, %v527
      %v529 = vpop.f32.mrb[0].mxu0
      %530 = vmatprep.mubr.bf16.mxu0 %v442
      %531 = vmatmul.mubr.bf16.gmra.mrb[0].mxu0 %v334
      %v532 = vpop.f32.mrb[0].mxu0
      %v533 = vadd.f32 %v234, %v532
      %v534 = vpop.f32.mrb[0].mxu0
      %v535 = vpop.f32.mrb[0].mxu0
      %v536 = vadd.f32 %v234, %v535
      %v537 = vpop.f32.mrb[0].mxu0
      %538 = vmatprep.mubr.bf16.mxu0 %v445
      %539 = vmatmul.mubr.bf16.gmra.mrb[0].mxu0 %v336
      %v540 = vpop.f32.mrb[0].mxu0
      %v541 = vadd.f32 %v234, %v540
      %v542 = vpop.f32.mrb[0].mxu0
      %v543 = vpop.f32.mrb[0].mxu0
      %v544 = vadd.f32 %v234, %v543
      %v545 = vpop.f32.mrb[0].mxu0
      %546 = vmatprep.mubr.bf16.mxu0 %v448
      %547 = vmatmul.mubr.bf16.gmra.mrb[0].mxu0 %v338
      %v548 = vpop.f32.mrb[0].mxu0
      %v549 = vadd.f32 %v234, %v548
      %v550 = vpop.f32.mrb[0].mxu0
      %v551 = vpop.f32.mrb[0].mxu0
      %v552 = vadd.f32 %v234, %v551
      %v553 = vpop.f32.mrb[0].mxu0
      %554 = vmatprep.mubr.bf16.mxu0 %v451
      %555 = vmatmul.mubr.bf16.gmra.mrb[0].mxu0 %v340
      %v556 = vpop.f32.mrb[0].mxu0
      %v557 = vadd.f32 %v234, %v556
      %v558 = vpop.f32.mrb[0].mxu0
      %v559 = vpop.f32.mrb[0].mxu0
      %v560 = vadd.f32 %v234, %v559
      %v561 = vpop.f32.mrb[0].mxu0
      %562 = vmatprep.mubr.bf16.mxu0 %v454
      %563 = vmatmul.mubr.bf16.gmra.mrb[0].mxu0 %v342
      %v564 = vpop.f32.mrb[0].mxu0
      %v565 = vadd.f32 %v234, %v564
      %v566 = vpop.f32.mrb[0].mxu0
      %v567 = vpop.f32.mrb[0].mxu0
      %v568 = vadd.f32 %v234, %v567
      %v569 = vpop.f32.mrb[0].mxu0
      %570 = vmatprep.mubr.bf16.mxu0 %v457
      %571 = vmatmul.mubr.bf16.gmra.mrb[0].mxu0 %v344
      %v572 = vpop.f32.mrb[0].mxu0
      %v573 = vadd.f32 %v234, %v572
      %v574 = vpop.f32.mrb[0].mxu0
      %v575 = vpop.f32.mrb[0].mxu0
      %v576 = vadd.f32 %v234, %v575
      %v577 = vpop.f32.mrb[0].mxu0
      %578 = vmatprep.mubr.bf16.mxu0 %v460
      %579 = vmatmul.mubr.bf16.gmra.mrb[0].mxu0 %v346
      %v580 = vpop.f32.mrb[0].mxu0
      %v581 = vadd.f32 %v234, %v580
      %v582 = vpop.f32.mrb[0].mxu0
      %v583 = vpop.f32.mrb[0].mxu0
      %v584 = vadd.f32 %v234, %v583
      %v585 = vpop.f32.mrb[0].mxu0
      %586 = vmatprep.mubr.bf16.mxu0 %v463
      %587 = vmatmul.mubr.bf16.gmra.mrb[0].mxu0 %v348
      %v588 = vpop.f32.mrb[0].mxu0
      %v589 = vadd.f32 %v234, %v588
      %v590 = vpop.f32.mrb[0].mxu0
      %v591 = vpop.f32.mrb[0].mxu0
      %v592 = vadd.f32 %v234, %v591
      %v593 = vpop.f32.mrb[0].mxu0
      %594 = vmatprep.mubr.bf16.mxu0 %v466
      %595 = vmatmul.mubr.bf16.gmra.mrb[0].mxu0 %v350
      %v596 = vpop.f32.mrb[0].mxu0
      %v597 = vadd.f32 %v234, %v596
      %v598 = vpop.f32.mrb[0].mxu0
      %v599 = vpop.f32.mrb[0].mxu0
      %v600 = vadd.f32 %v234, %v599
      %v601 = vpop.f32.mrb[0].mxu0
      %602 = vmatprep.mubr.bf16.mxu0 %v469
      %603 = vmatmul.mubr.bf16.gmra.mrb[0].mxu0 %v352
      %v604 = vpop.f32.mrb[0].mxu0
      %v605 = vadd.f32 %v234, %v604
      %v606 = vpop.f32.mrb[0].mxu0
      %v607 = vpop.f32.mrb[0].mxu0
      %v608 = vadd.f32 %v234, %v607
      %v609 = vpop.f32.mrb[0].mxu0
      %610 = vmatprep.mubr.bf16.mxu0 %v472
      %611 = vmatmul.mubr.bf16.gmra.mrb[0].mxu0 %v354
      %v612 = vpop.f32.mrb[0].mxu0
      %v613 = vadd.f32 %v234, %v612
      %v614 = vpop.f32.mrb[0].mxu0
      %v615 = vpop.f32.mrb[0].mxu0
      %v616 = vadd.f32 %v234, %v615
      %v617 = vpop.f32.mrb[0].mxu0
      %618 = vmatprep.mubr.bf16.mxu0 %v475
      %619 = vmatmul.mubr.bf16.gmra.mrb[0].mxu0 %v356
      %v620 = vpop.f32.mrb[0].mxu0
      %v621 = vadd.f32 %v234, %v620
      %v622 = vpop.f32.mrb[0].mxu0
      %v623 = vpop.f32.mrb[0].mxu0
      %v624 = vadd.f32 %v234, %v623
      %v625 = vpop.f32.mrb[0].mxu0
      %626 = vmatprep.mubr.bf16.mxu0 %v478
      %627 = vmatmul.mubr.bf16.gmra.mrb[0].mxu0 %v358
      %v628 = vpop.f32.mrb[0].mxu0
      %v629 = vadd.f32 %v234, %v628
      %v630 = vpop.f32.mrb[0].mxu0
      %v631 = vpop.f32.mrb[0].mxu0
      %v632 = vadd.f32 %v234, %v631
      %v633 = vpop.f32.mrb[0].mxu0
      %634 = vmatprep.mubr.bf16.mxu0 %v481
      %635 = vmatmul.mubr.bf16.gmra.mrb[0].mxu0 %v360
      %v636 = vpop.f32.mrb[0].mxu0
      %v637 = vadd.f32 %v234, %v636
      %v638 = vpop.f32.mrb[0].mxu0
      %v639 = vpop.f32.mrb[0].mxu0
      %v640 = vadd.f32 %v234, %v639
      %v641 = vpop.f32.mrb[0].mxu0
      %642 = vmatprep.mubr.bf16.mxu0 %v484
      %643 = vmatmul.mubr.bf16.gmra.mrb[0].mxu0 %v362
      %v644 = vpop.f32.mrb[0].mxu0
      %v645 = vadd.f32 %v234, %v644
      %v646 = vpop.f32.mrb[0].mxu0
      %v647 = vpop.f32.mrb[0].mxu0
      %v648 = vadd.f32 %v234, %v647
      %v649 = vpop.f32.mrb[0].mxu0
      %650 = vdwg.mxu0
      %v651 = vmax.f32 %v525, 0.0
      %v652 = vmax.f32 %v528, 0.0
      %v653 = vmax.f32 %v533, 0.0
      %v654 = vmax.f32 %v536, 0.0
      %v655 = vmax.f32 %v541, 0.0
      %v656 = vmax.f32 %v544, 0.0
      %v657 = vmax.f32 %v549, 0.0
      %v658 = vmax.f32 %v552, 0.0
      %v659 = vmax.f32 %v557, 0.0
      %v660 = vmax.f32 %v560, 0.0
      %v661 = vmax.f32 %v565, 0.0
      %v662 = vmax.f32 %v568, 0.0
      %v663 = vmax.f32 %v573, 0.0
      %v664 = vmax.f32 %v576, 0.0
      %v665 = vmax.f32 %v581, 0.0
      %v666 = vmax.f32 %v584, 0.0
      %v667 = vmax.f32 %v589, 0.0
      %v668 = vmax.f32 %v592, 0.0
      %v669 = vmax.f32 %v597, 0.0
      %v670 = vmax.f32 %v600, 0.0
      %v671 = vmax.f32 %v605, 0.0
      %v672 = vmax.f32 %v608, 0.0
      %v673 = vmax.f32 %v613, 0.0
      %v674 = vmax.f32 %v616, 0.0
      %v675 = vmax.f32 %v621, 0.0
      %v676 = vmax.f32 %v624, 0.0
      %v677 = vmax.f32 %v629, 0.0
      %v678 = vmax.f32 %v632, 0.0
      %v679 = vmax.f32 %v637, 0.0
      %v680 = vmax.f32 %v640, 0.0
      %v681 = vmax.f32 %v645, 0.0
      %v682 = vmax.f32 %v648, 0.0
      %v683 = vpack.c.bf16 %v652, %v651
      %v684 = vpack.c.bf16 %v654, %v653
      %v685 = vpack.c.bf16 %v656, %v655
      %v686 = vpack.c.bf16 %v658, %v657
      %v687 = vpack.c.bf16 %v660, %v659
      %v688 = vpack.c.bf16 %v662, %v661
      %v689 = vpack.c.bf16 %v664, %v663
      %v690 = vpack.c.bf16 %v666, %v665
      %v691 = vpack.c.bf16 %v668, %v667
      %v692 = vpack.c.bf16 %v670, %v669
      %v693 = vpack.c.bf16 %v672, %v671
      %v694 = vpack.c.bf16 %v674, %v673
      %v695 = vpack.c.bf16 %v676, %v675
      %v696 = vpack.c.bf16 %v678, %v677
      %v697 = vpack.c.bf16 %v680, %v679
      %v698 = vpack.c.bf16 %v682, %v681
      %v715 = vunpack.c.l.b16 %v683
      %v716 = vunpack.c.h.b16 %v683
      %v717 = vunpack.c.l.b16 %v684
      %v718 = vunpack.c.h.b16 %v684
      %v719 = vunpack.c.l.b16 %v685
      %v720 = vunpack.c.h.b16 %v685
      %v721 = vunpack.c.l.b16 %v686
      %v722 = vunpack.c.h.b16 %v686
      %v723 = vunpack.c.l.b16 %v687
      %v724 = vunpack.c.h.b16 %v687
      %v725 = vunpack.c.l.b16 %v688
      %v726 = vunpack.c.h.b16 %v688
      %v727 = vunpack.c.l.b16 %v689
      %v728 = vunpack.c.h.b16 %v689
      %v729 = vunpack.c.l.b16 %v690
      %v730 = vunpack.c.h.b16 %v690
      %v731 = vunpack.c.l.b16 %v691
      %v732 = vunpack.c.h.b16 %v691
      %v733 = vunpack.c.l.b16 %v692
      %v734 = vunpack.c.h.b16 %v692
      %v735 = vunpack.c.l.b16 %v693
      %v736 = vunpack.c.h.b16 %v693
      %v737 = vunpack.c.l.b16 %v694
      %v738 = vunpack.c.h.b16 %v694
      %v739 = vunpack.c.l.b16 %v695
      %v740 = vunpack.c.h.b16 %v695
      %v741 = vunpack.c.l.b16 %v696
      %v742 = vunpack.c.h.b16 %v696
      %v743 = vunpack.c.l.b16 %v697
      %v744 = vunpack.c.h.b16 %v697
      %v745 = vunpack.c.l.b16 %v698
      %v746 = vunpack.c.h.b16 %v698
      %v747 = vpack.c.b16 %v715, %v715
      %v748 = vpack.c.b16 %v716, %v716
      %v749 = vpack.c.b16 %v717, %v717
      %v750 = vpack.c.b16 %v718, %v718
      %v751 = vpack.c.b16 %v719, %v719
      %v752 = vpack.c.b16 %v720, %v720
      %v753 = vpack.c.b16 %v721, %v721
      %v754 = vpack.c.b16 %v722, %v722
      %v755 = vpack.c.b16 %v723, %v723
      %v756 = vpack.c.b16 %v724, %v724
      %v757 = vpack.c.b16 %v725, %v725
      %v758 = vpack.c.b16 %v726, %v726
      %v759 = vpack.c.b16 %v727, %v727
      %v760 = vpack.c.b16 %v728, %v728
      %v761 = vpack.c.b16 %v729, %v729
      %v762 = vpack.c.b16 %v730, %v730
      %v763 = vpack.c.b16 %v731, %v731
      %v764 = vpack.c.b16 %v732, %v732
      %v765 = vpack.c.b16 %v733, %v733
      %v766 = vpack.c.b16 %v734, %v734
      %v767 = vpack.c.b16 %v735, %v735
      %v768 = vpack.c.b16 %v736, %v736
      %v769 = vpack.c.b16 %v737, %v737
      %v770 = vpack.c.b16 %v738, %v738
      %v771 = vpack.c.b16 %v739, %v739
      %v772 = vpack.c.b16 %v740, %v740
      %v773 = vpack.c.b16 %v741, %v741
      %v774 = vpack.c.b16 %v742, %v742
      %v775 = vpack.c.b16 %v743, %v743
      %v776 = vpack.c.b16 %v744, %v744
      %v777 = vpack.c.b16 %v745, %v745
      %v778 = vpack.c.b16 %v746, %v746
      %811 = vst [vmem:[%s175] sm:$0xf] %v747
      %812 = vst [vmem:[%s175 + $0x4] sm:$0xf] %v748
      %813 = vst [vmem:[%s175 + $0x8] sm:$0xf] %v749
      %814 = vst [vmem:[%s175 + $0xc] sm:$0xf] %v750
      %815 = vst [vmem:[%s175 + $0x10] sm:$0xf] %v751
      %816 = vst [vmem:[%s175 + $0x14] sm:$0xf] %v752
      %817 = vst [vmem:[%s175 + $0x18] sm:$0xf] %v753
      %818 = vst [vmem:[%s175 + $0x1c] sm:$0xf] %v754
      %819 = vst [vmem:[%s175 + $0x20] sm:$0xf] %v755
      %820 = vst [vmem:[%s175 + $0x24] sm:$0xf] %v756
      %821 = vst [vmem:[%s175 + $0x28] sm:$0xf] %v757
      %822 = vst [vmem:[%s175 + $0x2c] sm:$0xf] %v758
      %823 = vst [vmem:[%s175 + $0x30] sm:$0xf] %v759
      %824 = vst [vmem:[%s175 + $0x34] sm:$0xf] %v760
      %825 = vst [vmem:[%s175 + $0x38] sm:$0xf] %v761
      %826 = vst [vmem:[%s175 + $0x3c] sm:$0xf] %v762
      %827 = vst [vmem:[%s175 + $0x40] sm:$0xf] %v763
      %828 = vst [vmem:[%s175 + $0x44] sm:$0xf] %v764
      %829 = vst [vmem:[%s175 + $0x48] sm:$0xf] %v765
      %830 = vst [vmem:[%s175 + $0x4c] sm:$0xf] %v766
      %831 = vst [vmem:[%s175 + $0x50] sm:$0xf] %v767
      %832 = vst [vmem:[%s175 + $0x54] sm:$0xf] %v768
      %833 = vst [vmem:[%s175 + $0x58] sm:$0xf] %v769
      %834 = vst [vmem:[%s175 + $0x5c] sm:$0xf] %v770
      %835 = vst [vmem:[%s175 + $0x60] sm:$0xf] %v771
      %836 = vst [vmem:[%s175 + $0x64] sm:$0xf] %v772
      %837 = vst [vmem:[%s175 + $0x68] sm:$0xf] %v773
      %838 = vst [vmem:[%s175 + $0x6c] sm:$0xf] %v774
      %839 = vst [vmem:[%s175 + $0x70] sm:$0xf] %v775
      %840 = vst [vmem:[%s175 + $0x74] sm:$0xf] %v776
      %841 = vst [vmem:[%s175 + $0x78] sm:$0xf] %v777
      %842 = vst [vmem:[%s175 + $0x7c] sm:$0xf] %v778
      %s843 = smul.u32 32, %s14
      %p844 = scmp.lt.s32.totalorder %s843, 63
      %s845 = scalar_select %p844, %s843, 63
      %s846 = smul.addr %s845, 4
      %s847 = scalar_lea.vmem %s3, %s846
      // Predicated region
      $region33: #{feature_extract.12} parent=31 // pred_check
        %p848 = pneg %p100
      $region34: #{feature_extract.12} parent=31 // pred_check_branch
        %850 = sbr.rel (%p848) target = $region36
      $region35: #{feature_extract.12} parent=31 // pred_region
        %s851 = smul.u32 32, %s14
      $region36: #{feature_extract.12} parent=31 // pred_fallthru
        _
    $region32: #{feature_extract.12} parent=5 // pred_fallthru
      _
    %p852 = scmp.le.s32.totalorder 2, %s9
    // Predicated region
    $region37: #{feature_extract.12} parent=5 // pred_check
      %p853 = pneg %p852
    $region38: #{feature_extract.12} parent=5 // pred_check_branch
      %855 = sbr.rel (%p853) target = $region40
    $region39: #{feature_extract.12} parent=5 // pred_region
      %s856 = ssub.s32 %s9, 2
      // Predicated region
      $region41: #{feature_extract.12} parent=39 // pred_check
        %p857 = pneg %p106
      $region42: #{feature_extract.12} parent=39 // pred_check_branch
        %859 = sbr.rel (%p857) target = $region44
      $region43: #{feature_extract.12} parent=39 // pred_region
        %s860 = smul.u32 32, %s15
        %p861 = scmp.lt.s32.totalorder %s860, 63
        %s862 = scalar_select %p861, %s860, 63
        %s863 = smul.addr %s862, 4
        %s864 = scalar_lea.vmem %s3, %s863
      $region44: #{feature_extract.12} parent=39 // pred_fallthru
        _
    $region40: #{feature_extract.12} parent=5 // pred_fallthru
      _
  $region6: #{feature_extract.12} parent=0 // loop_footer
    %s13 = sadd.s32 1, %s9
  $region7: #{feature_extract.12} parent=0 // loop_footer_branch
    %8 = sbr.rel target = $region3
  $region8: #{feature_extract.12} parent=0 // loop_exit
    _

// kernel: feature_extract.13
$region0: #{feature_extract.13}
  #allocation0 [shape = 'u32[]', space=smem, size = 0x4, offset = 0x4, fixed_abs, tag = 'smem constant byte address 0x4 - core index']
  #allocation1 [shape = 'u32[144,128]{1,0:T(1,128)}', space=vmem, size = 0x12000, scoped, tag = 'internal scratch']
  %s0 = inlined_call_operand.vmem [shape: bf16[8,9,9,128], index: 0, kind: input, shape index: {}]
  %s1 = inlined_call_operand.vmem [shape: bf16[2,8,8,128], index: 1, kind: output, shape index: {}]
  %s2 = sld [smem:[#allocation0]]
  $region37: #{feature_extract.13} parent=0
    _
  %s4 = ssub.s32 1, %s2
  %s5 = scalar_select 0, %s4, %s2
  loop: start=0, step=1, limit=4
  $region2: #{feature_extract.13} parent=0 // loop_pre_header
    _
  $region3: #{feature_extract.13} parent=0 // loop_header
    %s7 = sphi 0, %s11
    %p8 = scmp.ge.s32.totalorder %s7, 4
    %s17 = sphi 0, %s19
    %s20 = sphi 0, %s17
    %s21 = sphi 0, %s20
    %s37 = sphi 0, %s21
    %s43 = sphi 0, %s45
    %s46 = sphi 0, %s43
    %s47 = sphi 0, %s46
    %s63 = sphi 0, %s47
  $region4: #{feature_extract.13} parent=0 // loop_header_branch
    %10 = sbr.rel (%p8) target = $region8
  $region5: #{feature_extract.13} parent=0 // loop_body
    %s12 = ssub.s32 %s7, 1
    %s13 = ssub.s32 %s7, 2
    %s14 = sadd.s32 %s7, 1
    %s15 = ssub.s32 %s7, %s14
    %p16 = scmp.eq.s32.totalorder %s15, 0
    %s18 = sadd.s32 %s17, 1
    %s19 = scalar_select %p16, %s17, %s18
    %p22 = pneg %p16
    %p23 = scmp.eq.s32.totalorder %s7, 1
    %p24 = por %p22, %p23
    %p25 = scmp.ne.s32.totalorder %s17, %s20
    %p26 = scmp.eq.s32.totalorder %s7, 0
    %p27 = por %p25, %p26
    %p28 = scmp.ne.s32.totalorder %s17, %s20
    %p29 = scmp.eq.s32.totalorder %s12, 1
    %p30 = por %p28, %p29
    %p31 = scmp.ne.s32.totalorder %s20, %s21
    %p32 = scmp.eq.s32.totalorder %s12, 0
    %p33 = por %p31, %p32
    %p34 = scmp.ne.s32.totalorder %s20, %s21
    %p35 = scmp.eq.s32.totalorder %s13, 1
    %p36 = por %p34, %p35
    %p38 = scmp.ne.s32.totalorder %s21, %s37
    %p39 = scmp.eq.s32.totalorder %s13, 0
    %p40 = por %p38, %p39
    %s41 = ssub.s32 %s7, %s14
    %p42 = scmp.eq.s32.totalorder %s41, 0
    %s44 = sadd.s32 %s43, 1
    %s45 = scalar_select %p42, %s43, %s44
    %p48 = pneg %p42
    %p49 = scmp.eq.s32.totalorder %s7, 1
    %p50 = por %p48, %p49
    %p51 = scmp.ne.s32.totalorder %s43, %s46
    %p52 = scmp.eq.s32.totalorder %s7, 0
    %p53 = por %p51, %p52
    %p54 = scmp.ne.s32.totalorder %s43, %s46
    %p55 = scmp.eq.s32.totalorder %s12, 1
    %p56 = por %p54, %p55
    %p57 = scmp.ne.s32.totalorder %s46, %s47
    %p58 = scmp.eq.s32.totalorder %s12, 0
    %p59 = por %p57, %p58
    %p60 = scmp.ne.s32.totalorder %s46, %s47
    %p61 = scmp.eq.s32.totalorder %s13, 1
    %p62 = por %p60, %p61
    %p64 = scmp.ne.s32.totalorder %s47, %s63
    %p65 = scmp.eq.s32.totalorder %s13, 0
    %p66 = por %p64, %p65
    %p67 = scmp.le.s32.totalorder 1, %s7
    %p68 = scmp.lt.s32.totalorder %s7, 3
    %p69 = pnand %p67, %p68
    %p70 = pneg %p69
    // Predicated region
    $region9: #{feature_extract.13} parent=5 // pred_check
      _
    $region10: #{feature_extract.13} parent=5 // pred_check_branch
      %72 = sbr.rel (%p69) target = $region12
    $region11: #{feature_extract.13} parent=5 // pred_region
      %s73 = ssub.s32 %s7, 1
    $region12: #{feature_extract.13} parent=5 // pred_fallthru
      _
    %p74 = scmp.lt.s32.totalorder %s7, 2
    // Predicated region
    $region13: #{feature_extract.13} parent=5 // pred_check
      %p75 = pneg %p74
    $region14: #{feature_extract.13} parent=5 // pred_check_branch
      %77 = sbr.rel (%p75) target = $region16
    $region15: #{feature_extract.13} parent=5 // pred_region
      // Predicated region
      $region17: #{feature_extract.13} parent=15 // pred_check
        %p78 = pneg %p27
      $region18: #{feature_extract.13} parent=15 // pred_check_branch
        %80 = sbr.rel (%p78) target = $region20
      $region19: #{feature_extract.13} parent=15 // pred_region
        %s81 = smul.u32 4, %s7
        %p82 = scmp.lt.s32.totalorder %s81, 7
        %s83 = scalar_select %p82, %s81, 7
        %s84 = smul.addr %s83, 18
        %s85 = smul.addr %s84, 4
        %s86 = scalar_lea.vmem %s0, %s85
        %s87 = smul.u32 4, %s7
      $region20: #{feature_extract.13} parent=15 // pred_fallthru
        _
    $region16: #{feature_extract.13} parent=5 // pred_fallthru
      _
    %p88 = scmp.le.s32.totalorder 1, %s7
    %p89 = scmp.lt.s32.totalorder %s7, 3
    %p90 = pnand %p88, %p89
    %p91 = pneg %p90
    // Predicated region
    $region21: #{feature_extract.13} parent=5 // pred_check
      _
    $region22: #{feature_extract.13} parent=5 // pred_check_branch
      %93 = sbr.rel (%p90) target = $region24
    $region23: #{feature_extract.13} parent=5 // pred_region
      %s94 = ssub.s32 %s7, 1
      %s95 = smul.u32 4, %s12
      %p96 = scmp.lt.s32.totalorder %s95, 7
      %s97 = scalar_select %p96, %s95, 7
      %s98 = smul.addr %s97, 18
      %s99 = smul.addr %s98, 4
      %s100 = scalar_lea.vmem %s0, %s99
      %p101 = pneg %p33
      %p102 = pneg %p30
      %p103 = pneg %p59
      %p104 = pneg %p56
      %p105 = scmp.lt.s32.totalorder %s12, 1
      %s106 = scalar_select %p105, %s12, 1
      %s107 = smul.addr %s106, 8
      %s108 = smul.addr %s107, 4
      %s109 = scalar_lea.vmem %s1, %s108
      %s110 = smul.u32 4, %s12
      %p111 = scmp.lt.s32.totalorder %s110, 7
      %s112 = scalar_select %p111, %s110, 7
      %s113 = smul.addr %s112, 18
      %s114 = smul.addr %s113, 4
      %s115 = scalar_lea.vmem %s0, %s114
      %s116 = smul.u32 4, %s12
      %p117 = scmp.lt.s32.totalorder %s12, 1
      %s118 = scalar_select %p117, %s12, 1
      %s119 = smul.addr %s118, 8
      %s120 = smul.addr %s119, 4
      %s121 = scalar_lea.vmem %s1, %s120
      %v122 = vld [vmem:[%s115] sm:$0xf]
      %v123 = vld [vmem:[%s115 + $0x4] sm:$0x1]
      %v124 = vld [vmem:[%s115 + $0x8] sm:$0xf]
      %v125 = vld [vmem:[%s115 + $0xc] sm:$0x1]
      %v126 = vld [vmem:[%s115 + $0x10] sm:$0xf]
      %v127 = vld [vmem:[%s115 + $0x14] sm:$0x1]
      %v128 = vld [vmem:[%s115 + $0x18] sm:$0xf]
      %v129 = vld [vmem:[%s115 + $0x1c] sm:$0x1]
      %v130 = vld [vmem:[%s115 + $0x20] sm:$0xf]
      %v131 = vld [vmem:[%s115 + $0x24] sm:$0x1]
      %v132 = vld [vmem:[%s115 + $0x28] sm:$0xf]
      %v133 = vld [vmem:[%s115 + $0x2c] sm:$0x1]
      %v134 = vld [vmem:[%s115 + $0x30] sm:$0xf]
      %v135 = vld [vmem:[%s115 + $0x34] sm:$0x1]
      %v136 = vld [vmem:[%s115 + $0x38] sm:$0xf]
      %v137 = vld [vmem:[%s115 + $0x3c] sm:$0x1]
      %v138 = vld [vmem:[%s115 + $0x40] sm:$0xf]
      %v139 = vld [vmem:[%s115 + $0x44] sm:$0x1]
      %v140 = vld [vmem:[%s115 + $0x48] sm:$0xf]
      %v141 = vld [vmem:[%s115 + $0x50] sm:$0xf]
      %v142 = vld [vmem:[%s115 + $0x58] sm:$0xf]
      %v143 = vld [vmem:[%s115 + $0x60] sm:$0xf]
      %v144 = vld [vmem:[%s115 + $0x68] sm:$0xf]
      %v145 = vld [vmem:[%s115 + $0x70] sm:$0xf]
      %v146 = vld [vmem:[%s115 + $0x78] sm:$0xf]
      %v147 = vld [vmem:[%s115 + $0x80] sm:$0xf]
      %v148 = vld [vmem:[%s115 + $0x88] sm:$0xf]
      %v149 = vld [vmem:[%s115 + $0x90] sm:$0xf]
      %v150 = vld [vmem:[%s115 + $0x94] sm:$0x1]
      %v151 = vld [vmem:[%s115 + $0x98] sm:$0xf]
      %v152 = vld [vmem:[%s115 + $0x9c] sm:$0x1]
      %v153 = vld [vmem:[%s115 + $0xa0] sm:$0xf]
      %v154 = vld [vmem:[%s115 + $0xa4] sm:$0x1]
      %v155 = vld [vmem:[%s115 + $0xa8] sm:$0xf]
      %v156 = vld [vmem:[%s115 + $0xac] sm:$0x1]
      %v157 = vld [vmem:[%s115 + $0xb0] sm:$0xf]
      %v158 = vld [vmem:[%s115 + $0xb4] sm:$0x1]
      %v159 = vld [vmem:[%s115 + $0xb8] sm:$0xf]
      %v160 = vld [vmem:[%s115 + $0xbc] sm:$0x1]
      %v161 = vld [vmem:[%s115 + $0xc0] sm:$0xf]
      %v162 = vld [vmem:[%s115 + $0xc4] sm:$0x1]
      %v163 = vld [vmem:[%s115 + $0xc8] sm:$0xf]
      %v164 = vld [vmem:[%s115 + $0xcc] sm:$0x1]
      %v165 = vld [vmem:[%s115 + $0xd8] sm:$0xf]
      %v166 = vld [vmem:[%s115 + $0xe0] sm:$0xf]
      %v167 = vld [vmem:[%s115 + $0xe8] sm:$0xf]
      %v168 = vld [vmem:[%s115 + $0xf0] sm:$0xf]
      %v169 = vld [vmem:[%s115 + $0xf8] sm:$0xf]
      %v170 = vld [vmem:[%s115 + $0x100] sm:$0xf]
      %v171 = vld [vmem:[%s115 + $0x108] sm:$0xf]
      %v172 = vld [vmem:[%s115 + $0x110] sm:$0xf]
      %v173 = vmax.bf16 %v122, %v140
      %v174 = vmax.bf16 %v124, %v141
      %v175 = vmax.bf16 %v126, %v142
      %v176 = vmax.bf16 %v128, %v143
      %v177 = vmax.bf16 %v130, %v144
      %v178 = vmax.bf16 %v132, %v145
      %v179 = vmax.bf16 %v134, %v146
      %v180 = vmax.bf16 %v136, %v147
      %vm181 = vsmask.f32 3328
      %vm182 = vsmask.f32 7440
      %vm183 = vmor %vm181, %vm182
      %v185 = vshrl.u32 %v122, 16
      %v187 = vrot.slane %v185, 4
      %v188 = vshll.u32 %v122, 16
      %v190 = vrot.slane %v188, 5
      %v191 = vor.u32 %v187, %v190
      %v192 = vrot.slane %v191, 4
      %v194 = vshll.u32 %v123, 16
      %v196 = vrot.slane %v194, 5
      %v197 = vsel %vm183, %v192, %v196
      %v199 = vshrl.u32 %v124, 16
      %v201 = vrot.slane %v199, 4
      %v202 = vshll.u32 %v124, 16
      %v204 = vrot.slane %v202, 5
      %v205 = vor.u32 %v201, %v204
      %v206 = vrot.slane %v205, 4
      %v208 = vshll.u32 %v125, 16
      %v210 = vrot.slane %v208, 5
      %v211 = vsel %vm183, %v206, %v210
      %v213 = vshrl.u32 %v126, 16
      %v215 = vrot.slane %v213, 4
      %v216 = vshll.u32 %v126, 16
      %v218 = vrot.slane %v216, 5
      %v219 = vor.u32 %v215, %v218
      %v220 = vrot.slane %v219, 4
      %v222 = vshll.u32 %v127, 16
      %v224 = vrot.slane %v222, 5
      %v225 = vsel %vm183, %v220, %v224
      %v227 = vshrl.u32 %v128, 16
      %v229 = vrot.slane %v227, 4
      %v230 = vshll.u32 %v128, 16
      %v232 = vrot.slane %v230, 5
      %v233 = vor.u32 %v229, %v232
      %v234 = vrot.slane %v233, 4
      %v236 = vshll.u32 %v129, 16
      %v238 = vrot.slane %v236, 5
      %v239 = vsel %vm183, %v234, %v238
      %v241 = vshrl.u32 %v130, 16
      %v243 = vrot.slane %v241, 4
      %v244 = vshll.u32 %v130, 16
      %v246 = vrot.slane %v244, 5
      %v247 = vor.u32 %v243, %v246
      %v248 = vrot.slane %v247, 4
      %v250 = vshll.u32 %v131, 16
      %v252 = vrot.slane %v250, 5
      %v253 = vsel %vm183, %v248, %v252
      %v255 = vshrl.u32 %v132, 16
      %v257 = vrot.slane %v255, 4
      %v258 = vshll.u32 %v132, 16
      %v260 = vrot.slane %v258, 5
      %v261 = vor.u32 %v257, %v260
      %v262 = vrot.slane %v261, 4
      %v264 = vshll.u32 %v133, 16
      %v266 = vrot.slane %v264, 5
      %v267 = vsel %vm183, %v262, %v266
      %v269 = vshrl.u32 %v134, 16
      %v271 = vrot.slane %v269, 4
      %v272 = vshll.u32 %v134, 16
      %v274 = vrot.slane %v272, 5
      %v275 = vor.u32 %v271, %v274
      %v276 = vrot.slane %v275, 4
      %v278 = vshll.u32 %v135, 16
      %v280 = vrot.slane %v278, 5
      %v281 = vsel %vm183, %v276, %v280
      %v283 = vshrl.u32 %v136, 16
      %v285 = vrot.slane %v283, 4
      %v286 = vshll.u32 %v136, 16
      %v288 = vrot.slane %v286, 5
      %v289 = vor.u32 %v285, %v288
      %v290 = vrot.slane %v289, 4
      %v292 = vshll.u32 %v137, 16
      %v294 = vrot.slane %v292, 5
      %v295 = vsel %vm183, %v290, %v294
      %v304 = vmax.bf16 %v173, %v197
      %v305 = vmax.bf16 %v174, %v211
      %v306 = vmax.bf16 %v175, %v225
      %v307 = vmax.bf16 %v176, %v239
      %v308 = vmax.bf16 %v177, %v253
      %v309 = vmax.bf16 %v178, %v267
      %v310 = vmax.bf16 %v179, %v281
      %v311 = vmax.bf16 %v180, %v295
      %v312 = vmax.bf16 %v304, %v149
      %v313 = vmax.bf16 %v305, %v151
      %v314 = vmax.bf16 %v306, %v153
      %v315 = vmax.bf16 %v307, %v155
      %v316 = vmax.bf16 %v308, %v157
      %v317 = vmax.bf16 %v309, %v159
      %v318 = vmax.bf16 %v310, %v161
      %v319 = vmax.bf16 %v311, %v163
      %v320 = vmax.bf16 %v312, %v165
      %v321 = vmax.bf16 %v313, %v166
      %v322 = vmax.bf16 %v314, %v167
      %v323 = vmax.bf16 %v315, %v168
      %v324 = vmax.bf16 %v316, %v169
      %v325 = vmax.bf16 %v317, %v170
      %v326 = vmax.bf16 %v318, %v171
      %v327 = vmax.bf16 %v319, %v172
      %v329 = vshrl.u32 %v149, 16
      %v331 = vrot.slane %v329, 4
      %v332 = vshll.u32 %v149, 16
      %v334 = vrot.slane %v332, 5
      %v335 = vor.u32 %v331, %v334
      %v336 = vrot.slane %v335, 4
      %v338 = vshll.u32 %v150, 16
      %v340 = vrot.slane %v338, 5
      %v341 = vsel %vm183, %v336, %v340
      %v343 = vshrl.u32 %v151, 16
      %v345 = vrot.slane %v343, 4
      %v346 = vshll.u32 %v151, 16
      %v348 = vrot.slane %v346, 5
      %v349 = vor.u32 %v345, %v348
      %v350 = vrot.slane %v349, 4
      %v352 = vshll.u32 %v152, 16
      %v354 = vrot.slane %v352, 5
      %v355 = vsel %vm183, %v350, %v354
      %v357 = vshrl.u32 %v153, 16
      %v359 = vrot.slane %v357, 4
      %v360 = vshll.u32 %v153, 16
      %v362 = vrot.slane %v360, 5
      %v363 = vor.u32 %v359, %v362
      %v364 = vrot.slane %v363, 4
      %v366 = vshll.u32 %v154, 16
      %v368 = vrot.slane %v366, 5
      %v369 = vsel %vm183, %v364, %v368
      %v371 = vshrl.u32 %v155, 16
      %v373 = vrot.slane %v371, 4
      %v374 = vshll.u32 %v155, 16
      %v376 = vrot.slane %v374, 5
      %v377 = vor.u32 %v373, %v376
      %v378 = vrot.slane %v377, 4
      %v380 = vshll.u32 %v156, 16
      %v382 = vrot.slane %v380, 5
      %v383 = vsel %vm183, %v378, %v382
      %v385 = vshrl.u32 %v157, 16
      %v387 = vrot.slane %v385, 4
      %v388 = vshll.u32 %v157, 16
      %v390 = vrot.slane %v388, 5
      %v391 = vor.u32 %v387, %v390
      %v392 = vrot.slane %v391, 4
      %v394 = vshll.u32 %v158, 16
      %v396 = vrot.slane %v394, 5
      %v397 = vsel %vm183, %v392, %v396
      %v399 = vshrl.u32 %v159, 16
      %v401 = vrot.slane %v399, 4
      %v402 = vshll.u32 %v159, 16
      %v404 = vrot.slane %v402, 5
      %v405 = vor.u32 %v401, %v404
      %v406 = vrot.slane %v405, 4
      %v408 = vshll.u32 %v160, 16
      %v410 = vrot.slane %v408, 5
      %v411 = vsel %vm183, %v406, %v410
      %v413 = vshrl.u32 %v161, 16
      %v415 = vrot.slane %v413, 4
      %v416 = vshll.u32 %v161, 16
      %v418 = vrot.slane %v416, 5
      %v419 = vor.u32 %v415, %v418
      %v420 = vrot.slane %v419, 4
      %v422 = vshll.u32 %v162, 16
      %v424 = vrot.slane %v422, 5
      %v425 = vsel %vm183, %v420, %v424
      %v427 = vshrl.u32 %v163, 16
      %v429 = vrot.slane %v427, 4
      %v430 = vshll.u32 %v163, 16
      %v432 = vrot.slane %v430, 5
      %v433 = vor.u32 %v429, %v432
      %v434 = vrot.slane %v433, 4
      %v436 = vshll.u32 %v164, 16
      %v438 = vrot.slane %v436, 5
      %v439 = vsel %vm183, %v434, %v438
      %v448 = vmax.bf16 %v320, %v341
      %v449 = vmax.bf16 %v321, %v355
      %v450 = vmax.bf16 %v322, %v369
      %v451 = vmax.bf16 %v323, %v383
      %v452 = vmax.bf16 %v324, %v397
      %v453 = vmax.bf16 %v325, %v411
      %v454 = vmax.bf16 %v326, %v425
      %v455 = vmax.bf16 %v327, %v439
      %v456 = vmax.bf16 %v448, %v124
      %v457 = vmax.bf16 %v449, %v126
      %v458 = vmax.bf16 %v450, %v128
      %v459 = vmax.bf16 %v451, %v130
      %v460 = vmax.bf16 %v452, %v132
      %v461 = vmax.bf16 %v453, %v134
      %v462 = vmax.bf16 %v454, %v136
      %v463 = vmax.bf16 %v455, %v138
      %v464 = vmax.bf16 %v456, %v141
      %v465 = vmax.bf16 %v457, %v142
      %v466 = vmax.bf16 %v458, %v143
      %v467 = vmax.bf16 %v459, %v144
      %v468 = vmax.bf16 %v460, %v145
      %v469 = vmax.bf16 %v461, %v146
      %v470 = vmax.bf16 %v462, %v147
      %v471 = vmax.bf16 %v463, %v148
      %v473 = vshrl.u32 %v138, 16
      %v475 = vrot.slane %v473, 4
      %v476 = vshll.u32 %v138, 16
      %v478 = vrot.slane %v476, 5
      %v479 = vor.u32 %v475, %v478
      %v480 = vrot.slane %v479, 4
      %v482 = vshll.u32 %v139, 16
      %v484 = vrot.slane %v482, 5
      %v485 = vsel %vm183, %v480, %v484
      %v487 = vmax.bf16 %v464, %v211
      %v488 = vmax.bf16 %v465, %v225
      %v489 = vmax.bf16 %v466, %v239
      %v490 = vmax.bf16 %v467, %v253
      %v491 = vmax.bf16 %v468, %v267
      %v492 = vmax.bf16 %v469, %v281
      %v493 = vmax.bf16 %v470, %v295
      %v494 = vmax.bf16 %v471, %v485
      %495 = vst [vmem:[%s121] sm:$0xf] %v487
      %496 = vst [vmem:[%s121 + $0x4] sm:$0xf] %v488
      %497 = vst [vmem:[%s121 + $0x8] sm:$0xf] %v489
      %498 = vst [vmem:[%s121 + $0xc] sm:$0xf] %v490
      %499 = vst [vmem:[%s121 + $0x10] sm:$0xf] %v491
      %500 = vst [vmem:[%s121 + $0x14] sm:$0xf] %v492
      %501 = vst [vmem:[%s121 + $0x18] sm:$0xf] %v493
      %502 = vst [vmem:[%s121 + $0x1c] sm:$0xf] %v494
      %p503 = scmp.lt.s32.totalorder %s12, 1
      %s504 = scalar_select %p503, %s12, 1
      %s505 = smul.addr %s504, 8
      %s506 = smul.addr %s505, 4
      %s507 = scalar_lea.vmem %s1, %s506
      // Predicated region
      $region25: #{feature_extract.13} parent=23 // pred_check
        %p508 = pneg %p56
      $region26: #{feature_extract.13} parent=23 // pred_check_branch
        %510 = sbr.rel (%p508) target = $region28
      $region27: #{feature_extract.13} parent=23 // pred_region
        _
      $region28: #{feature_extract.13} parent=23 // pred_fallthru
        _
    $region24: #{feature_extract.13} parent=5 // pred_fallthru
      _
    %p511 = scmp.le.s32.totalorder 2, %s7
    // Predicated region
    $region29: #{feature_extract.13} parent=5 // pred_check
      %p512 = pneg %p511
    $region30: #{feature_extract.13} parent=5 // pred_check_branch
      %514 = sbr.rel (%p512) target = $region32
    $region31: #{feature_extract.13} parent=5 // pred_region
      %s515 = ssub.s32 %s7, 2
      // Predicated region
      $region33: #{feature_extract.13} parent=31 // pred_check
        %p516 = pneg %p62
      $region34: #{feature_extract.13} parent=31 // pred_check_branch
        %518 = sbr.rel (%p516) target = $region36
      $region35: #{feature_extract.13} parent=31 // pred_region
        %p519 = scmp.lt.s32.totalorder %s13, 1
        %s520 = scalar_select %p519, %s13, 1
        %s521 = smul.addr %s520, 8
        %s522 = smul.addr %s521, 4
        %s523 = scalar_lea.vmem %s1, %s522
      $region36: #{feature_extract.13} parent=31 // pred_fallthru
        _
    $region32: #{feature_extract.13} parent=5 // pred_fallthru
      _
  $region6: #{feature_extract.13} parent=0 // loop_footer
    %s11 = sadd.s32 1, %s7
  $region7: #{feature_extract.13} parent=0 // loop_footer_branch
    %6 = sbr.rel target = $region3
  $region8: #{feature_extract.13} parent=0 // loop_exit
    _

// kernel: feature_extract.16
$region0: #{feature_extract.16}
  #allocation0 [shape = 'u32[]', space=smem, size = 0x4, offset = 0x4, fixed_abs, tag = 'smem constant byte address 0x4 - core index']
  #allocation1 [shape = 'u32[144,128]{1,0:T(1,128)}', space=vmem, size = 0x12000, scoped, tag = 'internal scratch']
  %s0 = inlined_call_operand.vmem [shape: bf16[128,128], index: 0, kind: input, shape index: {}]
  %s1 = inlined_call_operand.vmem [shape: bf16[128,256], index: 1, kind: input, shape index: {}]
  %s2 = inlined_call_operand.vmem [shape: f32[1,256], index: 2, kind: input, shape index: {}]
  %s3 = inlined_call_operand.vmem [shape: bf16[128,256], index: 3, kind: output, shape index: {}]
  %s4 = sld [smem:[#allocation0]]
  $region45: #{feature_extract.16} parent=0
    _
  %s6 = ssub.s32 1, %s4
  %s7 = scalar_select 0, %s6, %s4
  loop: start=0, step=1, limit=4
  $region2: #{feature_extract.16} parent=0 // loop_pre_header
    _
  $region3: #{feature_extract.16} parent=0 // loop_header
    %s9 = sphi 0, %s13
    %p10 = scmp.ge.s32.totalorder %s9, 4
    %s19 = sphi 0, %s21
    %s22 = sphi 0, %s19
    %s23 = sphi 0, %s22
    %s39 = sphi 0, %s23
    %s43 = sphi 0, %s43
    %s45 = sphi 0, %s43
    %s46 = sphi 0, %s45
    %s60 = sphi 0, %s46
    %s64 = sphi 0, %s64
    %s66 = sphi 0, %s64
    %s67 = sphi 0, %s66
    %s81 = sphi 0, %s67
    %s87 = sphi 0, %s89
    %s90 = sphi 0, %s87
    %s91 = sphi 0, %s90
    %s107 = sphi 0, %s91
  $region4: #{feature_extract.16} parent=0 // loop_header_branch
    %12 = sbr.rel (%p10) target = $region8
  $region5: #{feature_extract.16} parent=0 // loop_body
    %s14 = ssub.s32 %s9, 1
    %s15 = ssub.s32 %s9, 2
    %s16 = sadd.s32 %s9, 1
    %s17 = ssub.s32 %s9, %s16
    %p18 = scmp.eq.s32.totalorder %s17, 0
    %s20 = sadd.s32 %s19, 1
    %s21 = scalar_select %p18, %s19, %s20
    %p24 = pneg %p18
    %p25 = scmp.eq.s32.totalorder %s9, 1
    %p26 = por %p24, %p25
    %p27 = scmp.ne.s32.totalorder %s19, %s22
    %p28 = scmp.eq.s32.totalorder %s9, 0
    %p29 = por %p27, %p28
    %p30 = scmp.ne.s32.totalorder %s19, %s22
    %p31 = scmp.eq.s32.totalorder %s14, 1
    %p32 = por %p30, %p31
    %p33 = scmp.ne.s32.totalorder %s22, %s23
    %p34 = scmp.eq.s32.totalorder %s14, 0
    %p35 = por %p33, %p34
    %p36 = scmp.ne.s32.totalorder %s22, %s23
    %p37 = scmp.eq.s32.totalorder %s15, 1
    %p38 = por %p36, %p37
    %p40 = scmp.ne.s32.totalorder %s23, %s39
    %p41 = scmp.eq.s32.totalorder %s15, 0
    %p42 = por %p40, %p41
    %s44 = sadd.s32 %s43, 1
    %p47 = scmp.eq.s32.totalorder %s9, 1
    %p48 = scmp.ne.s32.totalorder %s43, %s45
    %p49 = scmp.eq.s32.totalorder %s9, 0
    %p50 = por %p48, %p49
    %p51 = scmp.ne.s32.totalorder %s43, %s45
    %p52 = scmp.eq.s32.totalorder %s14, 1
    %p53 = por %p51, %p52
    %p54 = scmp.ne.s32.totalorder %s45, %s46
    %p55 = scmp.eq.s32.totalorder %s14, 0
    %p56 = por %p54, %p55
    %p57 = scmp.ne.s32.totalorder %s45, %s46
    %p58 = scmp.eq.s32.totalorder %s15, 1
    %p59 = por %p57, %p58
    %p61 = scmp.ne.s32.totalorder %s46, %s60
    %p62 = scmp.eq.s32.totalorder %s15, 0
    %p63 = por %p61, %p62
    %s65 = sadd.s32 %s64, 1
    %p68 = scmp.eq.s32.totalorder %s9, 1
    %p69 = scmp.ne.s32.totalorder %s64, %s66
    %p70 = scmp.eq.s32.totalorder %s9, 0
    %p71 = por %p69, %p70
    %p72 = scmp.ne.s32.totalorder %s64, %s66
    %p73 = scmp.eq.s32.totalorder %s14, 1
    %p74 = por %p72, %p73
    %p75 = scmp.ne.s32.totalorder %s66, %s67
    %p76 = scmp.eq.s32.totalorder %s14, 0
    %p77 = por %p75, %p76
    %p78 = scmp.ne.s32.totalorder %s66, %s67
    %p79 = scmp.eq.s32.totalorder %s15, 1
    %p80 = por %p78, %p79
    %p82 = scmp.ne.s32.totalorder %s67, %s81
    %p83 = scmp.eq.s32.totalorder %s15, 0
    %p84 = por %p82, %p83
    %s85 = ssub.s32 %s9, %s16
    %p86 = scmp.eq.s32.totalorder %s85, 0
    %s88 = sadd.s32 %s87, 1
    %s89 = scalar_select %p86, %s87, %s88
    %p92 = pneg %p86
    %p93 = scmp.eq.s32.totalorder %s9, 1
    %p94 = por %p92, %p93
    %p95 = scmp.ne.s32.totalorder %s87, %s90
    %p96 = scmp.eq.s32.totalorder %s9, 0
    %p97 = por %p95, %p96
    %p98 = scmp.ne.s32.totalorder %s87, %s90
    %p99 = scmp.eq.s32.totalorder %s14, 1
    %p100 = por %p98, %p99
    %p101 = scmp.ne.s32.totalorder %s90, %s91
    %p102 = scmp.eq.s32.totalorder %s14, 0
    %p103 = por %p101, %p102
    %p104 = scmp.ne.s32.totalorder %s90, %s91
    %p105 = scmp.eq.s32.totalorder %s15, 1
    %p106 = por %p104, %p105
    %p108 = scmp.ne.s32.totalorder %s91, %s107
    %p109 = scmp.eq.s32.totalorder %s15, 0
    %p110 = por %p108, %p109
    %p111 = scmp.le.s32.totalorder 1, %s9
    %p112 = scmp.lt.s32.totalorder %s9, 3
    %p113 = pnand %p111, %p112
    %p114 = pneg %p113
    // Predicated region
    $region9: #{feature_extract.16} parent=5 // pred_check
      _
    $region10: #{feature_extract.16} parent=5 // pred_check_branch
      %116 = sbr.rel (%p113) target = $region12
    $region11: #{feature_extract.16} parent=5 // pred_region
      %s117 = ssub.s32 %s9, 1
      // Predicated region
      $region13: #{feature_extract.16} parent=11 // pred_check
        %p118 = pneg %p56
      $region14: #{feature_extract.16} parent=11 // pred_check_branch
        %120 = sbr.rel (%p118) target = $region16
      $region15: #{feature_extract.16} parent=11 // pred_region
        _
      $region16: #{feature_extract.16} parent=11 // pred_fallthru
        _
      // Predicated region
      $region17: #{feature_extract.16} parent=11 // pred_check
        %p121 = pneg %p77
      $region18: #{feature_extract.16} parent=11 // pred_check_branch
        %123 = sbr.rel (%p121) target = $region20
      $region19: #{feature_extract.16} parent=11 // pred_region
        _
      $region20: #{feature_extract.16} parent=11 // pred_fallthru
        _
    $region12: #{feature_extract.16} parent=5 // pred_fallthru
      _
    %p124 = scmp.lt.s32.totalorder %s9, 2
    // Predicated region
    $region21: #{feature_extract.16} parent=5 // pred_check
      %p125 = pneg %p124
    $region22: #{feature_extract.16} parent=5 // pred_check_branch
      %127 = sbr.rel (%p125) target = $region24
    $region23: #{feature_extract.16} parent=5 // pred_region
      // Predicated region
      $region25: #{feature_extract.16} parent=23 // pred_check
        %p128 = pneg %p29
      $region26: #{feature_extract.16} parent=23 // pred_check_branch
        %130 = sbr.rel (%p128) target = $region28
      $region27: #{feature_extract.16} parent=23 // pred_region
        %s131 = smul.u32 8, %s9
        %p132 = scmp.lt.s32.totalorder %s131, 15
        %s133 = scalar_select %p132, %s131, 15
        %s134 = smul.addr %s133, 4
        %s135 = scalar_lea.vmem %s0, %s134
        %s136 = smul.u32 8, %s9
      $region28: #{feature_extract.16} parent=23 // pred_fallthru
        _
    $region24: #{feature_extract.16} parent=5 // pred_fallthru
      _
    %p137 = scmp.le.s32.totalorder 1, %s9
    %p138 = scmp.lt.s32.totalorder %s9, 3
    %p139 = pnand %p137, %p138
    %p140 = pneg %p139
    // Predicated region
    $region29: #{feature_extract.16} parent=5 // pred_check
      _
    $region30: #{feature_extract.16} parent=5 // pred_check_branch
      %142 = sbr.rel (%p139) target = $region32
    $region31: #{feature_extract.16} parent=5 // pred_region
      %s143 = ssub.s32 %s9, 1
      %s144 = smul.u32 8, %s14
      %p145 = scmp.lt.s32.totalorder %s144, 15
      %s146 = scalar_select %p145, %s144, 15
      %s147 = smul.addr %s146, 4
      %s148 = scalar_lea.vmem %s0, %s147
      %p149 = pneg %p35
      %p150 = pneg %p32
      %p151 = pneg %p56
      %p152 = pneg %p53
      %p153 = pneg %p77
      %p154 = pneg %p74
      %p155 = pneg %p103
      %p156 = pneg %p100
      %s157 = smul.u32 8, %s14
      %p158 = scmp.lt.s32.totalorder %s157, 15
      %s159 = scalar_select %p158, %s157, 15
      %s160 = smul.addr %s159, 2
      %s161 = smul.addr %s160, 4
      %s162 = scalar_lea.vmem %s3, %s161
      %s163 = smul.u32 8, %s14
      %p164 = scmp.lt.s32.totalorder %s163, 15
      %s165 = scalar_select %p164, %s163, 15
      %s166 = smul.addr %s165, 4
      %s167 = scalar_lea.vmem %s0, %s166
      %s168 = smul.u32 8, %s14
      %s169 = smul.u32 8, %s14
      %p170 = scmp.lt.s32.totalorder %s169, 15
      %s171 = scalar_select %p170, %s169, 15
      %s172 = smul.addr %s171, 2
      %s173 = smul.addr %s172, 4
      %s174 = scalar_lea.vmem %s3, %s173
      %s175 = smul.u32 8, %s14
      %v177 = vld [vmem:[%s167] sm:$0xf]
      %v178 = vld [vmem:[%s167 + $0x4] sm:$0xf]
      %v179 = vld [vmem:[%s167 + $0x8] sm:$0xf]
      %v180 = vld [vmem:[%s167 + $0xc] sm:$0xf]
      %v181 = vld [vmem:[%s167 + $0x10] sm:$0xf]
      %v182 = vld [vmem:[%s167 + $0x14] sm:$0xf]
      %v183 = vld [vmem:[%s167 + $0x18] sm:$0xf]
      %v184 = vld [vmem:[%s167 + $0x1c] sm:$0xf]
      %v185 = vld [vmem:[%s1] sm:$0xff]
      %v186 = vld [vmem:[%s1 + $0x8] sm:$0xff]
      %v187 = vld [vmem:[%s1 + $0x10] sm:$0xff]
      %v188 = vld [vmem:[%s1 + $0x18] sm:$0xff]
      %v189 = vld [vmem:[%s1 + $0x20] sm:$0xff]
      %v190 = vld [vmem:[%s1 + $0x28] sm:$0xff]
      %v191 = vld [vmem:[%s1 + $0x30] sm:$0xff]
      %v192 = vld [vmem:[%s1 + $0x38] sm:$0xff]
      %v193 = vld [vmem:[%s1 + $0x40] sm:$0xff]
      %v194 = vld [vmem:[%s1 + $0x48] sm:$0xff]
      %v195 = vld [vmem:[%s1 + $0x50] sm:$0xff]
      %v196 = vld [vmem:[%s1 + $0x58] sm:$0xff]
      %v197 = vld [vmem:[%s1 + $0x60] sm:$0xff]
      %v198 = vld [vmem:[%s1 + $0x68] sm:$0xff]
      %v199 = vld [vmem:[%s1 + $0x70] sm:$0xff]
      %v200 = vld [vmem:[%s1 + $0x78] sm:$0xff]
      %v201 = vld [vmem:[%s2] sm:$0x3]
      %v203 = vlaneseq
      %v204 = vshrl.u32 %v203, 7
      %v205 = vsub.s32 0, %v204
      %v206 = vrot.slane %v201, %v205
      %v207 = vlaneseq
      %v208 = vshrl.u32 %v207, 7
      %v209 = vsub.s32 1, %v208
      %v210 = vrot.slane %v201, %v209
      %v221 = vunpack.c.l.b16 %v177
      %v222 = vunpack.c.l.b16 %v178
      %v223 = vunpack.c.l.b16 %v179
      %v224 = vunpack.c.l.b16 %v180
      %v225 = vunpack.c.l.b16 %v181
      %v226 = vunpack.c.l.b16 %v182
      %v227 = vunpack.c.l.b16 %v183
      %v228 = vunpack.c.l.b16 %v184
      %v229 = vpack.c.b16 %v222, %v221
      %v230 = vpack.c.b16 %v224, %v223
      %v231 = vpack.c.b16 %v226, %v225
      %v232 = vpack.c.b16 %v228, %v227
      %v253 = vunpack.c.l.b16 %v185
      %v254 = vunpack.c.h.b16 %v185
      %v255 = vunpack.c.l.b16 %v186
      %v256 = vunpack.c.h.b16 %v186
      %v257 = vunpack.c.l.b16 %v187
      %v258 = vunpack.c.h.b16 %v187
      %v259 = vunpack.c.l.b16 %v188
      %v260 = vunpack.c.h.b16 %v188
      %v261 = vunpack.c.l.b16 %v189
      %v262 = vunpack.c.h.b16 %v189
      %v263 = vunpack.c.l.b16 %v190
      %v264 = vunpack.c.h.b16 %v190
      %v265 = vunpack.c.l.b16 %v191
      %v266 = vunpack.c.h.b16 %v191
      %v267 = vunpack.c.l.b16 %v192
      %v268 = vunpack.c.h.b16 %v192
      %v269 = vunpack.c.l.b16 %v193
      %v270 = vunpack.c.h.b16 %v193
      %v271 = vunpack.c.l.b16 %v194
      %v272 = vunpack.c.h.b16 %v194
      %v273 = vunpack.c.l.b16 %v195
      %v274 = vunpack.c.h.b16 %v195
      %v275 = vunpack.c.l.b16 %v196
      %v276 = vunpack.c.h.b16 %v196
      %v277 = vunpack.c.l.b16 %v197
      %v278 = vunpack.c.h.b16 %v197
      %v279 = vunpack.c.l.b16 %v198
      %v280 = vunpack.c.h.b16 %v198
      %v281 = vunpack.c.l.b16 %v199
      %v282 = vunpack.c.h.b16 %v199
      %v283 = vunpack.c.l.b16 %v200
      %v284 = vunpack.c.h.b16 %v200
      %v285 = vpack.c.b16 %v255, %v253
      %v286 = vpack.c.b16 %v256, %v254
      %v287 = vpack.c.b16 %v259, %v257
      %v288 = vpack.c.b16 %v260, %v258
      %v289 = vpack.c.b16 %v263, %v261
      %v290 = vpack.c.b16 %v264, %v262
      %v291 = vpack.c.b16 %v267, %v265
      %v292 = vpack.c.b16 %v268, %v266
      %v293 = vpack.c.b16 %v271, %v269
      %v294 = vpack.c.b16 %v272, %v270
      %v295 = vpack.c.b16 %v275, %v273
      %v296 = vpack.c.b16 %v276, %v274
      %v297 = vpack.c.b16 %v279, %v277
      %v298 = vpack.c.b16 %v280, %v278
      %v299 = vpack.c.b16 %v283, %v281
      %v300 = vpack.c.b16 %v284, %v282
      %317 = vmatprep.subr.bf16.mxu0 %v286
      %318 = vmatpush1.bf16.msra.mxu0 %v285
      %319 = vmatprep.subr.bf16.mxu0 %v288
      %320 = vmatpush1.bf16.msra.mxu0 %v287
      %321 = vmatprep.subr.bf16.mxu0 %v290
      %322 = vmatpush1.bf16.msra.mxu0 %v289
      %323 = vmatprep.subr.bf16.mxu0 %v292
      %324 = vmatpush1.bf16.msra.mxu0 %v291
      %325 = vmatprep.subr.bf16.mxu0 %v294
      %326 = vmatpush1.bf16.msra.mxu0 %v293
      %327 = vmatprep.subr.bf16.mxu0 %v296
      %328 = vmatpush1.bf16.msra.mxu0 %v295
      %329 = vmatprep.subr.bf16.mxu0 %v298
      %330 = vmatpush1.bf16.msra.mxu0 %v297
      %331 = vmatprep.subr.bf16.mxu0 %v300
      %332 = vmatpush1.bf16.msra.mxu0 %v299
      %333 = vmatprep.subr.bf16.mxu0 0
      %334 = vmatpush1.bf16.msra.mxu0 0
      %335 = vmatprep.subr.bf16.mxu0 0
      %336 = vmatpush1.bf16.msra.mxu0 0
      %337 = vmatprep.subr.bf16.mxu0 0
      %338 = vmatpush1.bf16.msra.mxu0 0
      %339 = vmatprep.subr.bf16.mxu0 0
      %340 = vmatpush1.bf16.msra.mxu0 0
      %341 = vmatprep.subr.bf16.mxu0 0
      %342 = vmatpush1.bf16.msra.mxu0 0
      %343 = vmatprep.subr.bf16.mxu0 0
      %344 = vmatpush1.bf16.msra.mxu0 0
      %345 = vmatprep.subr.bf16.mxu0 0
      %346 = vmatpush1.bf16.msra.mxu0 0
      %347 = vmatprep.subr.bf16.mxu0 0
      %348 = vmatpush1.bf16.msra.mxu0 0
      %349 = vmatprep.mubr.bf16.mxu0 0
      %350 = vmatmul.mubr.bf16.gmra.mrb[0].mxu0 %v229
      %v351 = vpop.f32.mrb[0].mxu0
      %v352 = vadd.f32 %v206, %v351
      %v353 = vpop.f32.mrb[0].mxu0
      %v354 = vadd.f32 %v210, %v353
      %v355 = vpop.f32.mrb[0].mxu0
      %v356 = vadd.f32 %v206, %v355
      %v357 = vpop.f32.mrb[0].mxu0
      %v358 = vadd.f32 %v210, %v357
      %359 = vmatprep.mubr.bf16.mxu0 0
      %360 = vmatmul.mubr.bf16.gmra.mrb[0].mxu0 %v230
      %v361 = vpop.f32.mrb[0].mxu0
      %v362 = vadd.f32 %v206, %v361
      %v363 = vpop.f32.mrb[0].mxu0
      %v364 = vadd.f32 %v210, %v363
      %v365 = vpop.f32.mrb[0].mxu0
      %v366 = vadd.f32 %v206, %v365
      %v367 = vpop.f32.mrb[0].mxu0
      %v368 = vadd.f32 %v210, %v367
      %369 = vmatprep.mubr.bf16.mxu0 0
      %370 = vmatmul.mubr.bf16.gmra.mrb[0].mxu0 %v231
      %v371 = vpop.f32.mrb[0].mxu0
      %v372 = vadd.f32 %v206, %v371
      %v373 = vpop.f32.mrb[0].mxu0
      %v374 = vadd.f32 %v210, %v373
      %v375 = vpop.f32.mrb[0].mxu0
      %v376 = vadd.f32 %v206, %v375
      %v377 = vpop.f32.mrb[0].mxu0
      %v378 = vadd.f32 %v210, %v377
      %379 = vmatprep.mubr.bf16.mxu0 0
      %380 = vmatmul.mubr.bf16.gmra.mrb[0].mxu0 %v232
      %v381 = vpop.f32.mrb[0].mxu0
      %v382 = vadd.f32 %v206, %v381
      %v383 = vpop.f32.mrb[0].mxu0
      %v384 = vadd.f32 %v210, %v383
      %v385 = vpop.f32.mrb[0].mxu0
      %v386 = vadd.f32 %v206, %v385
      %v387 = vpop.f32.mrb[0].mxu0
      %v388 = vadd.f32 %v210, %v387
      %389 = vdwg.mxu0
      %v390 = vpack.c.bf16 %v356, %v352
      %v391 = vpack.c.bf16 %v358, %v354
      %v392 = vpack.c.bf16 %v366, %v362
      %v393 = vpack.c.bf16 %v368, %v364
      %v394 = vpack.c.bf16 %v376, %v372
      %v395 = vpack.c.bf16 %v378, %v374
      %v396 = vpack.c.bf16 %v386, %v382
      %v397 = vpack.c.bf16 %v388, %v384
      %v406 = vunpack.c.l.b16 %v390
      %v407 = vunpack.c.l.b16 %v391
      %v408 = vunpack.c.h.b16 %v390
      %v409 = vunpack.c.h.b16 %v391
      %v410 = vunpack.c.l.b16 %v392
      %v411 = vunpack.c.l.b16 %v393
      %v412 = vunpack.c.h.b16 %v392
      %v413 = vunpack.c.h.b16 %v393
      %v414 = vunpack.c.l.b16 %v394
      %v415 = vunpack.c.l.b16 %v395
      %v416 = vunpack.c.h.b16 %v394
      %v417 = vunpack.c.h.b16 %v395
      %v418 = vunpack.c.l.b16 %v396
      %v419 = vunpack.c.l.b16 %v397
      %v420 = vunpack.c.h.b16 %v396
      %v421 = vunpack.c.h.b16 %v397
      %v422 = vpack.c.b16 %v407, %v406
      %v423 = vpack.c.b16 %v409, %v408
      %v424 = vpack.c.b16 %v411, %v410
      %v425 = vpack.c.b16 %v413, %v412
      %v426 = vpack.c.b16 %v415, %v414
      %v427 = vpack.c.b16 %v417, %v416
      %v428 = vpack.c.b16 %v419, %v418
      %v429 = vpack.c.b16 %v421, %v420
      %438 = vst [vmem:[%s174] sm:$0xff] %v422
      %439 = vst [vmem:[%s174 + $0x8] sm:$0xff] %v423
      %440 = vst [vmem:[%s174 + $0x10] sm:$0xff] %v424
      %441 = vst [vmem:[%s174 + $0x18] sm:$0xff] %v425
      %442 = vst [vmem:[%s174 + $0x20] sm:$0xff] %v426
      %443 = vst [vmem:[%s174 + $0x28] sm:$0xff] %v427
      %444 = vst [vmem:[%s174 + $0x30] sm:$0xff] %v428
      %445 = vst [vmem:[%s174 + $0x38] sm:$0xff] %v429
      %s446 = smul.u32 8, %s14
      %p447 = scmp.lt.s32.totalorder %s446, 15
      %s448 = scalar_select %p447, %s446, 15
      %s449 = smul.addr %s448, 2
      %s450 = smul.addr %s449, 4
      %s451 = scalar_lea.vmem %s3, %s450
      // Predicated region
      $region33: #{feature_extract.16} parent=31 // pred_check
        %p452 = pneg %p100
      $region34: #{feature_extract.16} parent=31 // pred_check_branch
        %454 = sbr.rel (%p452) target = $region36
      $region35: #{feature_extract.16} parent=31 // pred_region
        %s455 = smul.u32 8, %s14
      $region36: #{feature_extract.16} parent=31 // pred_fallthru
        _
    $region32: #{feature_extract.16} parent=5 // pred_fallthru
      _
    %p456 = scmp.le.s32.totalorder 2, %s9
    // Predicated region
    $region37: #{feature_extract.16} parent=5 // pred_check
      %p457 = pneg %p456
    $region38: #{feature_extract.16} parent=5 // pred_check_branch
      %459 = sbr.rel (%p457) target = $region40
    $region39: #{feature_extract.16} parent=5 // pred_region
      %s460 = ssub.s32 %s9, 2
      // Predicated region
      $region41: #{feature_extract.16} parent=39 // pred_check
        %p461 = pneg %p106
      $region42: #{feature_extract.16} parent=39 // pred_check_branch
        %463 = sbr.rel (%p461) target = $region44
      $region43: #{feature_extract.16} parent=39 // pred_region
        %s464 = smul.u32 8, %s15
        %p465 = scmp.lt.s32.totalorder %s464, 15
        %s466 = scalar_select %p465, %s464, 15
        %s467 = smul.addr %s466, 2
        %s468 = smul.addr %s467, 4
        %s469 = scalar_lea.vmem %s3, %s468
      $region44: #{feature_extract.16} parent=39 // pred_fallthru
        _
    $region40: #{feature_extract.16} parent=5 // pred_fallthru
      _
  $region6: #{feature_extract.16} parent=0 // loop_footer
    %s13 = sadd.s32 1, %s9
  $region7: #{feature_extract.16} parent=0 // loop_footer_branch
    %8 = sbr.rel target = $region3
  $region8: #{feature_extract.16} parent=0 // loop_exit
    _

// kernel: feature_extract.17
$region0: #{feature_extract.17}
  #allocation0 [shape = 'u32[]', space=smem, size = 0x4, offset = 0x4, fixed_abs, tag = 'smem constant byte address 0x4 - core index']
  #allocation1 [shape = 'u32[144,128]{1,0:T(1,128)}', space=vmem, size = 0x12000, scoped, tag = 'internal scratch']
  %s0 = inlined_call_operand.vmem [shape: bf16[128,128], index: 0, kind: input, shape index: {}]
  %s1 = inlined_call_operand.vmem [shape: bf16[128,256], index: 1, kind: input, shape index: {}]
  %s2 = inlined_call_operand.vmem [shape: f32[1,256], index: 2, kind: input, shape index: {}]
  %s3 = inlined_call_operand.vmem [shape: bf16[128,256], index: 3, kind: input, shape index: {}]
  %s4 = inlined_call_operand.vmem [shape: bf16[128,256], index: 4, kind: output, shape index: {}]
  %s5 = sld [smem:[#allocation0]]
  $region49: #{feature_extract.17} parent=0
    _
  %s7 = ssub.s32 1, %s5
  %s8 = scalar_select 0, %s7, %s5
  loop: start=0, step=1, limit=4
  $region2: #{feature_extract.17} parent=0 // loop_pre_header
    _
  $region3: #{feature_extract.17} parent=0 // loop_header
    %s10 = sphi 0, %s14
    %p11 = scmp.ge.s32.totalorder %s10, 4
    %s20 = sphi 0, %s22
    %s23 = sphi 0, %s20
    %s24 = sphi 0, %s23
    %s40 = sphi 0, %s24
    %s44 = sphi 0, %s44
    %s46 = sphi 0, %s44
    %s47 = sphi 0, %s46
    %s61 = sphi 0, %s47
    %s65 = sphi 0, %s65
    %s67 = sphi 0, %s65
    %s68 = sphi 0, %s67
    %s82 = sphi 0, %s68
    %s88 = sphi 0, %s90
    %s91 = sphi 0, %s88
    %s92 = sphi 0, %s91
    %s108 = sphi 0, %s92
    %s114 = sphi 0, %s116
    %s117 = sphi 0, %s114
    %s118 = sphi 0, %s117
    %s134 = sphi 0, %s118
  $region4: #{feature_extract.17} parent=0 // loop_header_branch
    %13 = sbr.rel (%p11) target = $region8
  $region5: #{feature_extract.17} parent=0 // loop_body
    %s15 = ssub.s32 %s10, 1
    %s16 = ssub.s32 %s10, 2
    %s17 = sadd.s32 %s10, 1
    %s18 = ssub.s32 %s10, %s17
    %p19 = scmp.eq.s32.totalorder %s18, 0
    %s21 = sadd.s32 %s20, 1
    %s22 = scalar_select %p19, %s20, %s21
    %p25 = pneg %p19
    %p26 = scmp.eq.s32.totalorder %s10, 1
    %p27 = por %p25, %p26
    %p28 = scmp.ne.s32.totalorder %s20, %s23
    %p29 = scmp.eq.s32.totalorder %s10, 0
    %p30 = por %p28, %p29
    %p31 = scmp.ne.s32.totalorder %s20, %s23
    %p32 = scmp.eq.s32.totalorder %s15, 1
    %p33 = por %p31, %p32
    %p34 = scmp.ne.s32.totalorder %s23, %s24
    %p35 = scmp.eq.s32.totalorder %s15, 0
    %p36 = por %p34, %p35
    %p37 = scmp.ne.s32.totalorder %s23, %s24
    %p38 = scmp.eq.s32.totalorder %s16, 1
    %p39 = por %p37, %p38
    %p41 = scmp.ne.s32.totalorder %s24, %s40
    %p42 = scmp.eq.s32.totalorder %s16, 0
    %p43 = por %p41, %p42
    %s45 = sadd.s32 %s44, 1
    %p48 = scmp.eq.s32.totalorder %s10, 1
    %p49 = scmp.ne.s32.totalorder %s44, %s46
    %p50 = scmp.eq.s32.totalorder %s10, 0
    %p51 = por %p49, %p50
    %p52 = scmp.ne.s32.totalorder %s44, %s46
    %p53 = scmp.eq.s32.totalorder %s15, 1
    %p54 = por %p52, %p53
    %p55 = scmp.ne.s32.totalorder %s46, %s47
    %p56 = scmp.eq.s32.totalorder %s15, 0
    %p57 = por %p55, %p56
    %p58 = scmp.ne.s32.totalorder %s46, %s47
    %p59 = scmp.eq.s32.totalorder %s16, 1
    %p60 = por %p58, %p59
    %p62 = scmp.ne.s32.totalorder %s47, %s61
    %p63 = scmp.eq.s32.totalorder %s16, 0
    %p64 = por %p62, %p63
    %s66 = sadd.s32 %s65, 1
    %p69 = scmp.eq.s32.totalorder %s10, 1
    %p70 = scmp.ne.s32.totalorder %s65, %s67
    %p71 = scmp.eq.s32.totalorder %s10, 0
    %p72 = por %p70, %p71
    %p73 = scmp.ne.s32.totalorder %s65, %s67
    %p74 = scmp.eq.s32.totalorder %s15, 1
    %p75 = por %p73, %p74
    %p76 = scmp.ne.s32.totalorder %s67, %s68
    %p77 = scmp.eq.s32.totalorder %s15, 0
    %p78 = por %p76, %p77
    %p79 = scmp.ne.s32.totalorder %s67, %s68
    %p80 = scmp.eq.s32.totalorder %s16, 1
    %p81 = por %p79, %p80
    %p83 = scmp.ne.s32.totalorder %s68, %s82
    %p84 = scmp.eq.s32.totalorder %s16, 0
    %p85 = por %p83, %p84
    %s86 = ssub.s32 %s10, %s17
    %p87 = scmp.eq.s32.totalorder %s86, 0
    %s89 = sadd.s32 %s88, 1
    %s90 = scalar_select %p87, %s88, %s89
    %p93 = pneg %p87
    %p94 = scmp.eq.s32.totalorder %s10, 1
    %p95 = por %p93, %p94
    %p96 = scmp.ne.s32.totalorder %s88, %s91
    %p97 = scmp.eq.s32.totalorder %s10, 0
    %p98 = por %p96, %p97
    %p99 = scmp.ne.s32.totalorder %s88, %s91
    %p100 = scmp.eq.s32.totalorder %s15, 1
    %p101 = por %p99, %p100
    %p102 = scmp.ne.s32.totalorder %s91, %s92
    %p103 = scmp.eq.s32.totalorder %s15, 0
    %p104 = por %p102, %p103
    %p105 = scmp.ne.s32.totalorder %s91, %s92
    %p106 = scmp.eq.s32.totalorder %s16, 1
    %p107 = por %p105, %p106
    %p109 = scmp.ne.s32.totalorder %s92, %s108
    %p110 = scmp.eq.s32.totalorder %s16, 0
    %p111 = por %p109, %p110
    %s112 = ssub.s32 %s10, %s17
    %p113 = scmp.eq.s32.totalorder %s112, 0
    %s115 = sadd.s32 %s114, 1
    %s116 = scalar_select %p113, %s114, %s115
    %p119 = pneg %p113
    %p120 = scmp.eq.s32.totalorder %s10, 1
    %p121 = por %p119, %p120
    %p122 = scmp.ne.s32.totalorder %s114, %s117
    %p123 = scmp.eq.s32.totalorder %s10, 0
    %p124 = por %p122, %p123
    %p125 = scmp.ne.s32.totalorder %s114, %s117
    %p126 = scmp.eq.s32.totalorder %s15, 1
    %p127 = por %p125, %p126
    %p128 = scmp.ne.s32.totalorder %s117, %s118
    %p129 = scmp.eq.s32.totalorder %s15, 0
    %p130 = por %p128, %p129
    %p131 = scmp.ne.s32.totalorder %s117, %s118
    %p132 = scmp.eq.s32.totalorder %s16, 1
    %p133 = por %p131, %p132
    %p135 = scmp.ne.s32.totalorder %s118, %s134
    %p136 = scmp.eq.s32.totalorder %s16, 0
    %p137 = por %p135, %p136
    %p138 = scmp.le.s32.totalorder 1, %s10
    %p139 = scmp.lt.s32.totalorder %s10, 3
    %p140 = pnand %p138, %p139
    %p141 = pneg %p140
    // Predicated region
    $region9: #{feature_extract.17} parent=5 // pred_check
      _
    $region10: #{feature_extract.17} parent=5 // pred_check_branch
      %143 = sbr.rel (%p140) target = $region12
    $region11: #{feature_extract.17} parent=5 // pred_region
      %s144 = ssub.s32 %s10, 1
      // Predicated region
      $region13: #{feature_extract.17} parent=11 // pred_check
        %p145 = pneg %p57
      $region14: #{feature_extract.17} parent=11 // pred_check_branch
        %147 = sbr.rel (%p145) target = $region16
      $region15: #{feature_extract.17} parent=11 // pred_region
        _
      $region16: #{feature_extract.17} parent=11 // pred_fallthru
        _
      // Predicated region
      $region17: #{feature_extract.17} parent=11 // pred_check
        %p148 = pneg %p78
      $region18: #{feature_extract.17} parent=11 // pred_check_branch
        %150 = sbr.rel (%p148) target = $region20
      $region19: #{feature_extract.17} parent=11 // pred_region
        _
      $region20: #{feature_extract.17} parent=11 // pred_fallthru
        _
    $region12: #{feature_extract.17} parent=5 // pred_fallthru
      _
    %p151 = scmp.lt.s32.totalorder %s10, 2
    // Predicated region
    $region21: #{feature_extract.17} parent=5 // pred_check
      %p152 = pneg %p151
    $region22: #{feature_extract.17} parent=5 // pred_check_branch
      %154 = sbr.rel (%p152) target = $region24
    $region23: #{feature_extract.17} parent=5 // pred_region
      // Predicated region
      $region25: #{feature_extract.17} parent=23 // pred_check
        %p155 = pneg %p30
      $region26: #{feature_extract.17} parent=23 // pred_check_branch
        %157 = sbr.rel (%p155) target = $region28
      $region27: #{feature_extract.17} parent=23 // pred_region
        %s158 = smul.u32 8, %s10
        %p159 = scmp.lt.s32.totalorder %s158, 15
        %s160 = scalar_select %p159, %s158, 15
        %s161 = smul.addr %s160, 4
        %s162 = scalar_lea.vmem %s0, %s161
        %s163 = smul.u32 8, %s10
      $region28: #{feature_extract.17} parent=23 // pred_fallthru
        _
      // Predicated region
      $region29: #{feature_extract.17} parent=23 // pred_check
        %p164 = pneg %p98
      $region30: #{feature_extract.17} parent=23 // pred_check_branch
        %166 = sbr.rel (%p164) target = $region32
      $region31: #{feature_extract.17} parent=23 // pred_region
        %s167 = smul.u32 8, %s10
        %p168 = scmp.lt.s32.totalorder %s167, 15
        %s169 = scalar_select %p168, %s167, 15
        %s170 = smul.addr %s169, 2
        %s171 = smul.addr %s170, 4
        %s172 = scalar_lea.vmem %s3, %s171
        %s173 = smul.u32 8, %s10
      $region32: #{feature_extract.17} parent=23 // pred_fallthru
        _
    $region24: #{feature_extract.17} parent=5 // pred_fallthru
      _
    %p174 = scmp.le.s32.totalorder 1, %s10
    %p175 = scmp.lt.s32.totalorder %s10, 3
    %p176 = pnand %p174, %p175
    %p177 = pneg %p176
    // Predicated region
    $region33: #{feature_extract.17} parent=5 // pred_check
      _
    $region34: #{feature_extract.17} parent=5 // pred_check_branch
      %179 = sbr.rel (%p176) target = $region36
    $region35: #{feature_extract.17} parent=5 // pred_region
      %s180 = ssub.s32 %s10, 1
      %s181 = smul.u32 8, %s15
      %p182 = scmp.lt.s32.totalorder %s181, 15
      %s183 = scalar_select %p182, %s181, 15
      %s184 = smul.addr %s183, 4
      %s185 = scalar_lea.vmem %s0, %s184
      %p186 = pneg %p36
      %p187 = pneg %p33
      %p188 = pneg %p57
      %p189 = pneg %p54
      %p190 = pneg %p78
      %p191 = pneg %p75
      %s192 = smul.u32 8, %s15
      %p193 = scmp.lt.s32.totalorder %s192, 15
      %s194 = scalar_select %p193, %s192, 15
      %s195 = smul.addr %s194, 2
      %s196 = smul.addr %s195, 4
      %s197 = scalar_lea.vmem %s3, %s196
      %p198 = pneg %p104
      %p199 = pneg %p101
      %p200 = pneg %p130
      %p201 = pneg %p127
      %s202 = smul.u32 8, %s15
      %p203 = scmp.lt.s32.totalorder %s202, 15
      %s204 = scalar_select %p203, %s202, 15
      %s205 = smul.addr %s204, 2
      %s206 = smul.addr %s205, 4
      %s207 = scalar_lea.vmem %s4, %s206
      %s208 = smul.u32 8, %s15
      %p209 = scmp.lt.s32.totalorder %s208, 15
      %s210 = scalar_select %p209, %s208, 15
      %s211 = smul.addr %s210, 4
      %s212 = scalar_lea.vmem %s0, %s211
      %s213 = smul.u32 8, %s15
      %s214 = smul.u32 8, %s15
      %p215 = scmp.lt.s32.totalorder %s214, 15
      %s216 = scalar_select %p215, %s214, 15
      %s217 = smul.addr %s216, 2
      %s218 = smul.addr %s217, 4
      %s219 = scalar_lea.vmem %s3, %s218
      %s220 = smul.u32 8, %s15
      %s221 = smul.u32 8, %s15
      %p222 = scmp.lt.s32.totalorder %s221, 15
      %s223 = scalar_select %p222, %s221, 15
      %s224 = smul.addr %s223, 2
      %s225 = smul.addr %s224, 4
      %s226 = scalar_lea.vmem %s4, %s225
      %s227 = smul.u32 8, %s15
      %v229 = vld [vmem:[%s212] sm:$0xf]
      %v230 = vld [vmem:[%s212 + $0x4] sm:$0xf]
      %v231 = vld [vmem:[%s212 + $0x8] sm:$0xf]
      %v232 = vld [vmem:[%s212 + $0xc] sm:$0xf]
      %v233 = vld [vmem:[%s212 + $0x10] sm:$0xf]
      %v234 = vld [vmem:[%s212 + $0x14] sm:$0xf]
      %v235 = vld [vmem:[%s212 + $0x18] sm:$0xf]
      %v236 = vld [vmem:[%s212 + $0x1c] sm:$0xf]
      %v237 = vld [vmem:[%s1] sm:$0xff]
      %v238 = vld [vmem:[%s1 + $0x8] sm:$0xff]
      %v239 = vld [vmem:[%s1 + $0x10] sm:$0xff]
      %v240 = vld [vmem:[%s1 + $0x18] sm:$0xff]
      %v241 = vld [vmem:[%s1 + $0x20] sm:$0xff]
      %v242 = vld [vmem:[%s1 + $0x28] sm:$0xff]
      %v243 = vld [vmem:[%s1 + $0x30] sm:$0xff]
      %v244 = vld [vmem:[%s1 + $0x38] sm:$0xff]
      %v245 = vld [vmem:[%s1 + $0x40] sm:$0xff]
      %v246 = vld [vmem:[%s1 + $0x48] sm:$0xff]
      %v247 = vld [vmem:[%s1 + $0x50] sm:$0xff]
      %v248 = vld [vmem:[%s1 + $0x58] sm:$0xff]
      %v249 = vld [vmem:[%s1 + $0x60] sm:$0xff]
      %v250 = vld [vmem:[%s1 + $0x68] sm:$0xff]
      %v251 = vld [vmem:[%s1 + $0x70] sm:$0xff]
      %v252 = vld [vmem:[%s1 + $0x78] sm:$0xff]
      %v253 = vld [vmem:[%s2] sm:$0x3]
      %v255 = vlaneseq
      %v256 = vshrl.u32 %v255, 7
      %v257 = vsub.s32 0, %v256
      %v258 = vrot.slane %v253, %v257
      %v259 = vlaneseq
      %v260 = vshrl.u32 %v259, 7
      %v261 = vsub.s32 1, %v260
      %v262 = vrot.slane %v253, %v261
      %v273 = vunpack.c.l.b16 %v229
      %v274 = vunpack.c.l.b16 %v230
      %v275 = vunpack.c.l.b16 %v231
      %v276 = vunpack.c.l.b16 %v232
      %v277 = vunpack.c.l.b16 %v233
      %v278 = vunpack.c.l.b16 %v234
      %v279 = vunpack.c.l.b16 %v235
      %v280 = vunpack.c.l.b16 %v236
      %v281 = vpack.c.b16 %v274, %v273
      %v282 = vpack.c.b16 %v276, %v275
      %v283 = vpack.c.b16 %v278, %v277
      %v284 = vpack.c.b16 %v280, %v279
      %v305 = vunpack.c.l.b16 %v237
      %v306 = vunpack.c.h.b16 %v237
      %v307 = vunpack.c.l.b16 %v238
      %v308 = vunpack.c.h.b16 %v238
      %v309 = vunpack.c.l.b16 %v239
      %v310 = vunpack.c.h.b16 %v239
      %v311 = vunpack.c.l.b16 %v240
      %v312 = vunpack.c.h.b16 %v240
      %v313 = vunpack.c.l.b16 %v241
      %v314 = vunpack.c.h.b16 %v241
      %v315 = vunpack.c.l.b16 %v242
      %v316 = vunpack.c.h.b16 %v242
      %v317 = vunpack.c.l.b16 %v243
      %v318 = vunpack.c.h.b16 %v243
      %v319 = vunpack.c.l.b16 %v244
      %v320 = vunpack.c.h.b16 %v244
      %v321 = vunpack.c.l.b16 %v245
      %v322 = vunpack.c.h.b16 %v245
      %v323 = vunpack.c.l.b16 %v246
      %v324 = vunpack.c.h.b16 %v246
      %v325 = vunpack.c.l.b16 %v247
      %v326 = vunpack.c.h.b16 %v247
      %v327 = vunpack.c.l.b16 %v248
      %v328 = vunpack.c.h.b16 %v248
      %v329 = vunpack.c.l.b16 %v249
      %v330 = vunpack.c.h.b16 %v249
      %v331 = vunpack.c.l.b16 %v250
      %v332 = vunpack.c.h.b16 %v250
      %v333 = vunpack.c.l.b16 %v251
      %v334 = vunpack.c.h.b16 %v251
      %v335 = vunpack.c.l.b16 %v252
      %v336 = vunpack.c.h.b16 %v252
      %v337 = vpack.c.b16 %v307, %v305
      %v338 = vpack.c.b16 %v308, %v306
      %v339 = vpack.c.b16 %v311, %v309
      %v340 = vpack.c.b16 %v312, %v310
      %v341 = vpack.c.b16 %v315, %v313
      %v342 = vpack.c.b16 %v316, %v314
      %v343 = vpack.c.b16 %v319, %v317
      %v344 = vpack.c.b16 %v320, %v318
      %v345 = vpack.c.b16 %v323, %v321
      %v346 = vpack.c.b16 %v324, %v322
      %v347 = vpack.c.b16 %v327, %v325
      %v348 = vpack.c.b16 %v328, %v326
      %v349 = vpack.c.b16 %v331, %v329
      %v350 = vpack.c.b16 %v332, %v330
      %v351 = vpack.c.b16 %v335, %v333
      %v352 = vpack.c.b16 %v336, %v334
      %369 = vmatprep.subr.bf16.mxu0 %v338
      %370 = vmatpush1.bf16.msra.mxu0 %v337
      %371 = vmatprep.subr.bf16.mxu0 %v340
      %372 = vmatpush1.bf16.msra.mxu0 %v339
      %373 = vmatprep.subr.bf16.mxu0 %v342
      %374 = vmatpush1.bf16.msra.mxu0 %v341
      %375 = vmatprep.subr.bf16.mxu0 %v344
      %376 = vmatpush1.bf16.msra.mxu0 %v343
      %377 = vmatprep.subr.bf16.mxu0 %v346
      %378 = vmatpush1.bf16.msra.mxu0 %v345
      %379 = vmatprep.subr.bf16.mxu0 %v348
      %380 = vmatpush1.bf16.msra.mxu0 %v347
      %381 = vmatprep.subr.bf16.mxu0 %v350
      %382 = vmatpush1.bf16.msra.mxu0 %v349
      %383 = vmatprep.subr.bf16.mxu0 %v352
      %384 = vmatpush1.bf16.msra.mxu0 %v351
      %385 = vmatprep.subr.bf16.mxu0 0
      %386 = vmatpush1.bf16.msra.mxu0 0
      %387 = vmatprep.subr.bf16.mxu0 0
      %388 = vmatpush1.bf16.msra.mxu0 0
      %389 = vmatprep.subr.bf16.mxu0 0
      %390 = vmatpush1.bf16.msra.mxu0 0
      %391 = vmatprep.subr.bf16.mxu0 0
      %392 = vmatpush1.bf16.msra.mxu0 0
      %393 = vmatprep.subr.bf16.mxu0 0
      %394 = vmatpush1.bf16.msra.mxu0 0
      %395 = vmatprep.subr.bf16.mxu0 0
      %396 = vmatpush1.bf16.msra.mxu0 0
      %397 = vmatprep.subr.bf16.mxu0 0
      %398 = vmatpush1.bf16.msra.mxu0 0
      %399 = vmatprep.subr.bf16.mxu0 0
      %400 = vmatpush1.bf16.msra.mxu0 0
      %401 = vmatprep.mubr.bf16.mxu0 0
      %402 = vmatmul.mubr.bf16.gmra.mrb[0].mxu0 %v281
      %v403 = vpop.f32.mrb[0].mxu0
      %v404 = vadd.f32 %v258, %v403
      %v405 = vpop.f32.mrb[0].mxu0
      %v406 = vadd.f32 %v262, %v405
      %v407 = vpop.f32.mrb[0].mxu0
      %v408 = vadd.f32 %v258, %v407
      %v409 = vpop.f32.mrb[0].mxu0
      %v410 = vadd.f32 %v262, %v409
      %411 = vmatprep.mubr.bf16.mxu0 0
      %412 = vmatmul.mubr.bf16.gmra.mrb[0].mxu0 %v282
      %v413 = vpop.f32.mrb[0].mxu0
      %v414 = vadd.f32 %v258, %v413
      %v415 = vpop.f32.mrb[0].mxu0
      %v416 = vadd.f32 %v262, %v415
      %v417 = vpop.f32.mrb[0].mxu0
      %v418 = vadd.f32 %v258, %v417
      %v419 = vpop.f32.mrb[0].mxu0
      %v420 = vadd.f32 %v262, %v419
      %421 = vmatprep.mubr.bf16.mxu0 0
      %422 = vmatmul.mubr.bf16.gmra.mrb[0].mxu0 %v283
      %v423 = vpop.f32.mrb[0].mxu0
      %v424 = vadd.f32 %v258, %v423
      %v425 = vpop.f32.mrb[0].mxu0
      %v426 = vadd.f32 %v262, %v425
      %v427 = vpop.f32.mrb[0].mxu0
      %v428 = vadd.f32 %v258, %v427
      %v429 = vpop.f32.mrb[0].mxu0
      %v430 = vadd.f32 %v262, %v429
      %431 = vmatprep.mubr.bf16.mxu0 0
      %432 = vmatmul.mubr.bf16.gmra.mrb[0].mxu0 %v284
      %v433 = vpop.f32.mrb[0].mxu0
      %v434 = vadd.f32 %v258, %v433
      %v435 = vpop.f32.mrb[0].mxu0
      %v436 = vadd.f32 %v262, %v435
      %v437 = vpop.f32.mrb[0].mxu0
      %v438 = vadd.f32 %v258, %v437
      %v439 = vpop.f32.mrb[0].mxu0
      %v440 = vadd.f32 %v262, %v439
      %441 = vdwg.mxu0
      %v442 = vld [vmem:[%s219] sm:$0xff]
      %v443 = vld [vmem:[%s219 + $0x8] sm:$0xff]
      %v444 = vld [vmem:[%s219 + $0x10] sm:$0xff]
      %v445 = vld [vmem:[%s219 + $0x18] sm:$0xff]
      %v446 = vld [vmem:[%s219 + $0x20] sm:$0xff]
      %v447 = vld [vmem:[%s219 + $0x28] sm:$0xff]
      %v448 = vld [vmem:[%s219 + $0x30] sm:$0xff]
      %v449 = vld [vmem:[%s219 + $0x38] sm:$0xff]
      %v450 = vunpack.c.l.bf16 %v442
      %v451 = vunpack.c.h.bf16 %v442
      %v452 = vunpack.c.l.bf16 %v443
      %v453 = vunpack.c.h.bf16 %v443
      %v454 = vunpack.c.l.bf16 %v444
      %v455 = vunpack.c.h.bf16 %v444
      %v456 = vunpack.c.l.bf16 %v445
      %v457 = vunpack.c.h.bf16 %v445
      %v458 = vunpack.c.l.bf16 %v446
      %v459 = vunpack.c.h.bf16 %v446
      %v460 = vunpack.c.l.bf16 %v447
      %v461 = vunpack.c.h.bf16 %v447
      %v462 = vunpack.c.l.bf16 %v448
      %v463 = vunpack.c.h.bf16 %v448
      %v464 = vunpack.c.l.bf16 %v449
      %v465 = vunpack.c.h.bf16 %v449
      %v466 = vadd.f32 %v404, %v450
      %v467 = vadd.f32 %v406, %v451
      %v468 = vadd.f32 %v408, %v452
      %v469 = vadd.f32 %v410, %v453
      %v470 = vadd.f32 %v414, %v454
      %v471 = vadd.f32 %v416, %v455
      %v472 = vadd.f32 %v418, %v456
      %v473 = vadd.f32 %v420, %v457
      %v474 = vadd.f32 %v424, %v458
      %v475 = vadd.f32 %v426, %v459
      %v476 = vadd.f32 %v428, %v460
      %v477 = vadd.f32 %v430, %v461
      %v478 = vadd.f32 %v434, %v462
      %v479 = vadd.f32 %v436, %v463
      %v480 = vadd.f32 %v438, %v464
      %v481 = vadd.f32 %v440, %v465
      %v482 = vmax.f32 %v466, 0.0
      %v483 = vmax.f32 %v467, 0.0
      %v484 = vmax.f32 %v468, 0.0
      %v485 = vmax.f32 %v469, 0.0
      %v486 = vmax.f32 %v470, 0.0
      %v487 = vmax.f32 %v471, 0.0
      %v488 = vmax.f32 %v472, 0.0
      %v489 = vmax.f32 %v473, 0.0
      %v490 = vmax.f32 %v474, 0.0
      %v491 = vmax.f32 %v475, 0.0
      %v492 = vmax.f32 %v476, 0.0
      %v493 = vmax.f32 %v477, 0.0
      %v494 = vmax.f32 %v478, 0.0
      %v495 = vmax.f32 %v479, 0.0
      %v496 = vmax.f32 %v480, 0.0
      %v497 = vmax.f32 %v481, 0.0
      %v498 = vpack.c.bf16 %v484, %v482
      %v499 = vpack.c.bf16 %v485, %v483
      %v500 = vpack.c.bf16 %v488, %v486
      %v501 = vpack.c.bf16 %v489, %v487
      %v502 = vpack.c.bf16 %v492, %v490
      %v503 = vpack.c.bf16 %v493, %v491
      %v504 = vpack.c.bf16 %v496, %v494
      %v505 = vpack.c.bf16 %v497, %v495
      %v514 = vunpack.c.l.b16 %v498
      %v515 = vunpack.c.l.b16 %v499
      %v516 = vunpack.c.h.b16 %v498
      %v517 = vunpack.c.h.b16 %v499
      %v518 = vunpack.c.l.b16 %v500
      %v519 = vunpack.c.l.b16 %v501
      %v520 = vunpack.c.h.b16 %v500
      %v521 = vunpack.c.h.b16 %v501
      %v522 = vunpack.c.l.b16 %v502
      %v523 = vunpack.c.l.b16 %v503
      %v524 = vunpack.c.h.b16 %v502
      %v525 = vunpack.c.h.b16 %v503
      %v526 = vunpack.c.l.b16 %v504
      %v527 = vunpack.c.l.b16 %v505
      %v528 = vunpack.c.h.b16 %v504
      %v529 = vunpack.c.h.b16 %v505
      %v530 = vpack.c.b16 %v515, %v514
      %v531 = vpack.c.b16 %v517, %v516
      %v532 = vpack.c.b16 %v519, %v518
      %v533 = vpack.c.b16 %v521, %v520
      %v534 = vpack.c.b16 %v523, %v522
      %v535 = vpack.c.b16 %v525, %v524
      %v536 = vpack.c.b16 %v527, %v526
      %v537 = vpack.c.b16 %v529, %v528
      %546 = vst [vmem:[%s226] sm:$0xff] %v530
      %547 = vst [vmem:[%s226 + $0x8] sm:$0xff] %v531
      %548 = vst [vmem:[%s226 + $0x10] sm:$0xff] %v532
      %549 = vst [vmem:[%s226 + $0x18] sm:$0xff] %v533
      %550 = vst [vmem:[%s226 + $0x20] sm:$0xff] %v534
      %551 = vst [vmem:[%s226 + $0x28] sm:$0xff] %v535
      %552 = vst [vmem:[%s226 + $0x30] sm:$0xff] %v536
      %553 = vst [vmem:[%s226 + $0x38] sm:$0xff] %v537
      %s554 = smul.u32 8, %s15
      %p555 = scmp.lt.s32.totalorder %s554, 15
      %s556 = scalar_select %p555, %s554, 15
      %s557 = smul.addr %s556, 2
      %s558 = smul.addr %s557, 4
      %s559 = scalar_lea.vmem %s4, %s558
      // Predicated region
      $region37: #{feature_extract.17} parent=35 // pred_check
        %p560 = pneg %p127
      $region38: #{feature_extract.17} parent=35 // pred_check_branch
        %562 = sbr.rel (%p560) target = $region40
      $region39: #{feature_extract.17} parent=35 // pred_region
        %s563 = smul.u32 8, %s15
      $region40: #{feature_extract.17} parent=35 // pred_fallthru
        _
    $region36: #{feature_extract.17} parent=5 // pred_fallthru
      _
    %p564 = scmp.le.s32.totalorder 2, %s10
    // Predicated region
    $region41: #{feature_extract.17} parent=5 // pred_check
      %p565 = pneg %p564
    $region42: #{feature_extract.17} parent=5 // pred_check_branch
      %567 = sbr.rel (%p565) target = $region44
    $region43: #{feature_extract.17} parent=5 // pred_region
      %s568 = ssub.s32 %s10, 2
      // Predicated region
      $region45: #{feature_extract.17} parent=43 // pred_check
        %p569 = pneg %p133
      $region46: #{feature_extract.17} parent=43 // pred_check_branch
        %571 = sbr.rel (%p569) target = $region48
      $region47: #{feature_extract.17} parent=43 // pred_region
        %s572 = smul.u32 8, %s16
        %p573 = scmp.lt.s32.totalorder %s572, 15
        %s574 = scalar_select %p573, %s572, 15
        %s575 = smul.addr %s574, 2
        %s576 = smul.addr %s575, 4
        %s577 = scalar_lea.vmem %s4, %s576
      $region48: #{feature_extract.17} parent=43 // pred_fallthru
        _
    $region44: #{feature_extract.17} parent=5 // pred_fallthru
      _
  $region6: #{feature_extract.17} parent=0 // loop_footer
    %s14 = sadd.s32 1, %s10
  $region7: #{feature_extract.17} parent=0 // loop_footer_branch
    %9 = sbr.rel target = $region3
  $region8: #{feature_extract.17} parent=0 // loop_exit
    _

// kernel: feature_extract.18
$region0: #{feature_extract.18}
  #allocation0 [shape = 'u32[]', space=smem, size = 0x4, offset = 0x4, fixed_abs, tag = 'smem constant byte address 0x4 - core index']
  #allocation1 [shape = 'u32[144,128]{1,0:T(1,128)}', space=vmem, size = 0x12000, scoped, tag = 'internal scratch']
  %s0 = inlined_call_operand.vmem [shape: bf16[128,256], index: 0, kind: input, shape index: {}]
  %s1 = inlined_call_operand.vmem [shape: bf16[256,128], index: 1, kind: input, shape index: {}]
  %s2 = inlined_call_operand.vmem [shape: f32[1,128], index: 2, kind: input, shape index: {}]
  %s3 = inlined_call_operand.vmem [shape: bf16[128,128], index: 3, kind: output, shape index: {}]
  %s4 = sld [smem:[#allocation0]]
  $region45: #{feature_extract.18} parent=0
    _
  %s6 = ssub.s32 1, %s4
  %s7 = scalar_select 0, %s6, %s4
  loop: start=0, step=1, limit=4
  $region2: #{feature_extract.18} parent=0 // loop_pre_header
    _
  $region3: #{feature_extract.18} parent=0 // loop_header
    %s9 = sphi 0, %s13
    %p10 = scmp.ge.s32.totalorder %s9, 4
    %s19 = sphi 0, %s21
    %s22 = sphi 0, %s19
    %s23 = sphi 0, %s22
    %s39 = sphi 0, %s23
    %s43 = sphi 0, %s43
    %s45 = sphi 0, %s43
    %s46 = sphi 0, %s45
    %s60 = sphi 0, %s46
    %s64 = sphi 0, %s64
    %s66 = sphi 0, %s64
    %s67 = sphi 0, %s66
    %s81 = sphi 0, %s67
    %s87 = sphi 0, %s89
    %s90 = sphi 0, %s87
    %s91 = sphi 0, %s90
    %s107 = sphi 0, %s91
  $region4: #{feature_extract.18} parent=0 // loop_header_branch
    %12 = sbr.rel (%p10) target = $region8
  $region5: #{feature_extract.18} parent=0 // loop_body
    %s14 = ssub.s32 %s9, 1
    %s15 = ssub.s32 %s9, 2
    %s16 = sadd.s32 %s9, 1
    %s17 = ssub.s32 %s9, %s16
    %p18 = scmp.eq.s32.totalorder %s17, 0
    %s20 = sadd.s32 %s19, 1
    %s21 = scalar_select %p18, %s19, %s20
    %p24 = pneg %p18
    %p25 = scmp.eq.s32.totalorder %s9, 1
    %p26 = por %p24, %p25
    %p27 = scmp.ne.s32.totalorder %s19, %s22
    %p28 = scmp.eq.s32.totalorder %s9, 0
    %p29 = por %p27, %p28
    %p30 = scmp.ne.s32.totalorder %s19, %s22
    %p31 = scmp.eq.s32.totalorder %s14, 1
    %p32 = por %p30, %p31
    %p33 = scmp.ne.s32.totalorder %s22, %s23
    %p34 = scmp.eq.s32.totalorder %s14, 0
    %p35 = por %p33, %p34
    %p36 = scmp.ne.s32.totalorder %s22, %s23
    %p37 = scmp.eq.s32.totalorder %s15, 1
    %p38 = por %p36, %p37
    %p40 = scmp.ne.s32.totalorder %s23, %s39
    %p41 = scmp.eq.s32.totalorder %s15, 0
    %p42 = por %p40, %p41
    %s44 = sadd.s32 %s43, 1
    %p47 = scmp.eq.s32.totalorder %s9, 1
    %p48 = scmp.ne.s32.totalorder %s43, %s45
    %p49 = scmp.eq.s32.totalorder %s9, 0
    %p50 = por %p48, %p49
    %p51 = scmp.ne.s32.totalorder %s43, %s45
    %p52 = scmp.eq.s32.totalorder %s14, 1
    %p53 = por %p51, %p52
    %p54 = scmp.ne.s32.totalorder %s45, %s46
    %p55 = scmp.eq.s32.totalorder %s14, 0
    %p56 = por %p54, %p55
    %p57 = scmp.ne.s32.totalorder %s45, %s46
    %p58 = scmp.eq.s32.totalorder %s15, 1
    %p59 = por %p57, %p58
    %p61 = scmp.ne.s32.totalorder %s46, %s60
    %p62 = scmp.eq.s32.totalorder %s15, 0
    %p63 = por %p61, %p62
    %s65 = sadd.s32 %s64, 1
    %p68 = scmp.eq.s32.totalorder %s9, 1
    %p69 = scmp.ne.s32.totalorder %s64, %s66
    %p70 = scmp.eq.s32.totalorder %s9, 0
    %p71 = por %p69, %p70
    %p72 = scmp.ne.s32.totalorder %s64, %s66
    %p73 = scmp.eq.s32.totalorder %s14, 1
    %p74 = por %p72, %p73
    %p75 = scmp.ne.s32.totalorder %s66, %s67
    %p76 = scmp.eq.s32.totalorder %s14, 0
    %p77 = por %p75, %p76
    %p78 = scmp.ne.s32.totalorder %s66, %s67
    %p79 = scmp.eq.s32.totalorder %s15, 1
    %p80 = por %p78, %p79
    %p82 = scmp.ne.s32.totalorder %s67, %s81
    %p83 = scmp.eq.s32.totalorder %s15, 0
    %p84 = por %p82, %p83
    %s85 = ssub.s32 %s9, %s16
    %p86 = scmp.eq.s32.totalorder %s85, 0
    %s88 = sadd.s32 %s87, 1
    %s89 = scalar_select %p86, %s87, %s88
    %p92 = pneg %p86
    %p93 = scmp.eq.s32.totalorder %s9, 1
    %p94 = por %p92, %p93
    %p95 = scmp.ne.s32.totalorder %s87, %s90
    %p96 = scmp.eq.s32.totalorder %s9, 0
    %p97 = por %p95, %p96
    %p98 = scmp.ne.s32.totalorder %s87, %s90
    %p99 = scmp.eq.s32.totalorder %s14, 1
    %p100 = por %p98, %p99
    %p101 = scmp.ne.s32.totalorder %s90, %s91
    %p102 = scmp.eq.s32.totalorder %s14, 0
    %p103 = por %p101, %p102
    %p104 = scmp.ne.s32.totalorder %s90, %s91
    %p105 = scmp.eq.s32.totalorder %s15, 1
    %p106 = por %p104, %p105
    %p108 = scmp.ne.s32.totalorder %s91, %s107
    %p109 = scmp.eq.s32.totalorder %s15, 0
    %p110 = por %p108, %p109
    %p111 = scmp.le.s32.totalorder 1, %s9
    %p112 = scmp.lt.s32.totalorder %s9, 3
    %p113 = pnand %p111, %p112
    %p114 = pneg %p113
    // Predicated region
    $region9: #{feature_extract.18} parent=5 // pred_check
      _
    $region10: #{feature_extract.18} parent=5 // pred_check_branch
      %116 = sbr.rel (%p113) target = $region12
    $region11: #{feature_extract.18} parent=5 // pred_region
      %s117 = ssub.s32 %s9, 1
      // Predicated region
      $region13: #{feature_extract.18} parent=11 // pred_check
        %p118 = pneg %p56
      $region14: #{feature_extract.18} parent=11 // pred_check_branch
        %120 = sbr.rel (%p118) target = $region16
      $region15: #{feature_extract.18} parent=11 // pred_region
        _
      $region16: #{feature_extract.18} parent=11 // pred_fallthru
        _
      // Predicated region
      $region17: #{feature_extract.18} parent=11 // pred_check
        %p121 = pneg %p77
      $region18: #{feature_extract.18} parent=11 // pred_check_branch
        %123 = sbr.rel (%p121) target = $region20
      $region19: #{feature_extract.18} parent=11 // pred_region
        _
      $region20: #{feature_extract.18} parent=11 // pred_fallthru
        _
    $region12: #{feature_extract.18} parent=5 // pred_fallthru
      _
    %p124 = scmp.lt.s32.totalorder %s9, 2
    // Predicated region
    $region21: #{feature_extract.18} parent=5 // pred_check
      %p125 = pneg %p124
    $region22: #{feature_extract.18} parent=5 // pred_check_branch
      %127 = sbr.rel (%p125) target = $region24
    $region23: #{feature_extract.18} parent=5 // pred_region
      // Predicated region
      $region25: #{feature_extract.18} parent=23 // pred_check
        %p128 = pneg %p29
      $region26: #{feature_extract.18} parent=23 // pred_check_branch
        %130 = sbr.rel (%p128) target = $region28
      $region27: #{feature_extract.18} parent=23 // pred_region
        %s131 = smul.u32 8, %s9
        %p132 = scmp.lt.s32.totalorder %s131, 15
        %s133 = scalar_select %p132, %s131, 15
        %s134 = smul.addr %s133, 2
        %s135 = smul.addr %s134, 4
        %s136 = scalar_lea.vmem %s0, %s135
        %s137 = smul.u32 8, %s9
      $region28: #{feature_extract.18} parent=23 // pred_fallthru
        _
    $region24: #{feature_extract.18} parent=5 // pred_fallthru
      _
    %p138 = scmp.le.s32.totalorder 1, %s9
    %p139 = scmp.lt.s32.totalorder %s9, 3
    %p140 = pnand %p138, %p139
    %p141 = pneg %p140
    // Predicated region
    $region29: #{feature_extract.18} parent=5 // pred_check
      _
    $region30: #{feature_extract.18} parent=5 // pred_check_branch
      %143 = sbr.rel (%p140) target = $region32
    $region31: #{feature_extract.18} parent=5 // pred_region
      %s144 = ssub.s32 %s9, 1
      %s145 = smul.u32 8, %s14
      %p146 = scmp.lt.s32.totalorder %s145, 15
      %s147 = scalar_select %p146, %s145, 15
      %s148 = smul.addr %s147, 2
      %s149 = smul.addr %s148, 4
      %s150 = scalar_lea.vmem %s0, %s149
      %p151 = pneg %p35
      %p152 = pneg %p32
      %p153 = pneg %p56
      %p154 = pneg %p53
      %p155 = pneg %p77
      %p156 = pneg %p74
      %p157 = pneg %p103
      %p158 = pneg %p100
      %s159 = smul.u32 8, %s14
      %p160 = scmp.lt.s32.totalorder %s159, 15
      %s161 = scalar_select %p160, %s159, 15
      %s162 = smul.addr %s161, 4
      %s163 = scalar_lea.vmem %s3, %s162
      %s164 = smul.u32 8, %s14
      %p165 = scmp.lt.s32.totalorder %s164, 15
      %s166 = scalar_select %p165, %s164, 15
      %s167 = smul.addr %s166, 2
      %s168 = smul.addr %s167, 4
      %s169 = scalar_lea.vmem %s0, %s168
      %s170 = smul.u32 8, %s14
      %s171 = smul.u32 8, %s14
      %p172 = scmp.lt.s32.totalorder %s171, 15
      %s173 = scalar_select %p172, %s171, 15
      %s174 = smul.addr %s173, 4
      %s175 = scalar_lea.vmem %s3, %s174
      %s176 = smul.u32 8, %s14
      %v178 = vld [vmem:[%s169] sm:$0xff]
      %v179 = vld [vmem:[%s169 + $0x8] sm:$0xff]
      %v180 = vld [vmem:[%s169 + $0x10] sm:$0xff]
      %v181 = vld [vmem:[%s169 + $0x18] sm:$0xff]
      %v182 = vld [vmem:[%s169 + $0x20] sm:$0xff]
      %v183 = vld [vmem:[%s169 + $0x28] sm:$0xff]
      %v184 = vld [vmem:[%s169 + $0x30] sm:$0xff]
      %v185 = vld [vmem:[%s169 + $0x38] sm:$0xff]
      %v186 = vld [vmem:[%s1] sm:$0xf]
      %v187 = vld [vmem:[%s1 + $0x4] sm:$0xf]
      %v188 = vld [vmem:[%s1 + $0x8] sm:$0xf]
      %v189 = vld [vmem:[%s1 + $0xc] sm:$0xf]
      %v190 = vld [vmem:[%s1 + $0x10] sm:$0xf]
      %v191 = vld [vmem:[%s1 + $0x14] sm:$0xf]
      %v192 = vld [vmem:[%s1 + $0x18] sm:$0xf]
      %v193 = vld [vmem:[%s1 + $0x1c] sm:$0xf]
      %v194 = vld [vmem:[%s1 + $0x20] sm:$0xf]
      %v195 = vld [vmem:[%s1 + $0x24] sm:$0xf]
      %v196 = vld [vmem:[%s1 + $0x28] sm:$0xf]
      %v197 = vld [vmem:[%s1 + $0x2c] sm:$0xf]
      %v198 = vld [vmem:[%s1 + $0x30] sm:$0xf]
      %v199 = vld [vmem:[%s1 + $0x34] sm:$0xf]
      %v200 = vld [vmem:[%s1 + $0x38] sm:$0xf]
      %v201 = vld [vmem:[%s1 + $0x3c] sm:$0xf]
      %v202 = vld [vmem:[%s1 + $0x40] sm:$0xf]
      %v203 = vld [vmem:[%s1 + $0x44] sm:$0xf]
      %v204 = vld [vmem:[%s1 + $0x48] sm:$0xf]
      %v205 = vld [vmem:[%s1 + $0x4c] sm:$0xf]
      %v206 = vld [vmem:[%s1 + $0x50] sm:$0xf]
      %v207 = vld [vmem:[%s1 + $0x54] sm:$0xf]
      %v208 = vld [vmem:[%s1 + $0x58] sm:$0xf]
      %v209 = vld [vmem:[%s1 + $0x5c] sm:$0xf]
      %v210 = vld [vmem:[%s1 + $0x60] sm:$0xf]
      %v211 = vld [vmem:[%s1 + $0x64] sm:$0xf]
      %v212 = vld [vmem:[%s1 + $0x68] sm:$0xf]
      %v213 = vld [vmem:[%s1 + $0x6c] sm:$0xf]
      %v214 = vld [vmem:[%s1 + $0x70] sm:$0xf]
      %v215 = vld [vmem:[%s1 + $0x74] sm:$0xf]
      %v216 = vld [vmem:[%s1 + $0x78] sm:$0xf]
      %v217 = vld [vmem:[%s1 + $0x7c] sm:$0xf]
      %v218 = vld [vmem:[%s2] sm:$0x1]
      %v220 = vlaneseq
      %v221 = vshrl.u32 %v220, 7
      %v222 = vsub.s32 0, %v221
      %v223 = vrot.slane %v218, %v222
      %v233 = vunpack.c.l.b16 %v178
      %v234 = vunpack.c.h.b16 %v178
      %v235 = vunpack.c.l.b16 %v179
      %v236 = vunpack.c.h.b16 %v179
      %v237 = vunpack.c.l.b16 %v180
      %v238 = vunpack.c.h.b16 %v180
      %v239 = vunpack.c.l.b16 %v181
      %v240 = vunpack.c.h.b16 %v181
      %v241 = vunpack.c.l.b16 %v182
      %v242 = vunpack.c.h.b16 %v182
      %v243 = vunpack.c.l.b16 %v183
      %v244 = vunpack.c.h.b16 %v183
      %v245 = vunpack.c.l.b16 %v184
      %v246 = vunpack.c.h.b16 %v184
      %v247 = vunpack.c.l.b16 %v185
      %v248 = vunpack.c.h.b16 %v185
      %v249 = vpack.c.b16 %v235, %v233
      %v250 = vpack.c.b16 %v236, %v234
      %v251 = vpack.c.b16 %v239, %v237
      %v252 = vpack.c.b16 %v240, %v238
      %v253 = vpack.c.b16 %v243, %v241
      %v254 = vpack.c.b16 %v244, %v242
      %v255 = vpack.c.b16 %v247, %v245
      %v256 = vpack.c.b16 %v248, %v246
      %v297 = vunpack.c.l.b16 %v186
      %v298 = vunpack.c.l.b16 %v187
      %v299 = vunpack.c.l.b16 %v188
      %v300 = vunpack.c.l.b16 %v189
      %v301 = vunpack.c.l.b16 %v190
      %v302 = vunpack.c.l.b16 %v191
      %v303 = vunpack.c.l.b16 %v192
      %v304 = vunpack.c.l.b16 %v193
      %v305 = vunpack.c.l.b16 %v194
      %v306 = vunpack.c.l.b16 %v195
      %v307 = vunpack.c.l.b16 %v196
      %v308 = vunpack.c.l.b16 %v197
      %v309 = vunpack.c.l.b16 %v198
      %v310 = vunpack.c.l.b16 %v199
      %v311 = vunpack.c.l.b16 %v200
      %v312 = vunpack.c.l.b16 %v201
      %v313 = vunpack.c.l.b16 %v202
      %v314 = vunpack.c.l.b16 %v203
      %v315 = vunpack.c.l.b16 %v204
      %v316 = vunpack.c.l.b16 %v205
      %v317 = vunpack.c.l.b16 %v206
      %v318 = vunpack.c.l.b16 %v207
      %v319 = vunpack.c.l.b16 %v208
      %v320 = vunpack.c.l.b16 %v209
      %v321 = vunpack.c.l.b16 %v210
      %v322 = vunpack.c.l.b16 %v211
      %v323 = vunpack.c.l.b16 %v212
      %v324 = vunpack.c.l.b16 %v213
      %v325 = vunpack.c.l.b16 %v214
      %v326 = vunpack.c.l.b16 %v215
      %v327 = vunpack.c.l.b16 %v216
      %v328 = vunpack.c.l.b16 %v217
      %v329 = vpack.c.b16 %v298, %v297
      %v330 = vpack.c.b16 %v300, %v299
      %v331 = vpack.c.b16 %v302, %v301
      %v332 = vpack.c.b16 %v304, %v303
      %v333 = vpack.c.b16 %v306, %v305
      %v334 = vpack.c.b16 %v308, %v307
      %v335 = vpack.c.b16 %v310, %v309
      %v336 = vpack.c.b16 %v312, %v311
      %v337 = vpack.c.b16 %v314, %v313
      %v338 = vpack.c.b16 %v316, %v315
      %v339 = vpack.c.b16 %v318, %v317
      %v340 = vpack.c.b16 %v320, %v319
      %v341 = vpack.c.b16 %v322, %v321
      %v342 = vpack.c.b16 %v324, %v323
      %v343 = vpack.c.b16 %v326, %v325
      %v344 = vpack.c.b16 %v328, %v327
      %361 = vmatprep.subr.bf16.mxu0 0
      %362 = vmatpush1.bf16.msra.mxu0 %v329
      %363 = vmatprep.subr.bf16.mxu0 0
      %364 = vmatpush1.bf16.msra.mxu0 %v330
      %365 = vmatprep.subr.bf16.mxu0 0
      %366 = vmatpush1.bf16.msra.mxu0 %v331
      %367 = vmatprep.subr.bf16.mxu0 0
      %368 = vmatpush1.bf16.msra.mxu0 %v332
      %369 = vmatprep.subr.bf16.mxu0 0
      %370 = vmatpush1.bf16.msra.mxu0 %v333
      %371 = vmatprep.subr.bf16.mxu0 0
      %372 = vmatpush1.bf16.msra.mxu0 %v334
      %373 = vmatprep.subr.bf16.mxu0 0
      %374 = vmatpush1.bf16.msra.mxu0 %v335
      %375 = vmatprep.subr.bf16.mxu0 0
      %376 = vmatpush1.bf16.msra.mxu0 %v336
      %377 = vmatprep.subr.bf16.mxu0 0
      %378 = vmatpush1.bf16.msra.mxu0 %v337
      %379 = vmatprep.subr.bf16.mxu0 0
      %380 = vmatpush1.bf16.msra.mxu0 %v338
      %381 = vmatprep.subr.bf16.mxu0 0
      %382 = vmatpush1.bf16.msra.mxu0 %v339
      %383 = vmatprep.subr.bf16.mxu0 0
      %384 = vmatpush1.bf16.msra.mxu0 %v340
      %385 = vmatprep.subr.bf16.mxu0 0
      %386 = vmatpush1.bf16.msra.mxu0 %v341
      %387 = vmatprep.subr.bf16.mxu0 0
      %388 = vmatpush1.bf16.msra.mxu0 %v342
      %389 = vmatprep.subr.bf16.mxu0 0
      %390 = vmatpush1.bf16.msra.mxu0 %v343
      %391 = vmatprep.subr.bf16.mxu0 0
      %392 = vmatpush1.bf16.msra.mxu0 %v344
      %393 = vmatprep.mubr.bf16.mxu0 %v250
      %394 = vmatmul.mubr.bf16.gmra.mrb[0].mxu0 %v249
      %v395 = vpop.f32.mrb[0].mxu0
      %v396 = vadd.f32 %v223, %v395
      %v397 = vpop.f32.mrb[0].mxu0
      %v398 = vpop.f32.mrb[0].mxu0
      %v399 = vadd.f32 %v223, %v398
      %v400 = vpop.f32.mrb[0].mxu0
      %401 = vmatprep.mubr.bf16.mxu0 %v252
      %402 = vmatmul.mubr.bf16.gmra.mrb[0].mxu0 %v251
      %v403 = vpop.f32.mrb[0].mxu0
      %v404 = vadd.f32 %v223, %v403
      %v405 = vpop.f32.mrb[0].mxu0
      %v406 = vpop.f32.mrb[0].mxu0
      %v407 = vadd.f32 %v223, %v406
      %v408 = vpop.f32.mrb[0].mxu0
      %409 = vmatprep.mubr.bf16.mxu0 %v254
      %410 = vmatmul.mubr.bf16.gmra.mrb[0].mxu0 %v253
      %v411 = vpop.f32.mrb[0].mxu0
      %v412 = vadd.f32 %v223, %v411
      %v413 = vpop.f32.mrb[0].mxu0
      %v414 = vpop.f32.mrb[0].mxu0
      %v415 = vadd.f32 %v223, %v414
      %v416 = vpop.f32.mrb[0].mxu0
      %417 = vmatprep.mubr.bf16.mxu0 %v256
      %418 = vmatmul.mubr.bf16.gmra.mrb[0].mxu0 %v255
      %v419 = vpop.f32.mrb[0].mxu0
      %v420 = vadd.f32 %v223, %v419
      %v421 = vpop.f32.mrb[0].mxu0
      %v422 = vpop.f32.mrb[0].mxu0
      %v423 = vadd.f32 %v223, %v422
      %v424 = vpop.f32.mrb[0].mxu0
      %425 = vdwg.mxu0
      %v426 = vmax.f32 %v396, 0.0
      %v427 = vmax.f32 %v399, 0.0
      %v428 = vmax.f32 %v404, 0.0
      %v429 = vmax.f32 %v407, 0.0
      %v430 = vmax.f32 %v412, 0.0
      %v431 = vmax.f32 %v415, 0.0
      %v432 = vmax.f32 %v420, 0.0
      %v433 = vmax.f32 %v423, 0.0
      %v434 = vpack.c.bf16 %v427, %v426
      %v435 = vpack.c.bf16 %v429, %v428
      %v436 = vpack.c.bf16 %v431, %v430
      %v437 = vpack.c.bf16 %v433, %v432
      %v442 = vunpack.c.l.b16 %v434
      %v443 = vunpack.c.h.b16 %v434
      %v444 = vunpack.c.l.b16 %v435
      %v445 = vunpack.c.h.b16 %v435
      %v446 = vunpack.c.l.b16 %v436
      %v447 = vunpack.c.h.b16 %v436
      %v448 = vunpack.c.l.b16 %v437
      %v449 = vunpack.c.h.b16 %v437
      %v450 = vpack.c.b16 %v442, %v442
      %v451 = vpack.c.b16 %v443, %v443
      %v452 = vpack.c.b16 %v444, %v444
      %v453 = vpack.c.b16 %v445, %v445
      %v454 = vpack.c.b16 %v446, %v446
      %v455 = vpack.c.b16 %v447, %v447
      %v456 = vpack.c.b16 %v448, %v448
      %v457 = vpack.c.b16 %v449, %v449
      %466 = vst [vmem:[%s175] sm:$0xf] %v450
      %467 = vst [vmem:[%s175 + $0x4] sm:$0xf] %v451
      %468 = vst [vmem:[%s175 + $0x8] sm:$0xf] %v452
      %469 = vst [vmem:[%s175 + $0xc] sm:$0xf] %v453
      %470 = vst [vmem:[%s175 + $0x10] sm:$0xf] %v454
      %471 = vst [vmem:[%s175 + $0x14] sm:$0xf] %v455
      %472 = vst [vmem:[%s175 + $0x18] sm:$0xf] %v456
      %473 = vst [vmem:[%s175 + $0x1c] sm:$0xf] %v457
      %s474 = smul.u32 8, %s14
      %p475 = scmp.lt.s32.totalorder %s474, 15
      %s476 = scalar_select %p475, %s474, 15
      %s477 = smul.addr %s476, 4
      %s478 = scalar_lea.vmem %s3, %s477
      // Predicated region
      $region33: #{feature_extract.18} parent=31 // pred_check
        %p479 = pneg %p100
      $region34: #{feature_extract.18} parent=31 // pred_check_branch
        %481 = sbr.rel (%p479) target = $region36
      $region35: #{feature_extract.18} parent=31 // pred_region
        %s482 = smul.u32 8, %s14
      $region36: #{feature_extract.18} parent=31 // pred_fallthru
        _
    $region32: #{feature_extract.18} parent=5 // pred_fallthru
      _
    %p483 = scmp.le.s32.totalorder 2, %s9
    // Predicated region
    $region37: #{feature_extract.18} parent=5 // pred_check
      %p484 = pneg %p483
    $region38: #{feature_extract.18} parent=5 // pred_check_branch
      %486 = sbr.rel (%p484) target = $region40
    $region39: #{feature_extract.18} parent=5 // pred_region
      %s487 = ssub.s32 %s9, 2
      // Predicated region
      $region41: #{feature_extract.18} parent=39 // pred_check
        %p488 = pneg %p106
      $region42: #{feature_extract.18} parent=39 // pred_check_branch
        %490 = sbr.rel (%p488) target = $region44
      $region43: #{feature_extract.18} parent=39 // pred_region
        %s491 = smul.u32 8, %s15
        %p492 = scmp.lt.s32.totalorder %s491, 15
        %s493 = scalar_select %p492, %s491, 15
        %s494 = smul.addr %s493, 4
        %s495 = scalar_lea.vmem %s3, %s494
      $region44: #{feature_extract.18} parent=39 // pred_fallthru
        _
    $region40: #{feature_extract.18} parent=5 // pred_fallthru
      _
  $region6: #{feature_extract.18} parent=0 // loop_footer
    %s13 = sadd.s32 1, %s9
  $region7: #{feature_extract.18} parent=0 // loop_footer_branch
    %8 = sbr.rel target = $region3
  $region8: #{feature_extract.18} parent=0 // loop_exit
    _

// kernel: feature_extract.15
$region0: #{feature_extract.15}
  #allocation0 [shape = 'u32[]', space=smem, size = 0x4, offset = 0x4, fixed_abs, tag = 'smem constant byte address 0x4 - core index']
  #allocation1 [shape = 'u32[144,128]{1,0:T(1,128)}', space=vmem, size = 0x12000, scoped, tag = 'internal scratch']
  %s0 = inlined_call_operand.vmem [shape: bf16[2,10,10,128], index: 0, kind: input, shape index: {}]
  %s1 = inlined_call_operand.vmem [shape: bf16[9,128,128], index: 1, kind: input, shape index: {}]
  %s2 = inlined_call_operand.vmem [shape: f32[1,128], index: 2, kind: input, shape index: {}]
  %s3 = inlined_call_operand.vmem [shape: bf16[2,8,8,128], index: 3, kind: output, shape index: {}]
  %s4 = sld [smem:[#allocation0]]
  $region45: #{feature_extract.15} parent=0
    _
  %s6 = ssub.s32 1, %s4
  %s7 = scalar_select 0, %s6, %s4
  loop: start=0, step=1, limit=4
  $region2: #{feature_extract.15} parent=0 // loop_pre_header
    _
  $region3: #{feature_extract.15} parent=0 // loop_header
    %s9 = sphi 0, %s13
    %p10 = scmp.ge.s32.totalorder %s9, 4
    %s19 = sphi 0, %s21
    %s22 = sphi 0, %s19
    %s23 = sphi 0, %s22
    %s39 = sphi 0, %s23
    %s43 = sphi 0, %s43
    %s45 = sphi 0, %s43
    %s46 = sphi 0, %s45
    %s60 = sphi 0, %s46
    %s64 = sphi 0, %s64
    %s66 = sphi 0, %s64
    %s67 = sphi 0, %s66
    %s81 = sphi 0, %s67
    %s87 = sphi 0, %s89
    %s90 = sphi 0, %s87
    %s91 = sphi 0, %s90
    %s107 = sphi 0, %s91
  $region4: #{feature_extract.15} parent=0 // loop_header_branch
    %12 = sbr.rel (%p10) target = $region8
  $region5: #{feature_extract.15} parent=0 // loop_body
    %s14 = ssub.s32 %s9, 1
    %s15 = ssub.s32 %s9, 2
    %s16 = sadd.s32 %s9, 1
    %s17 = ssub.s32 %s9, %s16
    %p18 = scmp.eq.s32.totalorder %s17, 0
    %s20 = sadd.s32 %s19, 1
    %s21 = scalar_select %p18, %s19, %s20
    %p24 = pneg %p18
    %p25 = scmp.eq.s32.totalorder %s9, 1
    %p26 = por %p24, %p25
    %p27 = scmp.ne.s32.totalorder %s19, %s22
    %p28 = scmp.eq.s32.totalorder %s9, 0
    %p29 = por %p27, %p28
    %p30 = scmp.ne.s32.totalorder %s19, %s22
    %p31 = scmp.eq.s32.totalorder %s14, 1
    %p32 = por %p30, %p31
    %p33 = scmp.ne.s32.totalorder %s22, %s23
    %p34 = scmp.eq.s32.totalorder %s14, 0
    %p35 = por %p33, %p34
    %p36 = scmp.ne.s32.totalorder %s22, %s23
    %p37 = scmp.eq.s32.totalorder %s15, 1
    %p38 = por %p36, %p37
    %p40 = scmp.ne.s32.totalorder %s23, %s39
    %p41 = scmp.eq.s32.totalorder %s15, 0
    %p42 = por %p40, %p41
    %s44 = sadd.s32 %s43, 1
    %p47 = scmp.eq.s32.totalorder %s9, 1
    %p48 = scmp.ne.s32.totalorder %s43, %s45
    %p49 = scmp.eq.s32.totalorder %s9, 0
    %p50 = por %p48, %p49
    %p51 = scmp.ne.s32.totalorder %s43, %s45
    %p52 = scmp.eq.s32.totalorder %s14, 1
    %p53 = por %p51, %p52
    %p54 = scmp.ne.s32.totalorder %s45, %s46
    %p55 = scmp.eq.s32.totalorder %s14, 0
    %p56 = por %p54, %p55
    %p57 = scmp.ne.s32.totalorder %s45, %s46
    %p58 = scmp.eq.s32.totalorder %s15, 1
    %p59 = por %p57, %p58
    %p61 = scmp.ne.s32.totalorder %s46, %s60
    %p62 = scmp.eq.s32.totalorder %s15, 0
    %p63 = por %p61, %p62
    %s65 = sadd.s32 %s64, 1
    %p68 = scmp.eq.s32.totalorder %s9, 1
    %p69 = scmp.ne.s32.totalorder %s64, %s66
    %p70 = scmp.eq.s32.totalorder %s9, 0
    %p71 = por %p69, %p70
    %p72 = scmp.ne.s32.totalorder %s64, %s66
    %p73 = scmp.eq.s32.totalorder %s14, 1
    %p74 = por %p72, %p73
    %p75 = scmp.ne.s32.totalorder %s66, %s67
    %p76 = scmp.eq.s32.totalorder %s14, 0
    %p77 = por %p75, %p76
    %p78 = scmp.ne.s32.totalorder %s66, %s67
    %p79 = scmp.eq.s32.totalorder %s15, 1
    %p80 = por %p78, %p79
    %p82 = scmp.ne.s32.totalorder %s67, %s81
    %p83 = scmp.eq.s32.totalorder %s15, 0
    %p84 = por %p82, %p83
    %s85 = ssub.s32 %s9, %s16
    %p86 = scmp.eq.s32.totalorder %s85, 0
    %s88 = sadd.s32 %s87, 1
    %s89 = scalar_select %p86, %s87, %s88
    %p92 = pneg %p86
    %p93 = scmp.eq.s32.totalorder %s9, 1
    %p94 = por %p92, %p93
    %p95 = scmp.ne.s32.totalorder %s87, %s90
    %p96 = scmp.eq.s32.totalorder %s9, 0
    %p97 = por %p95, %p96
    %p98 = scmp.ne.s32.totalorder %s87, %s90
    %p99 = scmp.eq.s32.totalorder %s14, 1
    %p100 = por %p98, %p99
    %p101 = scmp.ne.s32.totalorder %s90, %s91
    %p102 = scmp.eq.s32.totalorder %s14, 0
    %p103 = por %p101, %p102
    %p104 = scmp.ne.s32.totalorder %s90, %s91
    %p105 = scmp.eq.s32.totalorder %s15, 1
    %p106 = por %p104, %p105
    %p108 = scmp.ne.s32.totalorder %s91, %s107
    %p109 = scmp.eq.s32.totalorder %s15, 0
    %p110 = por %p108, %p109
    %p111 = scmp.le.s32.totalorder 1, %s9
    %p112 = scmp.lt.s32.totalorder %s9, 3
    %p113 = pnand %p111, %p112
    %p114 = pneg %p113
    // Predicated region
    $region9: #{feature_extract.15} parent=5 // pred_check
      _
    $region10: #{feature_extract.15} parent=5 // pred_check_branch
      %116 = sbr.rel (%p113) target = $region12
    $region11: #{feature_extract.15} parent=5 // pred_region
      %s117 = ssub.s32 %s9, 1
      // Predicated region
      $region13: #{feature_extract.15} parent=11 // pred_check
        %p118 = pneg %p56
      $region14: #{feature_extract.15} parent=11 // pred_check_branch
        %120 = sbr.rel (%p118) target = $region16
      $region15: #{feature_extract.15} parent=11 // pred_region
        _
      $region16: #{feature_extract.15} parent=11 // pred_fallthru
        _
      // Predicated region
      $region17: #{feature_extract.15} parent=11 // pred_check
        %p121 = pneg %p77
      $region18: #{feature_extract.15} parent=11 // pred_check_branch
        %123 = sbr.rel (%p121) target = $region20
      $region19: #{feature_extract.15} parent=11 // pred_region
        _
      $region20: #{feature_extract.15} parent=11 // pred_fallthru
        _
    $region12: #{feature_extract.15} parent=5 // pred_fallthru
      _
    %p124 = scmp.lt.s32.totalorder %s9, 2
    // Predicated region
    $region21: #{feature_extract.15} parent=5 // pred_check
      %p125 = pneg %p124
    $region22: #{feature_extract.15} parent=5 // pred_check_branch
      %127 = sbr.rel (%p125) target = $region24
    $region23: #{feature_extract.15} parent=5 // pred_region
      // Predicated region
      $region25: #{feature_extract.15} parent=23 // pred_check
        %p128 = pneg %p29
      $region26: #{feature_extract.15} parent=23 // pred_check_branch
        %130 = sbr.rel (%p128) target = $region28
      $region27: #{feature_extract.15} parent=23 // pred_region
        %p131 = scmp.lt.s32.totalorder %s9, 1
        %s132 = scalar_select %p131, %s9, 1
        %s133 = smul.addr %s132, 20
        %s134 = smul.addr %s133, 4
        %s135 = scalar_lea.vmem %s0, %s134
      $region28: #{feature_extract.15} parent=23 // pred_fallthru
        _
    $region24: #{feature_extract.15} parent=5 // pred_fallthru
      _
    %p136 = scmp.le.s32.totalorder 1, %s9
    %p137 = scmp.lt.s32.totalorder %s9, 3
    %p138 = pnand %p136, %p137
    %p139 = pneg %p138
    // Predicated region
    $region29: #{feature_extract.15} parent=5 // pred_check
      _
    $region30: #{feature_extract.15} parent=5 // pred_check_branch
      %141 = sbr.rel (%p138) target = $region32
    $region31: #{feature_extract.15} parent=5 // pred_region
      %s142 = ssub.s32 %s9, 1
      %p143 = scmp.lt.s32.totalorder %s14, 1
      %s144 = scalar_select %p143, %s14, 1
      %s145 = smul.addr %s144, 20
      %s146 = smul.addr %s145, 4
      %s147 = scalar_lea.vmem %s0, %s146
      %p148 = pneg %p35
      %p149 = pneg %p32
      %p150 = pneg %p56
      %p151 = pneg %p53
      %p152 = pneg %p77
      %p153 = pneg %p74
      %p154 = pneg %p103
      %p155 = pneg %p100
      %p156 = scmp.lt.s32.totalorder %s14, 1
      %s157 = scalar_select %p156, %s14, 1
      %s158 = smul.addr %s157, 8
      %s159 = smul.addr %s158, 4
      %s160 = scalar_lea.vmem %s3, %s159
      %p161 = scmp.lt.s32.totalorder %s14, 1
      %s162 = scalar_select %p161, %s14, 1
      %s163 = smul.addr %s162, 20
      %s164 = smul.addr %s163, 4
      %s165 = scalar_lea.vmem %s0, %s164
      %p166 = scmp.lt.s32.totalorder %s14, 1
      %s167 = scalar_select %p166, %s14, 1
      %s168 = smul.addr %s167, 8
      %s169 = smul.addr %s168, 4
      %s170 = scalar_lea.vmem %s3, %s169
      %v172 = vld [vmem:[%s165] sm:$0xf]
      %v173 = vld [vmem:[%s165 + $0x4] sm:$0x1]
      %v174 = vld [vmem:[%s165 + $0x8] sm:$0xf]
      %v175 = vld [vmem:[%s165 + $0xc] sm:$0x1]
      %v176 = vld [vmem:[%s165 + $0x10] sm:$0xf]
      %v177 = vld [vmem:[%s165 + $0x14] sm:$0x1]
      %v178 = vld [vmem:[%s165 + $0x18] sm:$0xf]
      %v179 = vld [vmem:[%s165 + $0x1c] sm:$0x1]
      %v180 = vld [vmem:[%s165 + $0x20] sm:$0xf]
      %v181 = vld [vmem:[%s165 + $0x24] sm:$0x1]
      %v182 = vld [vmem:[%s165 + $0x28] sm:$0xf]
      %v183 = vld [vmem:[%s165 + $0x2c] sm:$0x1]
      %v184 = vld [vmem:[%s165 + $0x30] sm:$0xf]
      %v185 = vld [vmem:[%s165 + $0x34] sm:$0x1]
      %v186 = vld [vmem:[%s165 + $0x38] sm:$0xf]
      %v187 = vld [vmem:[%s165 + $0x3c] sm:$0x1]
      %v188 = vld [vmem:[%s165 + $0x40] sm:$0xf]
      %v189 = vld [vmem:[%s165 + $0x44] sm:$0x1]
      %v190 = vld [vmem:[%s165 + $0x48] sm:$0xf]
      %v191 = vld [vmem:[%s165 + $0x4c] sm:$0x1]
      %v192 = vld [vmem:[%s1] sm:$0xf]
      %v193 = vld [vmem:[%s1 + $0x4] sm:$0xf]
      %v194 = vld [vmem:[%s1 + $0x8] sm:$0xf]
      %v195 = vld [vmem:[%s1 + $0xc] sm:$0xf]
      %v196 = vld [vmem:[%s1 + $0x10] sm:$0xf]
      %v197 = vld [vmem:[%s1 + $0x14] sm:$0xf]
      %v198 = vld [vmem:[%s1 + $0x18] sm:$0xf]
      %v199 = vld [vmem:[%s1 + $0x1c] sm:$0xf]
      %v200 = vld [vmem:[%s1 + $0x20] sm:$0xf]
      %v201 = vld [vmem:[%s1 + $0x24] sm:$0xf]
      %v202 = vld [vmem:[%s1 + $0x28] sm:$0xf]
      %v203 = vld [vmem:[%s1 + $0x2c] sm:$0xf]
      %v204 = vld [vmem:[%s1 + $0x30] sm:$0xf]
      %v205 = vld [vmem:[%s1 + $0x34] sm:$0xf]
      %v206 = vld [vmem:[%s1 + $0x38] sm:$0xf]
      %v207 = vld [vmem:[%s1 + $0x3c] sm:$0xf]
      %vm208 = vsmask.f32 3328
      %vm209 = vsmask.f32 7440
      %vm210 = vmor %vm208, %vm209
      %v212 = vshrl.u32 %v172, 16
      %v214 = vrot.slane %v212, 4
      %v215 = vshll.u32 %v172, 16
      %v217 = vrot.slane %v215, 5
      %v218 = vor.u32 %v214, %v217
      %v219 = vrot.slane %v218, 4
      %v221 = vshll.u32 %v173, 16
      %v223 = vrot.slane %v221, 5
      %v224 = vsel %vm210, %v219, %v223
      %v226 = vshrl.u32 %v174, 16
      %v228 = vrot.slane %v226, 4
      %v229 = vshll.u32 %v174, 16
      %v231 = vrot.slane %v229, 5
      %v232 = vor.u32 %v228, %v231
      %v233 = vrot.slane %v232, 4
      %v235 = vshll.u32 %v175, 16
      %v237 = vrot.slane %v235, 5
      %v238 = vsel %vm210, %v233, %v237
      %v240 = vshrl.u32 %v176, 16
      %v242 = vrot.slane %v240, 4
      %v243 = vshll.u32 %v176, 16
      %v245 = vrot.slane %v243, 5
      %v246 = vor.u32 %v242, %v245
      %v247 = vrot.slane %v246, 4
      %v249 = vshll.u32 %v177, 16
      %v251 = vrot.slane %v249, 5
      %v252 = vsel %vm210, %v247, %v251
      %v254 = vshrl.u32 %v178, 16
      %v256 = vrot.slane %v254, 4
      %v257 = vshll.u32 %v178, 16
      %v259 = vrot.slane %v257, 5
      %v260 = vor.u32 %v256, %v259
      %v261 = vrot.slane %v260, 4
      %v263 = vshll.u32 %v179, 16
      %v265 = vrot.slane %v263, 5
      %v266 = vsel %vm210, %v261, %v265
      %v268 = vshrl.u32 %v180, 16
      %v270 = vrot.slane %v268, 4
      %v271 = vshll.u32 %v180, 16
      %v273 = vrot.slane %v271, 5
      %v274 = vor.u32 %v270, %v273
      %v275 = vrot.slane %v274, 4
      %v277 = vshll.u32 %v181, 16
      %v279 = vrot.slane %v277, 5
      %v280 = vsel %vm210, %v275, %v279
      %v282 = vshrl.u32 %v182, 16
      %v284 = vrot.slane %v282, 4
      %v285 = vshll.u32 %v182, 16
      %v287 = vrot.slane %v285, 5
      %v288 = vor.u32 %v284, %v287
      %v289 = vrot.slane %v288, 4
      %v291 = vshll.u32 %v183, 16
      %v293 = vrot.slane %v291, 5
      %v294 = vsel %vm210, %v289, %v293
      %v296 = vshrl.u32 %v184, 16
      %v298 = vrot.slane %v296, 4
      %v299 = vshll.u32 %v184, 16
      %v301 = vrot.slane %v299, 5
      %v302 = vor.u32 %v298, %v301
      %v303 = vrot.slane %v302, 4
      %v305 = vshll.u32 %v185, 16
      %v307 = vrot.slane %v305, 5
      %v308 = vsel %vm210, %v303, %v307
      %v310 = vshrl.u32 %v186, 16
      %v312 = vrot.slane %v310, 4
      %v313 = vshll.u32 %v186, 16
      %v315 = vrot.slane %v313, 5
      %v316 = vor.u32 %v312, %v315
      %v317 = vrot.slane %v316, 4
      %v319 = vshll.u32 %v187, 16
      %v321 = vrot.slane %v319, 5
      %v322 = vsel %vm210, %v317, %v321
      %s323 = scalar_lea.vmem %s1, 64
      %v324 = vld [vmem:[%s323] sm:$0xf]
      %v325 = vld [vmem:[%s323 + $0x4] sm:$0xf]
      %v326 = vld [vmem:[%s323 + $0x8] sm:$0xf]
      %v327 = vld [vmem:[%s323 + $0xc] sm:$0xf]
      %v328 = vld [vmem:[%s323 + $0x10] sm:$0xf]
      %v329 = vld [vmem:[%s323 + $0x14] sm:$0xf]
      %v330 = vld [vmem:[%s323 + $0x18] sm:$0xf]
      %v331 = vld [vmem:[%s323 + $0x1c] sm:$0xf]
      %v332 = vld [vmem:[%s323 + $0x20] sm:$0xf]
      %v333 = vld [vmem:[%s323 + $0x24] sm:$0xf]
      %v334 = vld [vmem:[%s323 + $0x28] sm:$0xf]
      %v335 = vld [vmem:[%s323 + $0x2c] sm:$0xf]
      %v336 = vld [vmem:[%s323 + $0x30] sm:$0xf]
      %v337 = vld [vmem:[%s323 + $0x34] sm:$0xf]
      %v338 = vld [vmem:[%s323 + $0x38] sm:$0xf]
      %v339 = vld [vmem:[%s323 + $0x3c] sm:$0xf]
      %v340 = vunpack.c.l.b16 %v224
      %v341 = vunpack.c.l.b16 %v238
      %v342 = vunpack.c.l.b16 %v252
      %v343 = vunpack.c.l.b16 %v266
      %v344 = vunpack.c.l.b16 %v280
      %v345 = vunpack.c.l.b16 %v294
      %v346 = vunpack.c.l.b16 %v308
      %v347 = vunpack.c.l.b16 %v322
      %v348 = vpack.c.b16 %v341, %v340
      %v349 = vpack.c.b16 %v343, %v342
      %v350 = vpack.c.b16 %v345, %v344
      %v351 = vpack.c.b16 %v347, %v346
      %v372 = vunpack.c.l.b16 %v324
      %v373 = vunpack.c.l.b16 %v325
      %v374 = vunpack.c.l.b16 %v326
      %v375 = vunpack.c.l.b16 %v327
      %v376 = vunpack.c.l.b16 %v328
      %v377 = vunpack.c.l.b16 %v329
      %v378 = vunpack.c.l.b16 %v330
      %v379 = vunpack.c.l.b16 %v331
      %v380 = vunpack.c.l.b16 %v332
      %v381 = vunpack.c.l.b16 %v333
      %v382 = vunpack.c.l.b16 %v334
      %v383 = vunpack.c.l.b16 %v335
      %v384 = vunpack.c.l.b16 %v336
      %v385 = vunpack.c.l.b16 %v337
      %v386 = vunpack.c.l.b16 %v338
      %v387 = vunpack.c.l.b16 %v339
      %v388 = vpack.c.b16 %v373, %v372
      %v389 = vpack.c.b16 %v375, %v374
      %v390 = vpack.c.b16 %v377, %v376
      %v391 = vpack.c.b16 %v379, %v378
      %v392 = vpack.c.b16 %v381, %v380
      %v393 = vpack.c.b16 %v383, %v382
      %v394 = vpack.c.b16 %v385, %v384
      %v395 = vpack.c.b16 %v387, %v386
      %404 = vmatprep.subr.bf16.mxu0 0
      %405 = vmatpush1.bf16.msra.mxu0 %v388
      %406 = vmatprep.subr.bf16.mxu0 0
      %407 = vmatpush1.bf16.msra.mxu0 %v389
      %408 = vmatprep.subr.bf16.mxu0 0
      %409 = vmatpush1.bf16.msra.mxu0 %v390
      %410 = vmatprep.subr.bf16.mxu0 0
      %411 = vmatpush1.bf16.msra.mxu0 %v391
      %412 = vmatprep.subr.bf16.mxu0 0
      %413 = vmatpush1.bf16.msra.mxu0 %v392
      %414 = vmatprep.subr.bf16.mxu0 0
      %415 = vmatpush1.bf16.msra.mxu0 %v393
      %416 = vmatprep.subr.bf16.mxu0 0
      %417 = vmatpush1.bf16.msra.mxu0 %v394
      %418 = vmatprep.subr.bf16.mxu0 0
      %419 = vmatpush1.bf16.msra.mxu0 %v395
      %420 = vmatprep.subr.bf16.mxu0 0
      %421 = vmatpush1.bf16.msra.mxu0 0
      %422 = vmatprep.subr.bf16.mxu0 0
      %423 = vmatpush1.bf16.msra.mxu0 0
      %424 = vmatprep.subr.bf16.mxu0 0
      %425 = vmatpush1.bf16.msra.mxu0 0
      %426 = vmatprep.subr.bf16.mxu0 0
      %427 = vmatpush1.bf16.msra.mxu0 0
      %428 = vmatprep.subr.bf16.mxu0 0
      %429 = vmatpush1.bf16.msra.mxu0 0
      %430 = vmatprep.subr.bf16.mxu0 0
      %431 = vmatpush1.bf16.msra.mxu0 0
      %432 = vmatprep.subr.bf16.mxu0 0
      %433 = vmatpush1.bf16.msra.mxu0 0
      %434 = vmatprep.subr.bf16.mxu0 0
      %435 = vmatpush1.bf16.msra.mxu0 0
      %436 = vmatprep.mubr.bf16.mxu0 0
      %437 = vmatmul.mubr.bf16.gmra.mrb[0].mxu0 %v348
      %v438 = vpop.f32.mrb[0].mxu0
      %v439 = vadd.f32 0.0, %v438
      %v440 = vpop.f32.mrb[0].mxu0
      %v441 = vpop.f32.mrb[0].mxu0
      %v442 = vadd.f32 0.0, %v441
      %v443 = vpop.f32.mrb[0].mxu0
      %444 = vmatprep.mubr.bf16.mxu0 0
      %445 = vmatmul.mubr.bf16.gmra.mrb[0].mxu0 %v349
      %v446 = vpop.f32.mrb[0].mxu0
      %v447 = vadd.f32 0.0, %v446
      %v448 = vpop.f32.mrb[0].mxu0
      %v449 = vpop.f32.mrb[0].mxu0
      %v450 = vadd.f32 0.0, %v449
      %v451 = vpop.f32.mrb[0].mxu0
      %452 = vmatprep.mubr.bf16.mxu0 0
      %453 = vmatmul.mubr.bf16.gmra.mrb[0].mxu0 %v350
      %v454 = vpop.f32.mrb[0].mxu0
      %v455 = vadd.f32 0.0, %v454
      %v456 = vpop.f32.mrb[0].mxu0
      %v457 = vpop.f32.mrb[0].mxu0
      %v458 = vadd.f32 0.0, %v457
      %v459 = vpop.f32.mrb[0].mxu0
      %460 = vmatprep.mubr.bf16.mxu0 0
      %461 = vmatmul.mubr.bf16.gmra.mrb[0].mxu0 %v351
      %v462 = vpop.f32.mrb[0].mxu0
      %v463 = vadd.f32 0.0, %v462
      %v464 = vpop.f32.mrb[0].mxu0
      %v465 = vpop.f32.mrb[0].mxu0
      %v466 = vadd.f32 0.0, %v465
      %v467 = vpop.f32.mrb[0].mxu0
      %468 = vdwg.mxu0
      %v477 = vunpack.c.l.b16 %v172
      %v478 = vunpack.c.l.b16 %v174
      %v479 = vunpack.c.l.b16 %v176
      %v480 = vunpack.c.l.b16 %v178
      %v481 = vunpack.c.l.b16 %v180
      %v482 = vunpack.c.l.b16 %v182
      %v483 = vunpack.c.l.b16 %v184
      %v484 = vunpack.c.l.b16 %v186
      %v485 = vpack.c.b16 %v478, %v477
      %v486 = vpack.c.b16 %v480, %v479
      %v487 = vpack.c.b16 %v482, %v481
      %v488 = vpack.c.b16 %v484, %v483
      %v509 = vunpack.c.l.b16 %v192
      %v510 = vunpack.c.l.b16 %v193
      %v511 = vunpack.c.l.b16 %v194
      %v512 = vunpack.c.l.b16 %v195
      %v513 = vunpack.c.l.b16 %v196
      %v514 = vunpack.c.l.b16 %v197
      %v515 = vunpack.c.l.b16 %v198
      %v516 = vunpack.c.l.b16 %v199
      %v517 = vunpack.c.l.b16 %v200
      %v518 = vunpack.c.l.b16 %v201
      %v519 = vunpack.c.l.b16 %v202
      %v520 = vunpack.c.l.b16 %v203
      %v521 = vunpack.c.l.b16 %v204
      %v522 = vunpack.c.l.b16 %v205
      %v523 = vunpack.c.l.b16 %v206
      %v524 = vunpack.c.l.b16 %v207
      %v525 = vpack.c.b16 %v510, %v509
      %v526 = vpack.c.b16 %v512, %v511
      %v527 = vpack.c.b16 %v514, %v513
      %v528 = vpack.c.b16 %v516, %v515
      %v529 = vpack.c.b16 %v518, %v517
      %v530 = vpack.c.b16 %v520, %v519
      %v531 = vpack.c.b16 %v522, %v521
      %v532 = vpack.c.b16 %v524, %v523
      %541 = vmatprep.subr.bf16.mxu0 0
      %542 = vmatpush1.bf16.msra.mxu0 %v525
      %543 = vmatprep.subr.bf16.mxu0 0
      %544 = vmatpush1.bf16.msra.mxu0 %v526
      %545 = vmatprep.subr.bf16.mxu0 0
      %546 = vmatpush1.bf16.msra.mxu0 %v527
      %547 = vmatprep.subr.bf16.mxu0 0
      %548 = vmatpush1.bf16.msra.mxu0 %v528
      %549 = vmatprep.subr.bf16.mxu0 0
      %550 = vmatpush1.bf16.msra.mxu0 %v529
      %551 = vmatprep.subr.bf16.mxu0 0
      %552 = vmatpush1.bf16.msra.mxu0 %v530
      %553 = vmatprep.subr.bf16.mxu0 0
      %554 = vmatpush1.bf16.msra.mxu0 %v531
      %555 = vmatprep.subr.bf16.mxu0 0
      %556 = vmatpush1.bf16.msra.mxu0 %v532
      %557 = vmatprep.subr.bf16.mxu0 0
      %558 = vmatpush1.bf16.msra.mxu0 0
      %559 = vmatprep.subr.bf16.mxu0 0
      %560 = vmatpush1.bf16.msra.mxu0 0
      %561 = vmatprep.subr.bf16.mxu0 0
      %562 = vmatpush1.bf16.msra.mxu0 0
      %563 = vmatprep.subr.bf16.mxu0 0
      %564 = vmatpush1.bf16.msra.mxu0 0
      %565 = vmatprep.subr.bf16.mxu0 0
      %566 = vmatpush1.bf16.msra.mxu0 0
      %567 = vmatprep.subr.bf16.mxu0 0
      %568 = vmatpush1.bf16.msra.mxu0 0
      %569 = vmatprep.subr.bf16.mxu0 0
      %570 = vmatpush1.bf16.msra.mxu0 0
      %571 = vmatprep.subr.bf16.mxu0 0
      %572 = vmatpush1.bf16.msra.mxu0 0
      %573 = vmatprep.mubr.bf16.mxu0 0
      %574 = vmatmul.mubr.bf16.gmra.mrb[0].mxu0 %v485
      %v575 = vpop.f32.mrb[0].mxu0
      %v576 = vadd.f32 %v439, %v575
      %v577 = vpop.f32.mrb[0].mxu0
      %v578 = vpop.f32.mrb[0].mxu0
      %v579 = vadd.f32 %v442, %v578
      %v580 = vpop.f32.mrb[0].mxu0
      %581 = vmatprep.mubr.bf16.mxu0 0
      %582 = vmatmul.mubr.bf16.gmra.mrb[0].mxu0 %v486
      %v583 = vpop.f32.mrb[0].mxu0
      %v584 = vadd.f32 %v447, %v583
      %v585 = vpop.f32.mrb[0].mxu0
      %v586 = vpop.f32.mrb[0].mxu0
      %v587 = vadd.f32 %v450, %v586
      %v588 = vpop.f32.mrb[0].mxu0
      %589 = vmatprep.mubr.bf16.mxu0 0
      %590 = vmatmul.mubr.bf16.gmra.mrb[0].mxu0 %v487
      %v591 = vpop.f32.mrb[0].mxu0
      %v592 = vadd.f32 %v455, %v591
      %v593 = vpop.f32.mrb[0].mxu0
      %v594 = vpop.f32.mrb[0].mxu0
      %v595 = vadd.f32 %v458, %v594
      %v596 = vpop.f32.mrb[0].mxu0
      %597 = vmatprep.mubr.bf16.mxu0 0
      %598 = vmatmul.mubr.bf16.gmra.mrb[0].mxu0 %v488
      %v599 = vpop.f32.mrb[0].mxu0
      %v600 = vadd.f32 %v463, %v599
      %v601 = vpop.f32.mrb[0].mxu0
      %v602 = vpop.f32.mrb[0].mxu0
      %v603 = vadd.f32 %v466, %v602
      %v604 = vpop.f32.mrb[0].mxu0
      %605 = vdwg.mxu0
      %vm614 = vcmask 1042432
      %vm615 = vcmask 1046532
      %vm616 = vmor %vm614, %vm615
      %v617 = vrot.slane %v172, 5
      %v618 = vrot.slane %v617, 4
      %v619 = vrot.slane %v173, 5
      %v620 = vsel %vm616, %v618, %v619
      %v621 = vrot.slane %v174, 5
      %v622 = vrot.slane %v621, 4
      %v623 = vrot.slane %v175, 5
      %v624 = vsel %vm616, %v622, %v623
      %v625 = vrot.slane %v176, 5
      %v626 = vrot.slane %v625, 4
      %v627 = vrot.slane %v177, 5
      %v628 = vsel %vm616, %v626, %v627
      %v629 = vrot.slane %v178, 5
      %v630 = vrot.slane %v629, 4
      %v631 = vrot.slane %v179, 5
      %v632 = vsel %vm616, %v630, %v631
      %v633 = vrot.slane %v180, 5
      %v634 = vrot.slane %v633, 4
      %v635 = vrot.slane %v181, 5
      %v636 = vsel %vm616, %v634, %v635
      %v637 = vrot.slane %v182, 5
      %v638 = vrot.slane %v637, 4
      %v639 = vrot.slane %v183, 5
      %v640 = vsel %vm616, %v638, %v639
      %v641 = vrot.slane %v184, 5
      %v642 = vrot.slane %v641, 4
      %v643 = vrot.slane %v185, 5
      %v644 = vsel %vm616, %v642, %v643
      %v645 = vrot.slane %v186, 5
      %v646 = vrot.slane %v645, 4
      %v647 = vrot.slane %v187, 5
      %v648 = vsel %vm616, %v646, %v647
      %s649 = scalar_lea.vmem %s1, 128
      %v650 = vld [vmem:[%s649] sm:$0xf]
      %v651 = vld [vmem:[%s649 + $0x4] sm:$0xf]
      %v652 = vld [vmem:[%s649 + $0x8] sm:$0xf]
      %v653 = vld [vmem:[%s649 + $0xc] sm:$0xf]
      %v654 = vld [vmem:[%s649 + $0x10] sm:$0xf]
      %v655 = vld [vmem:[%s649 + $0x14] sm:$0xf]
      %v656 = vld [vmem:[%s649 + $0x18] sm:$0xf]
      %v657 = vld [vmem:[%s649 + $0x1c] sm:$0xf]
      %v658 = vld [vmem:[%s649 + $0x20] sm:$0xf]
      %v659 = vld [vmem:[%s649 + $0x24] sm:$0xf]
      %v660 = vld [vmem:[%s649 + $0x28] sm:$0xf]
      %v661 = vld [vmem:[%s649 + $0x2c] sm:$0xf]
      %v662 = vld [vmem:[%s649 + $0x30] sm:$0xf]
      %v663 = vld [vmem:[%s649 + $0x34] sm:$0xf]
      %v664 = vld [vmem:[%s649 + $0x38] sm:$0xf]
      %v665 = vld [vmem:[%s649 + $0x3c] sm:$0xf]
      %v666 = vunpack.c.l.b16 %v620
      %v667 = vunpack.c.l.b16 %v624
      %v668 = vunpack.c.l.b16 %v628
      %v669 = vunpack.c.l.b16 %v632
      %v670 = vunpack.c.l.b16 %v636
      %v671 = vunpack.c.l.b16 %v640
      %v672 = vunpack.c.l.b16 %v644
      %v673 = vunpack.c.l.b16 %v648
      %v674 = vpack.c.b16 %v667, %v666
      %v675 = vpack.c.b16 %v669, %v668
      %v676 = vpack.c.b16 %v671, %v670
      %v677 = vpack.c.b16 %v673, %v672
      %v698 = vunpack.c.l.b16 %v650
      %v699 = vunpack.c.l.b16 %v651
      %v700 = vunpack.c.l.b16 %v652
      %v701 = vunpack.c.l.b16 %v653
      %v702 = vunpack.c.l.b16 %v654
      %v703 = vunpack.c.l.b16 %v655
      %v704 = vunpack.c.l.b16 %v656
      %v705 = vunpack.c.l.b16 %v657
      %v706 = vunpack.c.l.b16 %v658
      %v707 = vunpack.c.l.b16 %v659
      %v708 = vunpack.c.l.b16 %v660
      %v709 = vunpack.c.l.b16 %v661
      %v710 = vunpack.c.l.b16 %v662
      %v711 = vunpack.c.l.b16 %v663
      %v712 = vunpack.c.l.b16 %v664
      %v713 = vunpack.c.l.b16 %v665
      %v714 = vpack.c.b16 %v699, %v698
      %v715 = vpack.c.b16 %v701, %v700
      %v716 = vpack.c.b16 %v703, %v702
      %v717 = vpack.c.b16 %v705, %v704
      %v718 = vpack.c.b16 %v707, %v706
      %v719 = vpack.c.b16 %v709, %v708
      %v720 = vpack.c.b16 %v711, %v710
      %v721 = vpack.c.b16 %v713, %v712
      %730 = vmatprep.subr.bf16.mxu0 0
      %731 = vmatpush1.bf16.msra.mxu0 %v714
      %732 = vmatprep.subr.bf16.mxu0 0
      %733 = vmatpush1.bf16.msra.mxu0 %v715
      %734 = vmatprep.subr.bf16.mxu0 0
      %735 = vmatpush1.bf16.msra.mxu0 %v716
      %736 = vmatprep.subr.bf16.mxu0 0
      %737 = vmatpush1.bf16.msra.mxu0 %v717
      %738 = vmatprep.subr.bf16.mxu0 0
      %739 = vmatpush1.bf16.msra.mxu0 %v718
      %740 = vmatprep.subr.bf16.mxu0 0
      %741 = vmatpush1.bf16.msra.mxu0 %v719
      %742 = vmatprep.subr.bf16.mxu0 0
      %743 = vmatpush1.bf16.msra.mxu0 %v720
      %744 = vmatprep.subr.bf16.mxu0 0
      %745 = vmatpush1.bf16.msra.mxu0 %v721
      %746 = vmatprep.subr.bf16.mxu0 0
      %747 = vmatpush1.bf16.msra.mxu0 0
      %748 = vmatprep.subr.bf16.mxu0 0
      %749 = vmatpush1.bf16.msra.mxu0 0
      %750 = vmatprep.subr.bf16.mxu0 0
      %751 = vmatpush1.bf16.msra.mxu0 0
      %752 = vmatprep.subr.bf16.mxu0 0
      %753 = vmatpush1.bf16.msra.mxu0 0
      %754 = vmatprep.subr.bf16.mxu0 0
      %755 = vmatpush1.bf16.msra.mxu0 0
      %756 = vmatprep.subr.bf16.mxu0 0
      %757 = vmatpush1.bf16.msra.mxu0 0
      %758 = vmatprep.subr.bf16.mxu0 0
      %759 = vmatpush1.bf16.msra.mxu0 0
      %760 = vmatprep.subr.bf16.mxu0 0
      %761 = vmatpush1.bf16.msra.mxu0 0
      %762 = vmatprep.mubr.bf16.mxu0 0
      %763 = vmatmul.mubr.bf16.gmra.mrb[0].mxu0 %v674
      %v764 = vpop.f32.mrb[0].mxu0
      %v765 = vadd.f32 0.0, %v764
      %v766 = vpop.f32.mrb[0].mxu0
      %v767 = vpop.f32.mrb[0].mxu0
      %v768 = vadd.f32 0.0, %v767
      %v769 = vpop.f32.mrb[0].mxu0
      %770 = vmatprep.mubr.bf16.mxu0 0
      %771 = vmatmul.mubr.bf16.gmra.mrb[0].mxu0 %v675
      %v772 = vpop.f32.mrb[0].mxu0
      %v773 = vadd.f32 0.0, %v772
      %v774 = vpop.f32.mrb[0].mxu0
      %v775 = vpop.f32.mrb[0].mxu0
      %v776 = vadd.f32 0.0, %v775
      %v777 = vpop.f32.mrb[0].mxu0
      %778 = vmatprep.mubr.bf16.mxu0 0
      %779 = vmatmul.mubr.bf16.gmra.mrb[0].mxu0 %v676
      %v780 = vpop.f32.mrb[0].mxu0
      %v781 = vadd.f32 0.0, %v780
      %v782 = vpop.f32.mrb[0].mxu0
      %v783 = vpop.f32.mrb[0].mxu0
      %v784 = vadd.f32 0.0, %v783
      %v785 = vpop.f32.mrb[0].mxu0
      %786 = vmatprep.mubr.bf16.mxu0 0
      %787 = vmatmul.mubr.bf16.gmra.mrb[0].mxu0 %v677
      %v788 = vpop.f32.mrb[0].mxu0
      %v789 = vadd.f32 0.0, %v788
      %v790 = vpop.f32.mrb[0].mxu0
      %v791 = vpop.f32.mrb[0].mxu0
      %v792 = vadd.f32 0.0, %v791
      %v793 = vpop.f32.mrb[0].mxu0
      %794 = vdwg.mxu0
      %v795 = vadd.f32 %v576, %v765
      %v796 = vadd.f32 %v579, %v768
      %v797 = vadd.f32 %v584, %v773
      %v798 = vadd.f32 %v587, %v776
      %v799 = vadd.f32 %v592, %v781
      %v800 = vadd.f32 %v595, %v784
      %v801 = vadd.f32 %v600, %v789
      %v802 = vadd.f32 %v603, %v792
      %s803 = scalar_lea.vmem %s1, 192
      %v804 = vld [vmem:[%s803] sm:$0xf]
      %v805 = vld [vmem:[%s803 + $0x4] sm:$0xf]
      %v806 = vld [vmem:[%s803 + $0x8] sm:$0xf]
      %v807 = vld [vmem:[%s803 + $0xc] sm:$0xf]
      %v808 = vld [vmem:[%s803 + $0x10] sm:$0xf]
      %v809 = vld [vmem:[%s803 + $0x14] sm:$0xf]
      %v810 = vld [vmem:[%s803 + $0x18] sm:$0xf]
      %v811 = vld [vmem:[%s803 + $0x1c] sm:$0xf]
      %v812 = vld [vmem:[%s803 + $0x20] sm:$0xf]
      %v813 = vld [vmem:[%s803 + $0x24] sm:$0xf]
      %v814 = vld [vmem:[%s803 + $0x28] sm:$0xf]
      %v815 = vld [vmem:[%s803 + $0x2c] sm:$0xf]
      %v816 = vld [vmem:[%s803 + $0x30] sm:$0xf]
      %v817 = vld [vmem:[%s803 + $0x34] sm:$0xf]
      %v818 = vld [vmem:[%s803 + $0x38] sm:$0xf]
      %v819 = vld [vmem:[%s803 + $0x3c] sm:$0xf]
      %v821 = vunpack.c.l.b16 %v188
      %v822 = vpack.c.b16 %v479, %v478
      %v823 = vpack.c.b16 %v481, %v480
      %v824 = vpack.c.b16 %v483, %v482
      %v825 = vpack.c.b16 %v821, %v484
      %v846 = vunpack.c.l.b16 %v804
      %v847 = vunpack.c.l.b16 %v805
      %v848 = vunpack.c.l.b16 %v806
      %v849 = vunpack.c.l.b16 %v807
      %v850 = vunpack.c.l.b16 %v808
      %v851 = vunpack.c.l.b16 %v809
      %v852 = vunpack.c.l.b16 %v810
      %v853 = vunpack.c.l.b16 %v811
      %v854 = vunpack.c.l.b16 %v812
      %v855 = vunpack.c.l.b16 %v813
      %v856 = vunpack.c.l.b16 %v814
      %v857 = vunpack.c.l.b16 %v815
      %v858 = vunpack.c.l.b16 %v816
      %v859 = vunpack.c.l.b16 %v817
      %v860 = vunpack.c.l.b16 %v818
      %v861 = vunpack.c.l.b16 %v819
      %v862 = vpack.c.b16 %v847, %v846
      %v863 = vpack.c.b16 %v849, %v848
      %v864 = vpack.c.b16 %v851, %v850
      %v865 = vpack.c.b16 %v853, %v852
      %v866 = vpack.c.b16 %v855, %v854
      %v867 = vpack.c.b16 %v857, %v856
      %v868 = vpack.c.b16 %v859, %v858
      %v869 = vpack.c.b16 %v861, %v860
      %878 = vmatprep.subr.bf16.mxu0 0
      %879 = vmatpush1.bf16.msra.mxu0 %v862
      %880 = vmatprep.subr.bf16.mxu0 0
      %881 = vmatpush1.bf16.msra.mxu0 %v863
      %882 = vmatprep.subr.bf16.mxu0 0
      %883 = vmatpush1.bf16.msra.mxu0 %v864
      %884 = vmatprep.subr.bf16.mxu0 0
      %885 = vmatpush1.bf16.msra.mxu0 %v865
      %886 = vmatprep.subr.bf16.mxu0 0
      %887 = vmatpush1.bf16.msra.mxu0 %v866
      %888 = vmatprep.subr.bf16.mxu0 0
      %889 = vmatpush1.bf16.msra.mxu0 %v867
      %890 = vmatprep.subr.bf16.mxu0 0
      %891 = vmatpush1.bf16.msra.mxu0 %v868
      %892 = vmatprep.subr.bf16.mxu0 0
      %893 = vmatpush1.bf16.msra.mxu0 %v869
      %894 = vmatprep.subr.bf16.mxu0 0
      %895 = vmatpush1.bf16.msra.mxu0 0
      %896 = vmatprep.subr.bf16.mxu0 0
      %897 = vmatpush1.bf16.msra.mxu0 0
      %898 = vmatprep.subr.bf16.mxu0 0
      %899 = vmatpush1.bf16.msra.mxu0 0
      %900 = vmatprep.subr.bf16.mxu0 0
      %901 = vmatpush1.bf16.msra.mxu0 0
      %902 = vmatprep.subr.bf16.mxu0 0
      %903 = vmatpush1.bf16.msra.mxu0 0
      %904 = vmatprep.subr.bf16.mxu0 0
      %905 = vmatpush1.bf16.msra.mxu0 0
      %906 = vmatprep.subr.bf16.mxu0 0
      %907 = vmatpush1.bf16.msra.mxu0 0
      %908 = vmatprep.subr.bf16.mxu0 0
      %909 = vmatpush1.bf16.msra.mxu0 0
      %910 = vmatprep.mubr.bf16.mxu0 0
      %911 = vmatmul.mubr.bf16.gmra.mrb[0].mxu0 %v822
      %v912 = vpop.f32.mrb[0].mxu0
      %v913 = vadd.f32 0.0, %v912
      %v914 = vpop.f32.mrb[0].mxu0
      %v915 = vpop.f32.mrb[0].mxu0
      %v916 = vadd.f32 0.0, %v915
      %v917 = vpop.f32.mrb[0].mxu0
      %918 = vmatprep.mubr.bf16.mxu0 0
      %919 = vmatmul.mubr.bf16.gmra.mrb[0].mxu0 %v823
      %v920 = vpop.f32.mrb[0].mxu0
      %v921 = vadd.f32 0.0, %v920
      %v922 = vpop.f32.mrb[0].mxu0
      %v923 = vpop.f32.mrb[0].mxu0
      %v924 = vadd.f32 0.0, %v923
      %v925 = vpop.f32.mrb[0].mxu0
      %926 = vmatprep.mubr.bf16.mxu0 0
      %927 = vmatmul.mubr.bf16.gmra.mrb[0].mxu0 %v824
      %v928 = vpop.f32.mrb[0].mxu0
      %v929 = vadd.f32 0.0, %v928
      %v930 = vpop.f32.mrb[0].mxu0
      %v931 = vpop.f32.mrb[0].mxu0
      %v932 = vadd.f32 0.0, %v931
      %v933 = vpop.f32.mrb[0].mxu0
      %934 = vmatprep.mubr.bf16.mxu0 0
      %935 = vmatmul.mubr.bf16.gmra.mrb[0].mxu0 %v825
      %v936 = vpop.f32.mrb[0].mxu0
      %v937 = vadd.f32 0.0, %v936
      %v938 = vpop.f32.mrb[0].mxu0
      %v939 = vpop.f32.mrb[0].mxu0
      %v940 = vadd.f32 0.0, %v939
      %v941 = vpop.f32.mrb[0].mxu0
      %942 = vdwg.mxu0
      %v943 = vadd.f32 %v795, %v913
      %v944 = vadd.f32 %v796, %v916
      %v945 = vadd.f32 %v797, %v921
      %v946 = vadd.f32 %v798, %v924
      %v947 = vadd.f32 %v799, %v929
      %v948 = vadd.f32 %v800, %v932
      %v949 = vadd.f32 %v801, %v937
      %v950 = vadd.f32 %v802, %v940
      %v952 = vshrl.u32 %v188, 16
      %v954 = vrot.slane %v952, 4
      %v955 = vshll.u32 %v188, 16
      %v957 = vrot.slane %v955, 5
      %v958 = vor.u32 %v954, %v957
      %v959 = vrot.slane %v958, 4
      %v961 = vshll.u32 %v189, 16
      %v963 = vrot.slane %v961, 5
      %v964 = vsel %vm210, %v959, %v963
      %s965 = scalar_lea.vmem %s1, 256
      %v966 = vld [vmem:[%s965] sm:$0xf]
      %v967 = vld [vmem:[%s965 + $0x4] sm:$0xf]
      %v968 = vld [vmem:[%s965 + $0x8] sm:$0xf]
      %v969 = vld [vmem:[%s965 + $0xc] sm:$0xf]
      %v970 = vld [vmem:[%s965 + $0x10] sm:$0xf]
      %v971 = vld [vmem:[%s965 + $0x14] sm:$0xf]
      %v972 = vld [vmem:[%s965 + $0x18] sm:$0xf]
      %v973 = vld [vmem:[%s965 + $0x1c] sm:$0xf]
      %v974 = vld [vmem:[%s965 + $0x20] sm:$0xf]
      %v975 = vld [vmem:[%s965 + $0x24] sm:$0xf]
      %v976 = vld [vmem:[%s965 + $0x28] sm:$0xf]
      %v977 = vld [vmem:[%s965 + $0x2c] sm:$0xf]
      %v978 = vld [vmem:[%s965 + $0x30] sm:$0xf]
      %v979 = vld [vmem:[%s965 + $0x34] sm:$0xf]
      %v980 = vld [vmem:[%s965 + $0x38] sm:$0xf]
      %v981 = vld [vmem:[%s965 + $0x3c] sm:$0xf]
      %v982 = vunpack.c.l.b16 %v964
      %v983 = vpack.c.b16 %v342, %v341
      %v984 = vpack.c.b16 %v344, %v343
      %v985 = vpack.c.b16 %v346, %v345
      %v986 = vpack.c.b16 %v982, %v347
      %v1007 = vunpack.c.l.b16 %v966
      %v1008 = vunpack.c.l.b16 %v967
      %v1009 = vunpack.c.l.b16 %v968
      %v1010 = vunpack.c.l.b16 %v969
      %v1011 = vunpack.c.l.b16 %v970
      %v1012 = vunpack.c.l.b16 %v971
      %v1013 = vunpack.c.l.b16 %v972
      %v1014 = vunpack.c.l.b16 %v973
      %v1015 = vunpack.c.l.b16 %v974
      %v1016 = vunpack.c.l.b16 %v975
      %v1017 = vunpack.c.l.b16 %v976
      %v1018 = vunpack.c.l.b16 %v977
      %v1019 = vunpack.c.l.b16 %v978
      %v1020 = vunpack.c.l.b16 %v979
      %v1021 = vunpack.c.l.b16 %v980
      %v1022 = vunpack.c.l.b16 %v981
      %v1023 = vpack.c.b16 %v1008, %v1007
      %v1024 = vpack.c.b16 %v1010, %v1009
      %v1025 = vpack.c.b16 %v1012, %v1011
      %v1026 = vpack.c.b16 %v1014, %v1013
      %v1027 = vpack.c.b16 %v1016, %v1015
      %v1028 = vpack.c.b16 %v1018, %v1017
      %v1029 = vpack.c.b16 %v1020, %v1019
      %v1030 = vpack.c.b16 %v1022, %v1021
      %1039 = vmatprep.subr.bf16.mxu0 0
      %1040 = vmatpush1.bf16.msra.mxu0 %v1023
      %1041 = vmatprep.subr.bf16.mxu0 0
      %1042 = vmatpush1.bf16.msra.mxu0 %v1024
      %1043 = vmatprep.subr.bf16.mxu0 0
      %1044 = vmatpush1.bf16.msra.mxu0 %v1025
      %1045 = vmatprep.subr.bf16.mxu0 0
      %1046 = vmatpush1.bf16.msra.mxu0 %v1026
      %1047 = vmatprep.subr.bf16.mxu0 0
      %1048 = vmatpush1.bf16.msra.mxu0 %v1027
      %1049 = vmatprep.subr.bf16.mxu0 0
      %1050 = vmatpush1.bf16.msra.mxu0 %v1028
      %1051 = vmatprep.subr.bf16.mxu0 0
      %1052 = vmatpush1.bf16.msra.mxu0 %v1029
      %1053 = vmatprep.subr.bf16.mxu0 0
      %1054 = vmatpush1.bf16.msra.mxu0 %v1030
      %1055 = vmatprep.subr.bf16.mxu0 0
      %1056 = vmatpush1.bf16.msra.mxu0 0
      %1057 = vmatprep.subr.bf16.mxu0 0
      %1058 = vmatpush1.bf16.msra.mxu0 0
      %1059 = vmatprep.subr.bf16.mxu0 0
      %1060 = vmatpush1.bf16.msra.mxu0 0
      %1061 = vmatprep.subr.bf16.mxu0 0
      %1062 = vmatpush1.bf16.msra.mxu0 0
      %1063 = vmatprep.subr.bf16.mxu0 0
      %1064 = vmatpush1.bf16.msra.mxu0 0
      %1065 = vmatprep.subr.bf16.mxu0 0
      %1066 = vmatpush1.bf16.msra.mxu0 0
      %1067 = vmatprep.subr.bf16.mxu0 0
      %1068 = vmatpush1.bf16.msra.mxu0 0
      %1069 = vmatprep.subr.bf16.mxu0 0
      %1070 = vmatpush1.bf16.msra.mxu0 0
      %1071 = vmatprep.mubr.bf16.mxu0 0
      %1072 = vmatmul.mubr.bf16.gmra.mrb[0].mxu0 %v983
      %v1073 = vpop.f32.mrb[0].mxu0
      %v1074 = vadd.f32 0.0, %v1073
      %v1075 = vpop.f32.mrb[0].mxu0
      %v1076 = vpop.f32.mrb[0].mxu0
      %v1077 = vadd.f32 0.0, %v1076
      %v1078 = vpop.f32.mrb[0].mxu0
      %1079 = vmatprep.mubr.bf16.mxu0 0
      %1080 = vmatmul.mubr.bf16.gmra.mrb[0].mxu0 %v984
      %v1081 = vpop.f32.mrb[0].mxu0
      %v1082 = vadd.f32 0.0, %v1081
      %v1083 = vpop.f32.mrb[0].mxu0
      %v1084 = vpop.f32.mrb[0].mxu0
      %v1085 = vadd.f32 0.0, %v1084
      %v1086 = vpop.f32.mrb[0].mxu0
      %1087 = vmatprep.mubr.bf16.mxu0 0
      %1088 = vmatmul.mubr.bf16.gmra.mrb[0].mxu0 %v985
      %v1089 = vpop.f32.mrb[0].mxu0
      %v1090 = vadd.f32 0.0, %v1089
      %v1091 = vpop.f32.mrb[0].mxu0
      %v1092 = vpop.f32.mrb[0].mxu0
      %v1093 = vadd.f32 0.0, %v1092
      %v1094 = vpop.f32.mrb[0].mxu0
      %1095 = vmatprep.mubr.bf16.mxu0 0
      %1096 = vmatmul.mubr.bf16.gmra.mrb[0].mxu0 %v986
      %v1097 = vpop.f32.mrb[0].mxu0
      %v1098 = vadd.f32 0.0, %v1097
      %v1099 = vpop.f32.mrb[0].mxu0
      %v1100 = vpop.f32.mrb[0].mxu0
      %v1101 = vadd.f32 0.0, %v1100
      %v1102 = vpop.f32.mrb[0].mxu0
      %1103 = vdwg.mxu0
      %v1104 = vadd.f32 %v943, %v1074
      %v1105 = vadd.f32 %v944, %v1077
      %v1106 = vadd.f32 %v945, %v1082
      %v1107 = vadd.f32 %v946, %v1085
      %v1108 = vadd.f32 %v947, %v1090
      %v1109 = vadd.f32 %v948, %v1093
      %v1110 = vadd.f32 %v949, %v1098
      %v1111 = vadd.f32 %v950, %v1101
      %v1113 = vrot.slane %v188, 5
      %v1114 = vrot.slane %v1113, 4
      %v1115 = vrot.slane %v189, 5
      %v1116 = vsel %vm616, %v1114, %v1115
      %s1117 = scalar_lea.vmem %s1, 320
      %v1118 = vld [vmem:[%s1117] sm:$0xf]
      %v1119 = vld [vmem:[%s1117 + $0x4] sm:$0xf]
      %v1120 = vld [vmem:[%s1117 + $0x8] sm:$0xf]
      %v1121 = vld [vmem:[%s1117 + $0xc] sm:$0xf]
      %v1122 = vld [vmem:[%s1117 + $0x10] sm:$0xf]
      %v1123 = vld [vmem:[%s1117 + $0x14] sm:$0xf]
      %v1124 = vld [vmem:[%s1117 + $0x18] sm:$0xf]
      %v1125 = vld [vmem:[%s1117 + $0x1c] sm:$0xf]
      %v1126 = vld [vmem:[%s1117 + $0x20] sm:$0xf]
      %v1127 = vld [vmem:[%s1117 + $0x24] sm:$0xf]
      %v1128 = vld [vmem:[%s1117 + $0x28] sm:$0xf]
      %v1129 = vld [vmem:[%s1117 + $0x2c] sm:$0xf]
      %v1130 = vld [vmem:[%s1117 + $0x30] sm:$0xf]
      %v1131 = vld [vmem:[%s1117 + $0x34] sm:$0xf]
      %v1132 = vld [vmem:[%s1117 + $0x38] sm:$0xf]
      %v1133 = vld [vmem:[%s1117 + $0x3c] sm:$0xf]
      %v1134 = vunpack.c.l.b16 %v1116
      %v1135 = vpack.c.b16 %v668, %v667
      %v1136 = vpack.c.b16 %v670, %v669
      %v1137 = vpack.c.b16 %v672, %v671
      %v1138 = vpack.c.b16 %v1134, %v673
      %v1159 = vunpack.c.l.b16 %v1118
      %v1160 = vunpack.c.l.b16 %v1119
      %v1161 = vunpack.c.l.b16 %v1120
      %v1162 = vunpack.c.l.b16 %v1121
      %v1163 = vunpack.c.l.b16 %v1122
      %v1164 = vunpack.c.l.b16 %v1123
      %v1165 = vunpack.c.l.b16 %v1124
      %v1166 = vunpack.c.l.b16 %v1125
      %v1167 = vunpack.c.l.b16 %v1126
      %v1168 = vunpack.c.l.b16 %v1127
      %v1169 = vunpack.c.l.b16 %v1128
      %v1170 = vunpack.c.l.b16 %v1129
      %v1171 = vunpack.c.l.b16 %v1130
      %v1172 = vunpack.c.l.b16 %v1131
      %v1173 = vunpack.c.l.b16 %v1132
      %v1174 = vunpack.c.l.b16 %v1133
      %v1175 = vpack.c.b16 %v1160, %v1159
      %v1176 = vpack.c.b16 %v1162, %v1161
      %v1177 = vpack.c.b16 %v1164, %v1163
      %v1178 = vpack.c.b16 %v1166, %v1165
      %v1179 = vpack.c.b16 %v1168, %v1167
      %v1180 = vpack.c.b16 %v1170, %v1169
      %v1181 = vpack.c.b16 %v1172, %v1171
      %v1182 = vpack.c.b16 %v1174, %v1173
      %1191 = vmatprep.subr.bf16.mxu0 0
      %1192 = vmatpush1.bf16.msra.mxu0 %v1175
      %1193 = vmatprep.subr.bf16.mxu0 0
      %1194 = vmatpush1.bf16.msra.mxu0 %v1176
      %1195 = vmatprep.subr.bf16.mxu0 0
      %1196 = vmatpush1.bf16.msra.mxu0 %v1177
      %1197 = vmatprep.subr.bf16.mxu0 0
      %1198 = vmatpush1.bf16.msra.mxu0 %v1178
      %1199 = vmatprep.subr.bf16.mxu0 0
      %1200 = vmatpush1.bf16.msra.mxu0 %v1179
      %1201 = vmatprep.subr.bf16.mxu0 0
      %1202 = vmatpush1.bf16.msra.mxu0 %v1180
      %1203 = vmatprep.subr.bf16.mxu0 0
      %1204 = vmatpush1.bf16.msra.mxu0 %v1181
      %1205 = vmatprep.subr.bf16.mxu0 0
      %1206 = vmatpush1.bf16.msra.mxu0 %v1182
      %1207 = vmatprep.subr.bf16.mxu0 0
      %1208 = vmatpush1.bf16.msra.mxu0 0
      %1209 = vmatprep.subr.bf16.mxu0 0
      %1210 = vmatpush1.bf16.msra.mxu0 0
      %1211 = vmatprep.subr.bf16.mxu0 0
      %1212 = vmatpush1.bf16.msra.mxu0 0
      %1213 = vmatprep.subr.bf16.mxu0 0
      %1214 = vmatpush1.bf16.msra.mxu0 0
      %1215 = vmatprep.subr.bf16.mxu0 0
      %1216 = vmatpush1.bf16.msra.mxu0 0
      %1217 = vmatprep.subr.bf16.mxu0 0
      %1218 = vmatpush1.bf16.msra.mxu0 0
      %1219 = vmatprep.subr.bf16.mxu0 0
      %1220 = vmatpush1.bf16.msra.mxu0 0
      %1221 = vmatprep.subr.bf16.mxu0 0
      %1222 = vmatpush1.bf16.msra.mxu0 0
      %1223 = vmatprep.mubr.bf16.mxu0 0
      %1224 = vmatmul.mubr.bf16.gmra.mrb[0].mxu0 %v1135
      %v1225 = vpop.f32.mrb[0].mxu0
      %v1226 = vadd.f32 0.0, %v1225
      %v1227 = vpop.f32.mrb[0].mxu0
      %v1228 = vpop.f32.mrb[0].mxu0
      %v1229 = vadd.f32 0.0, %v1228
      %v1230 = vpop.f32.mrb[0].mxu0
      %1231 = vmatprep.mubr.bf16.mxu0 0
      %1232 = vmatmul.mubr.bf16.gmra.mrb[0].mxu0 %v1136
      %v1233 = vpop.f32.mrb[0].mxu0
      %v1234 = vadd.f32 0.0, %v1233
      %v1235 = vpop.f32.mrb[0].mxu0
      %v1236 = vpop.f32.mrb[0].mxu0
      %v1237 = vadd.f32 0.0, %v1236
      %v1238 = vpop.f32.mrb[0].mxu0
      %1239 = vmatprep.mubr.bf16.mxu0 0
      %1240 = vmatmul.mubr.bf16.gmra.mrb[0].mxu0 %v1137
      %v1241 = vpop.f32.mrb[0].mxu0
      %v1242 = vadd.f32 0.0, %v1241
      %v1243 = vpop.f32.mrb[0].mxu0
      %v1244 = vpop.f32.mrb[0].mxu0
      %v1245 = vadd.f32 0.0, %v1244
      %v1246 = vpop.f32.mrb[0].mxu0
      %1247 = vmatprep.mubr.bf16.mxu0 0
      %1248 = vmatmul.mubr.bf16.gmra.mrb[0].mxu0 %v1138
      %v1249 = vpop.f32.mrb[0].mxu0
      %v1250 = vadd.f32 0.0, %v1249
      %v1251 = vpop.f32.mrb[0].mxu0
      %v1252 = vpop.f32.mrb[0].mxu0
      %v1253 = vadd.f32 0.0, %v1252
      %v1254 = vpop.f32.mrb[0].mxu0
      %1255 = vdwg.mxu0
      %v1256 = vadd.f32 %v1104, %v1226
      %v1257 = vadd.f32 %v1105, %v1229
      %v1258 = vadd.f32 %v1106, %v1234
      %v1259 = vadd.f32 %v1107, %v1237
      %v1260 = vadd.f32 %v1108, %v1242
      %v1261 = vadd.f32 %v1109, %v1245
      %v1262 = vadd.f32 %v1110, %v1250
      %v1263 = vadd.f32 %v1111, %v1253
      %s1264 = scalar_lea.vmem %s1, 384
      %v1265 = vld [vmem:[%s1264] sm:$0xf]
      %v1266 = vld [vmem:[%s1264 + $0x4] sm:$0xf]
      %v1267 = vld [vmem:[%s1264 + $0x8] sm:$0xf]
      %v1268 = vld [vmem:[%s1264 + $0xc] sm:$0xf]
      %v1269 = vld [vmem:[%s1264 + $0x10] sm:$0xf]
      %v1270 = vld [vmem:[%s1264 + $0x14] sm:$0xf]
      %v1271 = vld [vmem:[%s1264 + $0x18] sm:$0xf]
      %v1272 = vld [vmem:[%s1264 + $0x1c] sm:$0xf]
      %v1273 = vld [vmem:[%s1264 + $0x20] sm:$0xf]
      %v1274 = vld [vmem:[%s1264 + $0x24] sm:$0xf]
      %v1275 = vld [vmem:[%s1264 + $0x28] sm:$0xf]
      %v1276 = vld [vmem:[%s1264 + $0x2c] sm:$0xf]
      %v1277 = vld [vmem:[%s1264 + $0x30] sm:$0xf]
      %v1278 = vld [vmem:[%s1264 + $0x34] sm:$0xf]
      %v1279 = vld [vmem:[%s1264 + $0x38] sm:$0xf]
      %v1280 = vld [vmem:[%s1264 + $0x3c] sm:$0xf]
      %v1282 = vunpack.c.l.b16 %v190
      %v1283 = vpack.c.b16 %v1282, %v821
      %v1301 = vunpack.c.l.b16 %v1265
      %v1302 = vunpack.c.l.b16 %v1266
      %v1303 = vunpack.c.l.b16 %v1267
      %v1304 = vunpack.c.l.b16 %v1268
      %v1305 = vunpack.c.l.b16 %v1269
      %v1306 = vunpack.c.l.b16 %v1270
      %v1307 = vunpack.c.l.b16 %v1271
      %v1308 = vunpack.c.l.b16 %v1272
      %v1309 = vunpack.c.l.b16 %v1273
      %v1310 = vunpack.c.l.b16 %v1274
      %v1311 = vunpack.c.l.b16 %v1275
      %v1312 = vunpack.c.l.b16 %v1276
      %v1313 = vunpack.c.l.b16 %v1277
      %v1314 = vunpack.c.l.b16 %v1278
      %v1315 = vunpack.c.l.b16 %v1279
      %v1316 = vunpack.c.l.b16 %v1280
      %v1317 = vpack.c.b16 %v1302, %v1301
      %v1318 = vpack.c.b16 %v1304, %v1303
      %v1319 = vpack.c.b16 %v1306, %v1305
      %v1320 = vpack.c.b16 %v1308, %v1307
      %v1321 = vpack.c.b16 %v1310, %v1309
      %v1322 = vpack.c.b16 %v1312, %v1311
      %v1323 = vpack.c.b16 %v1314, %v1313
      %v1324 = vpack.c.b16 %v1316, %v1315
      %1333 = vmatprep.subr.bf16.mxu0 0
      %1334 = vmatpush1.bf16.msra.mxu0 %v1317
      %1335 = vmatprep.subr.bf16.mxu0 0
      %1336 = vmatpush1.bf16.msra.mxu0 %v1318
      %1337 = vmatprep.subr.bf16.mxu0 0
      %1338 = vmatpush1.bf16.msra.mxu0 %v1319
      %1339 = vmatprep.subr.bf16.mxu0 0
      %1340 = vmatpush1.bf16.msra.mxu0 %v1320
      %1341 = vmatprep.subr.bf16.mxu0 0
      %1342 = vmatpush1.bf16.msra.mxu0 %v1321
      %1343 = vmatprep.subr.bf16.mxu0 0
      %1344 = vmatpush1.bf16.msra.mxu0 %v1322
      %1345 = vmatprep.subr.bf16.mxu0 0
      %1346 = vmatpush1.bf16.msra.mxu0 %v1323
      %1347 = vmatprep.subr.bf16.mxu0 0
      %1348 = vmatpush1.bf16.msra.mxu0 %v1324
      %1349 = vmatprep.subr.bf16.mxu0 0
      %1350 = vmatpush1.bf16.msra.mxu0 0
      %1351 = vmatprep.subr.bf16.mxu0 0
      %1352 = vmatpush1.bf16.msra.mxu0 0
      %1353 = vmatprep.subr.bf16.mxu0 0
      %1354 = vmatpush1.bf16.msra.mxu0 0
      %1355 = vmatprep.subr.bf16.mxu0 0
      %1356 = vmatpush1.bf16.msra.mxu0 0
      %1357 = vmatprep.subr.bf16.mxu0 0
      %1358 = vmatpush1.bf16.msra.mxu0 0
      %1359 = vmatprep.subr.bf16.mxu0 0
      %1360 = vmatpush1.bf16.msra.mxu0 0
      %1361 = vmatprep.subr.bf16.mxu0 0
      %1362 = vmatpush1.bf16.msra.mxu0 0
      %1363 = vmatprep.subr.bf16.mxu0 0
      %1364 = vmatpush1.bf16.msra.mxu0 0
      %1365 = vmatprep.mubr.bf16.mxu0 0
      %1366 = vmatmul.mubr.bf16.gmra.mrb[0].mxu0 %v486
      %v1367 = vpop.f32.mrb[0].mxu0
      %v1368 = vadd.f32 0.0, %v1367
      %v1369 = vpop.f32.mrb[0].mxu0
      %v1370 = vpop.f32.mrb[0].mxu0
      %v1371 = vadd.f32 0.0, %v1370
      %v1372 = vpop.f32.mrb[0].mxu0
      %1373 = vmatprep.mubr.bf16.mxu0 0
      %1374 = vmatmul.mubr.bf16.gmra.mrb[0].mxu0 %v487
      %v1375 = vpop.f32.mrb[0].mxu0
      %v1376 = vadd.f32 0.0, %v1375
      %v1377 = vpop.f32.mrb[0].mxu0
      %v1378 = vpop.f32.mrb[0].mxu0
      %v1379 = vadd.f32 0.0, %v1378
      %v1380 = vpop.f32.mrb[0].mxu0
      %1381 = vmatprep.mubr.bf16.mxu0 0
      %1382 = vmatmul.mubr.bf16.gmra.mrb[0].mxu0 %v488
      %v1383 = vpop.f32.mrb[0].mxu0
      %v1384 = vadd.f32 0.0, %v1383
      %v1385 = vpop.f32.mrb[0].mxu0
      %v1386 = vpop.f32.mrb[0].mxu0
      %v1387 = vadd.f32 0.0, %v1386
      %v1388 = vpop.f32.mrb[0].mxu0
      %1389 = vmatprep.mubr.bf16.mxu0 0
      %1390 = vmatmul.mubr.bf16.gmra.mrb[0].mxu0 %v1283
      %v1391 = vpop.f32.mrb[0].mxu0
      %v1392 = vadd.f32 0.0, %v1391
      %v1393 = vpop.f32.mrb[0].mxu0
      %v1394 = vpop.f32.mrb[0].mxu0
      %v1395 = vadd.f32 0.0, %v1394
      %v1396 = vpop.f32.mrb[0].mxu0
      %1397 = vdwg.mxu0
      %v1398 = vadd.f32 %v1256, %v1368
      %v1399 = vadd.f32 %v1257, %v1371
      %v1400 = vadd.f32 %v1258, %v1376
      %v1401 = vadd.f32 %v1259, %v1379
      %v1402 = vadd.f32 %v1260, %v1384
      %v1403 = vadd.f32 %v1261, %v1387
      %v1404 = vadd.f32 %v1262, %v1392
      %v1405 = vadd.f32 %v1263, %v1395
      %v1407 = vshrl.u32 %v190, 16
      %v1409 = vrot.slane %v1407, 4
      %v1410 = vshll.u32 %v190, 16
      %v1412 = vrot.slane %v1410, 5
      %v1413 = vor.u32 %v1409, %v1412
      %v1414 = vrot.slane %v1413, 4
      %v1416 = vshll.u32 %v191, 16
      %v1418 = vrot.slane %v1416, 5
      %v1419 = vsel %vm210, %v1414, %v1418
      %s1420 = scalar_lea.vmem %s1, 448
      %v1421 = vld [vmem:[%s1420] sm:$0xf]
      %v1422 = vld [vmem:[%s1420 + $0x4] sm:$0xf]
      %v1423 = vld [vmem:[%s1420 + $0x8] sm:$0xf]
      %v1424 = vld [vmem:[%s1420 + $0xc] sm:$0xf]
      %v1425 = vld [vmem:[%s1420 + $0x10] sm:$0xf]
      %v1426 = vld [vmem:[%s1420 + $0x14] sm:$0xf]
      %v1427 = vld [vmem:[%s1420 + $0x18] sm:$0xf]
      %v1428 = vld [vmem:[%s1420 + $0x1c] sm:$0xf]
      %v1429 = vld [vmem:[%s1420 + $0x20] sm:$0xf]
      %v1430 = vld [vmem:[%s1420 + $0x24] sm:$0xf]
      %v1431 = vld [vmem:[%s1420 + $0x28] sm:$0xf]
      %v1432 = vld [vmem:[%s1420 + $0x2c] sm:$0xf]
      %v1433 = vld [vmem:[%s1420 + $0x30] sm:$0xf]
      %v1434 = vld [vmem:[%s1420 + $0x34] sm:$0xf]
      %v1435 = vld [vmem:[%s1420 + $0x38] sm:$0xf]
      %v1436 = vld [vmem:[%s1420 + $0x3c] sm:$0xf]
      %v1437 = vunpack.c.l.b16 %v1419
      %v1438 = vpack.c.b16 %v1437, %v982
      %v1456 = vunpack.c.l.b16 %v1421
      %v1457 = vunpack.c.l.b16 %v1422
      %v1458 = vunpack.c.l.b16 %v1423
      %v1459 = vunpack.c.l.b16 %v1424
      %v1460 = vunpack.c.l.b16 %v1425
      %v1461 = vunpack.c.l.b16 %v1426
      %v1462 = vunpack.c.l.b16 %v1427
      %v1463 = vunpack.c.l.b16 %v1428
      %v1464 = vunpack.c.l.b16 %v1429
      %v1465 = vunpack.c.l.b16 %v1430
      %v1466 = vunpack.c.l.b16 %v1431
      %v1467 = vunpack.c.l.b16 %v1432
      %v1468 = vunpack.c.l.b16 %v1433
      %v1469 = vunpack.c.l.b16 %v1434
      %v1470 = vunpack.c.l.b16 %v1435
      %v1471 = vunpack.c.l.b16 %v1436
      %v1472 = vpack.c.b16 %v1457, %v1456
      %v1473 = vpack.c.b16 %v1459, %v1458
      %v1474 = vpack.c.b16 %v1461, %v1460
      %v1475 = vpack.c.b16 %v1463, %v1462
      %v1476 = vpack.c.b16 %v1465, %v1464
      %v1477 = vpack.c.b16 %v1467, %v1466
      %v1478 = vpack.c.b16 %v1469, %v1468
      %v1479 = vpack.c.b16 %v1471, %v1470
      %1488 = vmatprep.subr.bf16.mxu0 0
      %1489 = vmatpush1.bf16.msra.mxu0 %v1472
      %1490 = vmatprep.subr.bf16.mxu0 0
      %1491 = vmatpush1.bf16.msra.mxu0 %v1473
      %1492 = vmatprep.subr.bf16.mxu0 0
      %1493 = vmatpush1.bf16.msra.mxu0 %v1474
      %1494 = vmatprep.subr.bf16.mxu0 0
      %1495 = vmatpush1.bf16.msra.mxu0 %v1475
      %1496 = vmatprep.subr.bf16.mxu0 0
      %1497 = vmatpush1.bf16.msra.mxu0 %v1476
      %1498 = vmatprep.subr.bf16.mxu0 0
      %1499 = vmatpush1.bf16.msra.mxu0 %v1477
      %1500 = vmatprep.subr.bf16.mxu0 0
      %1501 = vmatpush1.bf16.msra.mxu0 %v1478
      %1502 = vmatprep.subr.bf16.mxu0 0
      %1503 = vmatpush1.bf16.msra.mxu0 %v1479
      %1504 = vmatprep.subr.bf16.mxu0 0
      %1505 = vmatpush1.bf16.msra.mxu0 0
      %1506 = vmatprep.subr.bf16.mxu0 0
      %1507 = vmatpush1.bf16.msra.mxu0 0
      %1508 = vmatprep.subr.bf16.mxu0 0
      %1509 = vmatpush1.bf16.msra.mxu0 0
      %1510 = vmatprep.subr.bf16.mxu0 0
      %1511 = vmatpush1.bf16.msra.mxu0 0
      %1512 = vmatprep.subr.bf16.mxu0 0
      %1513 = vmatpush1.bf16.msra.mxu0 0
      %1514 = vmatprep.subr.bf16.mxu0 0
      %1515 = vmatpush1.bf16.msra.mxu0 0
      %1516 = vmatprep.subr.bf16.mxu0 0
      %1517 = vmatpush1.bf16.msra.mxu0 0
      %1518 = vmatprep.subr.bf16.mxu0 0
      %1519 = vmatpush1.bf16.msra.mxu0 0
      %1520 = vmatprep.mubr.bf16.mxu0 0
      %1521 = vmatmul.mubr.bf16.gmra.mrb[0].mxu0 %v349
      %v1522 = vpop.f32.mrb[0].mxu0
      %v1523 = vadd.f32 0.0, %v1522
      %v1524 = vpop.f32.mrb[0].mxu0
      %v1525 = vpop.f32.mrb[0].mxu0
      %v1526 = vadd.f32 0.0, %v1525
      %v1527 = vpop.f32.mrb[0].mxu0
      %1528 = vmatprep.mubr.bf16.mxu0 0
      %1529 = vmatmul.mubr.bf16.gmra.mrb[0].mxu0 %v350
      %v1530 = vpop.f32.mrb[0].mxu0
      %v1531 = vadd.f32 0.0, %v1530
      %v1532 = vpop.f32.mrb[0].mxu0
      %v1533 = vpop.f32.mrb[0].mxu0
      %v1534 = vadd.f32 0.0, %v1533
      %v1535 = vpop.f32.mrb[0].mxu0
      %1536 = vmatprep.mubr.bf16.mxu0 0
      %1537 = vmatmul.mubr.bf16.gmra.mrb[0].mxu0 %v351
      %v1538 = vpop.f32.mrb[0].mxu0
      %v1539 = vadd.f32 0.0, %v1538
      %v1540 = vpop.f32.mrb[0].mxu0
      %v1541 = vpop.f32.mrb[0].mxu0
      %v1542 = vadd.f32 0.0, %v1541
      %v1543 = vpop.f32.mrb[0].mxu0
      %1544 = vmatprep.mubr.bf16.mxu0 0
      %1545 = vmatmul.mubr.bf16.gmra.mrb[0].mxu0 %v1438
      %v1546 = vpop.f32.mrb[0].mxu0
      %v1547 = vadd.f32 0.0, %v1546
      %v1548 = vpop.f32.mrb[0].mxu0
      %v1549 = vpop.f32.mrb[0].mxu0
      %v1550 = vadd.f32 0.0, %v1549
      %v1551 = vpop.f32.mrb[0].mxu0
      %1552 = vdwg.mxu0
      %v1553 = vadd.f32 %v1398, %v1523
      %v1554 = vadd.f32 %v1399, %v1526
      %v1555 = vadd.f32 %v1400, %v1531
      %v1556 = vadd.f32 %v1401, %v1534
      %v1557 = vadd.f32 %v1402, %v1539
      %v1558 = vadd.f32 %v1403, %v1542
      %v1559 = vadd.f32 %v1404, %v1547
      %v1560 = vadd.f32 %v1405, %v1550
      %v1562 = vrot.slane %v190, 5
      %v1563 = vrot.slane %v1562, 4
      %v1564 = vrot.slane %v191, 5
      %v1565 = vsel %vm616, %v1563, %v1564
      %s1566 = scalar_lea.vmem %s1, 512
      %v1567 = vld [vmem:[%s1566] sm:$0xf]
      %v1568 = vld [vmem:[%s1566 + $0x4] sm:$0xf]
      %v1569 = vld [vmem:[%s1566 + $0x8] sm:$0xf]
      %v1570 = vld [vmem:[%s1566 + $0xc] sm:$0xf]
      %v1571 = vld [vmem:[%s1566 + $0x10] sm:$0xf]
      %v1572 = vld [vmem:[%s1566 + $0x14] sm:$0xf]
      %v1573 = vld [vmem:[%s1566 + $0x18] sm:$0xf]
      %v1574 = vld [vmem:[%s1566 + $0x1c] sm:$0xf]
      %v1575 = vld [vmem:[%s1566 + $0x20] sm:$0xf]
      %v1576 = vld [vmem:[%s1566 + $0x24] sm:$0xf]
      %v1577 = vld [vmem:[%s1566 + $0x28] sm:$0xf]
      %v1578 = vld [vmem:[%s1566 + $0x2c] sm:$0xf]
      %v1579 = vld [vmem:[%s1566 + $0x30] sm:$0xf]
      %v1580 = vld [vmem:[%s1566 + $0x34] sm:$0xf]
      %v1581 = vld [vmem:[%s1566 + $0x38] sm:$0xf]
      %v1582 = vld [vmem:[%s1566 + $0x3c] sm:$0xf]
      %v1583 = vunpack.c.l.b16 %v1565
      %v1584 = vpack.c.b16 %v1583, %v1134
      %v1602 = vunpack.c.l.b16 %v1567
      %v1603 = vunpack.c.l.b16 %v1568
      %v1604 = vunpack.c.l.b16 %v1569
      %v1605 = vunpack.c.l.b16 %v1570
      %v1606 = vunpack.c.l.b16 %v1571
      %v1607 = vunpack.c.l.b16 %v1572
      %v1608 = vunpack.c.l.b16 %v1573
      %v1609 = vunpack.c.l.b16 %v1574
      %v1610 = vunpack.c.l.b16 %v1575
      %v1611 = vunpack.c.l.b16 %v1576
      %v1612 = vunpack.c.l.b16 %v1577
      %v1613 = vunpack.c.l.b16 %v1578
      %v1614 = vunpack.c.l.b16 %v1579
      %v1615 = vunpack.c.l.b16 %v1580
      %v1616 = vunpack.c.l.b16 %v1581
      %v1617 = vunpack.c.l.b16 %v1582
      %v1618 = vpack.c.b16 %v1603, %v1602
      %v1619 = vpack.c.b16 %v1605, %v1604
      %v1620 = vpack.c.b16 %v1607, %v1606
      %v1621 = vpack.c.b16 %v1609, %v1608
      %v1622 = vpack.c.b16 %v1611, %v1610
      %v1623 = vpack.c.b16 %v1613, %v1612
      %v1624 = vpack.c.b16 %v1615, %v1614
      %v1625 = vpack.c.b16 %v1617, %v1616
      %1634 = vmatprep.subr.bf16.mxu0 0
      %1635 = vmatpush1.bf16.msra.mxu0 %v1618
      %1636 = vmatprep.subr.bf16.mxu0 0
      %1637 = vmatpush1.bf16.msra.mxu0 %v1619
      %1638 = vmatprep.subr.bf16.mxu0 0
      %1639 = vmatpush1.bf16.msra.mxu0 %v1620
      %1640 = vmatprep.subr.bf16.mxu0 0
      %1641 = vmatpush1.bf16.msra.mxu0 %v1621
      %1642 = vmatprep.subr.bf16.mxu0 0
      %1643 = vmatpush1.bf16.msra.mxu0 %v1622
      %1644 = vmatprep.subr.bf16.mxu0 0
      %1645 = vmatpush1.bf16.msra.mxu0 %v1623
      %1646 = vmatprep.subr.bf16.mxu0 0
      %1647 = vmatpush1.bf16.msra.mxu0 %v1624
      %1648 = vmatprep.subr.bf16.mxu0 0
      %1649 = vmatpush1.bf16.msra.mxu0 %v1625
      %1650 = vmatprep.subr.bf16.mxu0 0
      %1651 = vmatpush1.bf16.msra.mxu0 0
      %1652 = vmatprep.subr.bf16.mxu0 0
      %1653 = vmatpush1.bf16.msra.mxu0 0
      %1654 = vmatprep.subr.bf16.mxu0 0
      %1655 = vmatpush1.bf16.msra.mxu0 0
      %1656 = vmatprep.subr.bf16.mxu0 0
      %1657 = vmatpush1.bf16.msra.mxu0 0
      %1658 = vmatprep.subr.bf16.mxu0 0
      %1659 = vmatpush1.bf16.msra.mxu0 0
      %1660 = vmatprep.subr.bf16.mxu0 0
      %1661 = vmatpush1.bf16.msra.mxu0 0
      %1662 = vmatprep.subr.bf16.mxu0 0
      %1663 = vmatpush1.bf16.msra.mxu0 0
      %1664 = vmatprep.subr.bf16.mxu0 0
      %1665 = vmatpush1.bf16.msra.mxu0 0
      %1666 = vmatprep.mubr.bf16.mxu0 0
      %1667 = vmatmul.mubr.bf16.gmra.mrb[0].mxu0 %v675
      %v1668 = vpop.f32.mrb[0].mxu0
      %v1669 = vadd.f32 0.0, %v1668
      %v1670 = vpop.f32.mrb[0].mxu0
      %v1671 = vpop.f32.mrb[0].mxu0
      %v1672 = vadd.f32 0.0, %v1671
      %v1673 = vpop.f32.mrb[0].mxu0
      %1674 = vmatprep.mubr.bf16.mxu0 0
      %1675 = vmatmul.mubr.bf16.gmra.mrb[0].mxu0 %v676
      %v1676 = vpop.f32.mrb[0].mxu0
      %v1677 = vadd.f32 0.0, %v1676
      %v1678 = vpop.f32.mrb[0].mxu0
      %v1679 = vpop.f32.mrb[0].mxu0
      %v1680 = vadd.f32 0.0, %v1679
      %v1681 = vpop.f32.mrb[0].mxu0
      %1682 = vmatprep.mubr.bf16.mxu0 0
      %1683 = vmatmul.mubr.bf16.gmra.mrb[0].mxu0 %v677
      %v1684 = vpop.f32.mrb[0].mxu0
      %v1685 = vadd.f32 0.0, %v1684
      %v1686 = vpop.f32.mrb[0].mxu0
      %v1687 = vpop.f32.mrb[0].mxu0
      %v1688 = vadd.f32 0.0, %v1687
      %v1689 = vpop.f32.mrb[0].mxu0
      %1690 = vmatprep.mubr.bf16.mxu0 0
      %1691 = vmatmul.mubr.bf16.gmra.mrb[0].mxu0 %v1584
      %v1692 = vpop.f32.mrb[0].mxu0
      %v1693 = vadd.f32 0.0, %v1692
      %v1694 = vpop.f32.mrb[0].mxu0
      %v1695 = vpop.f32.mrb[0].mxu0
      %v1696 = vadd.f32 0.0, %v1695
      %v1697 = vpop.f32.mrb[0].mxu0
      %1698 = vdwg.mxu0
      %v1699 = vadd.f32 %v1553, %v1669
      %v1700 = vadd.f32 %v1554, %v1672
      %v1701 = vadd.f32 %v1555, %v1677
      %v1702 = vadd.f32 %v1556, %v1680
      %v1703 = vadd.f32 %v1557, %v1685
      %v1704 = vadd.f32 %v1558, %v1688
      %v1705 = vadd.f32 %v1559, %v1693
      %v1706 = vadd.f32 %v1560, %v1696
      %v1707 = vld [vmem:[%s2] sm:$0x1]
      %v1709 = vlaneseq
      %v1710 = vshrl.u32 %v1709, 7
      %v1711 = vsub.s32 0, %v1710
      %v1712 = vrot.slane %v1707, %v1711
      %v1714 = vadd.f32 %v1699, %v1712
      %v1715 = vadd.f32 %v1700, %v1712
      %v1716 = vadd.f32 %v1701, %v1712
      %v1717 = vadd.f32 %v1702, %v1712
      %v1718 = vadd.f32 %v1703, %v1712
      %v1719 = vadd.f32 %v1704, %v1712
      %v1720 = vadd.f32 %v1705, %v1712
      %v1721 = vadd.f32 %v1706, %v1712
      %v1722 = vmax.f32 %v1714, 0.0
      %v1723 = vmax.f32 %v1715, 0.0
      %v1724 = vmax.f32 %v1716, 0.0
      %v1725 = vmax.f32 %v1717, 0.0
      %v1726 = vmax.f32 %v1718, 0.0
      %v1727 = vmax.f32 %v1719, 0.0
      %v1728 = vmax.f32 %v1720, 0.0
      %v1729 = vmax.f32 %v1721, 0.0
      %v1730 = vpack.c.bf16 %v1722, %v1722
      %v1731 = vpack.c.bf16 %v1723, %v1723
      %v1732 = vpack.c.bf16 %v1724, %v1724
      %v1733 = vpack.c.bf16 %v1725, %v1725
      %v1734 = vpack.c.bf16 %v1726, %v1726
      %v1735 = vpack.c.bf16 %v1727, %v1727
      %v1736 = vpack.c.bf16 %v1728, %v1728
      %v1737 = vpack.c.bf16 %v1729, %v1729
      %1738 = vst [vmem:[%s170] sm:$0xf] %v1730
      %1739 = vst [vmem:[%s170 + $0x4] sm:$0xf] %v1731
      %1740 = vst [vmem:[%s170 + $0x8] sm:$0xf] %v1732
      %1741 = vst [vmem:[%s170 + $0xc] sm:$0xf] %v1733
      %1742 = vst [vmem:[%s170 + $0x10] sm:$0xf] %v1734
      %1743 = vst [vmem:[%s170 + $0x14] sm:$0xf] %v1735
      %1744 = vst [vmem:[%s170 + $0x18] sm:$0xf] %v1736
      %1745 = vst [vmem:[%s170 + $0x1c] sm:$0xf] %v1737
      %p1746 = scmp.lt.s32.totalorder %s14, 1
      %s1747 = scalar_select %p1746, %s14, 1
      %s1748 = smul.addr %s1747, 8
      %s1749 = smul.addr %s1748, 4
      %s1750 = scalar_lea.vmem %s3, %s1749
      // Predicated region
      $region33: #{feature_extract.15} parent=31 // pred_check
        %p1751 = pneg %p100
      $region34: #{feature_extract.15} parent=31 // pred_check_branch
        %1753 = sbr.rel (%p1751) target = $region36
      $region35: #{feature_extract.15} parent=31 // pred_region
        _
      $region36: #{feature_extract.15} parent=31 // pred_fallthru
        _
    $region32: #{feature_extract.15} parent=5 // pred_fallthru
      _
    %p1754 = scmp.le.s32.totalorder 2, %s9
    // Predicated region
    $region37: #{feature_extract.15} parent=5 // pred_check
      %p1755 = pneg %p1754
    $region38: #{feature_extract.15} parent=5 // pred_check_branch
      %1757 = sbr.rel (%p1755) target = $region40
    $region39: #{feature_extract.15} parent=5 // pred_region
      %s1758 = ssub.s32 %s9, 2
      // Predicated region
      $region41: #{feature_extract.15} parent=39 // pred_check
        %p1759 = pneg %p106
      $region42: #{feature_extract.15} parent=39 // pred_check_branch
        %1761 = sbr.rel (%p1759) target = $region44
      $region43: #{feature_extract.15} parent=39 // pred_region
        %p1762 = scmp.lt.s32.totalorder %s15, 1
        %s1763 = scalar_select %p1762, %s15, 1
        %s1764 = smul.addr %s1763, 8
        %s1765 = smul.addr %s1764, 4
        %s1766 = scalar_lea.vmem %s3, %s1765
      $region44: #{feature_extract.15} parent=39 // pred_fallthru
        _
    $region40: #{feature_extract.15} parent=5 // pred_fallthru
      _
  $region6: #{feature_extract.15} parent=0 // loop_footer
    %s13 = sadd.s32 1, %s9
  $region7: #{feature_extract.15} parent=0 // loop_footer_branch
    %8 = sbr.rel target = $region3
  $region8: #{feature_extract.15} parent=0 // loop_exit
    _

</llo_original>
